<compile_context>
chip_gen: v7x
topology: tpu7x:2x2x1
jax: 0.10.0
libtpu: 0.0.40
codegen_flags: <defaults>
</compile_context>

<pallas_src>
import functools

import jax
import jax.numpy as jnp
from jax.experimental import pallas as pl
from jax.experimental.pallas import tpu as pltpu


_PARAM_ORDER = ("w1", "vmid", "w2", "vout", "wp")  # vmid=[b1;gamma;beta], vout=[b2;bp]
_LN_EPS = 1e-5           # torch.nn.LayerNorm default
_NORM_EPS_SQ = 1e-24     # F.normalize eps = 1e-12, squared (used under rsqrt)


# ----------------------------------------------------------------------------
# Fused kernel
# ----------------------------------------------------------------------------
def _encode(x_bf16, w1_ref, vmid_ref, w2_ref, vout_ref, wp_ref):
    """MLPLN [din, dmid, dout] (Lin -> LN -> SiLU -> Lin) + linear proj + L2 norm."""
    vm = vmid_ref[...]                    # rows: b1, gamma, beta   (3, dmid) f32
    vo = vout_ref[...]                    # rows: b2, bp            (2, dout) f32
    # Linear 1 (bf16 MXU operands, f32 accumulation)
    h = jnp.dot(x_bf16, w1_ref[...], preferred_element_type=jnp.float32) + vm[0:1, :]
    # LayerNorm (f32 statistics)
    mu = jnp.mean(h, axis=-1, keepdims=True)
    var = jnp.mean(jnp.square(h - mu), axis=-1, keepdims=True)
    hn = (h - mu) * jax.lax.rsqrt(var + _LN_EPS) * vm[1:2, :] + vm[2:3, :]
    # SiLU (Dropout is identity in eval mode)
    hn = hn * jax.nn.sigmoid(hn)
    # Linear 2 (MLPLN drops the trailing SiLU/Dropout: no activation here)
    emb = jnp.dot(hn.astype(jnp.bfloat16), w2_ref[...],
                  preferred_element_type=jnp.float32) + vo[0:1, :]
    # projection head (args.proj == 'linear'), then F.normalize(dim=1)
    lat = jnp.dot(emb.astype(jnp.bfloat16), wp_ref[...],
                  preferred_element_type=jnp.float32) + vo[1:2, :]
    ssq = jnp.sum(lat * lat, axis=-1, keepdims=True)
    return lat * jax.lax.rsqrt(jnp.maximum(ssq, _NORM_EPS_SQ))


def _fused_moco_kernel(*refs, inv_t, use_bf16_exp):
    x_ges_ref, x_dc_ref = refs[0:2]
    qg_p = refs[2:7]        # encoder_q.ges  (w1, vmid, w2, vout, wp)
    qd_p = refs[7:12]       # encoder_q.dc
    kg_p = refs[12:17]      # encoder_k.ges  (momentum encoder)
    kd_p = refs[17:22]      # encoder_k.dc
    queue_dc_ref, queue_ges_ref = refs[22:24]
    qg_out, qd_out, kg_out, kd_out, loss_out = refs[24:29]
    qg_bf, qd_bf, lpos_g, s_g, lpos_d, s_d = refs[29:35]

    k_idx = pl.program_id(1)

    # -- encoders: once per batch tile; outputs + pre-scaled bf16 q latents ----
    @pl.when(k_idx == 0)
    def _():
        xg = x_ges_ref[...]
        xd = x_dc_ref[...]
        qg = _encode(xg, *qg_p)
        qd = _encode(xd, *qd_p)
        kg = _encode(xg, *kg_p)      # no_grad in torch — forward math identical
        kd = _encode(xd, *kd_p)
        # latent output blocks have a constant (i, 0) index over k -> resident;
        # write them once here, flushed to HBM when the batch tile changes.
        qg_out[...] = qg
        qd_out[...] = qd
        kg_out[...] = kg
        kd_out[...] = kd
        # bf16 q latents pre-scaled by 1/T: per-step cast + (tm, tk) multiply gone
        qg_bf[...] = (qg * inv_t).astype(jnp.bfloat16)
        qd_bf[...] = (qd * inv_t).astype(jnp.bfloat16)
        # positive logits + static-max softmax denominator init:
        #   all latents / queue columns are L2-normalized  =>  every logit <= 1/T,
        #   so max == inv_t statically (exp arg in [-2/T, ~0], safely representable).
        lp_g = jnp.sum(qg * kd, axis=-1, keepdims=True) * inv_t
        lp_d = jnp.sum(qd * kg, axis=-1, keepdims=True) * inv_t
        lpos_g[...] = lp_g
        lpos_d[...] = lp_d
        s_g[...] = jnp.exp(lp_g - inv_t)
        s_d[...] = jnp.exp(lp_d - inv_t)

    # -- one queue block per grid step: MXU matmul + static-max exp-sum --------
    def _accumulate(q_bf_sc, queue_ref, s_ref):
        # logits already include the 1/T factor via the pre-scaled bf16 latents
        l_shift = jnp.dot(q_bf_sc[...], queue_ref[...],
                          preferred_element_type=jnp.float32) - inv_t
        if use_bf16_exp:                     # v6e/v7x: EUP has a bf16 path
            p = jnp.exp(l_shift.astype(jnp.bfloat16))
        else:                                # v5e and older: keep f32
            p = jnp.exp(l_shift)
        s_ref[...] = s_ref[...] + jnp.sum(p.astype(jnp.float32),
                                          axis=-1, keepdims=True)

    _accumulate(qg_bf, queue_dc_ref, s_g)    # loss_ges negatives: queue_dc
    _accumulate(qd_bf, queue_ges_ref, s_d)   # loss_dc  negatives: queue_ges

    # -- finalize: CrossEntropy(label 0) = logsumexp - l_pos = 1/T + log(s) - l_pos
    @pl.when(k_idx == pl.num_programs(1) - 1)
    def _():
        # TODO(synk): a fully lane-dense (2, n_pad) loss layout would avoid the
        # 2-lane masked store here; it is once-per-batch-tile so kept simple.
        loss_out[:, 0:1] = inv_t + jnp.log(s_g[...]) - lpos_g[...]
        loss_out[:, 1:2] = inv_t + jnp.log(s_d[...]) - lpos_d[...]


# ----------------------------------------------------------------------------
# Wrapper: tiling choices + pallas_call
# ----------------------------------------------------------------------------
def _round_up(x, m):
    return ((x + m - 1) // m) * m


def _device_kind():
    try:
        return jax.devices()[0].device_kind.lower()
    except Exception:
        return ""


def _vmem_limit_bytes():
    # ~40 MiB on v7x (64 MiB physical), ~80 MiB on v5e/v6e (128 MiB physical)
    try:
        cap = int(pltpu.get_tpu_info().vmem_capacity_bytes)
    except Exception:
        cap = 128 * 1024 * 1024
    return int(min(cap * 5 // 8, 100 * 1024 * 1024))


def _pick_k_tile(k_total, tm, max_tk):
    # big queue tiles amortize the ~0.35us per-grid-step overhead; keep the
    # f32 (tm, tk) logit intermediate <= 16 MiB.
    for cand in (16384, 8192, 4096, 2048, 1024, 512, 256, 128):
        if cand <= max_tk and cand * tm <= (4 << 20) \
                and k_total >= cand and k_total % cand == 0:
            return cand
    return k_total    # small / odd K: single full-width block


def moco_pair_fused(diff_ges, drug_repr, qp_ges, qp_dc, kp_ges, kp_dc,
                    queue_dc, queue_ges, temperature):
    n = diff_ges.shape[0]
    gene_dim = diff_ges.shape[1]
    drug_dim = drug_repr.shape[1]
    hid = queue_dc.shape[0]
    k_total = queue_dc.shape[1]

    kind = _device_kind()
    is_old_gen = any(t in kind for t in ("v2", "v3", "v4", "v5"))
    is_v7x = ("v7" in kind) or ("7x" in kind)
    use_bf16_exp = not is_old_gen            # bf16 EUP only on v6e/v7x

    # batch tiling: as few batch tiles as possible (each tile re-streams both
    # queues from HBM); 256 rows matches the v6e/v7x MXU, 512 on v5e where the
    # kernel is queue-DMA bound.
    tm_cap = 512 if is_old_gen else 256
    if n <= tm_cap:
        tm = _round_up(n, 8)
        n_pad = tm
    else:
        tm = tm_cap
        n_pad = _round_up(n, tm_cap)
    # v7x has 2 TensorCores: make sure the 'parallel' batch axis has >= 2 tiles
    if is_v7x and (n_pad // tm) == 1 and tm >= 16:
        tm = _round_up((tm + 1) // 2, 8)
        n_pad = 2 * tm

    tk = _pick_k_tile(k_total, tm, max_tk=8192 if is_v7x else 16384)
    grid = (n_pad // tm, k_total // tk)

    pad = ((0, n_pad - n), (0, 0))
    xg = jnp.pad(diff_ges, pad).astype(jnp.bfloat16)
    xd = jnp.pad(drug_repr, pad).astype(jnp.bfloat16)
    queue_dc = queue_dc.astype(jnp.bfloat16)
    queue_ges = queue_ges.astype(jnp.bfloat16)
    # TODO(synk): on v5e an int8 queue with per-column scales would halve the
    # dominant HBM stream; left as bf16 pending loss-tolerance validation.

    kernel = functools.partial(_fused_moco_kernel,
                               inv_t=float(1.0 / temperature),
                               use_bf16_exp=use_bf16_exp)
    args = ([xg, xd]
            + [qp_ges[nm] for nm in _PARAM_ORDER] + [qp_dc[nm] for nm in _PARAM_ORDER]
            + [kp_ges[nm] for nm in _PARAM_ORDER] + [kp_dc[nm] for nm in _PARAM_ORDER]
            + [queue_dc, queue_ges])

    def _run(const_mode):
        # constant-index weight blocks: fetched once; single-buffer when supported
        def cspec(shape):
            if const_mode is None:
                return pl.BlockSpec(shape, lambda i, k: (0, 0))
            return pl.BlockSpec(shape, lambda i, k: (0, 0), pipeline_mode=const_mode)

        def pspecs(p):
            return [cspec(p[name].shape) for name in _PARAM_ORDER]

        queue_spec = pl.BlockSpec((hid, tk), lambda i, k: (0, k))
        lat_spec = pl.BlockSpec((tm, hid), lambda i, k: (i, 0))

        in_specs = ([pl.BlockSpec((tm, gene_dim), lambda i, k: (i, 0)),
                     pl.BlockSpec((tm, drug_dim), lambda i, k: (i, 0))]
                    + pspecs(qp_ges) + pspecs(qp_dc)
                    + pspecs(kp_ges) + pspecs(kp_dc)
                    + [queue_spec, queue_spec])
        out_specs = (lat_spec, lat_spec, lat_spec, lat_spec,
                     pl.BlockSpec((tm, 2), lambda i, k: (i, 0)))
        out_shape = ((jax.ShapeDtypeStruct((n_pad, hid), jnp.float32),) * 4
                     + (jax.ShapeDtypeStruct((n_pad, 2), jnp.float32),))
        scratch = ([pltpu.VMEM((tm, hid), jnp.bfloat16)] * 2      # qg_bf, qd_bf
                   + [pltpu.VMEM((tm, 1), jnp.float32)] * 4)      # lpos_g, s_g, lpos_d, s_d

        return pl.pallas_call(
            kernel,
            out_shape=out_shape,
            grid_spec=pltpu.PrefetchScalarGridSpec(
                num_scalar_prefetch=0, grid=grid,
                in_specs=in_specs, out_specs=out_specs, scratch_shapes=scratch),
            compiler_params=pltpu.CompilerParams(
                dimension_semantics=("parallel", "arbitrary"),
                vmem_limit_bytes=_vmem_limit_bytes()),
        )(*args)

    try:
        qg_lat, qd_lat, kg_lat, kd_lat, loss = _run(pl.Buffered(1))
    except Exception:
        # pipeline_mode=Buffered(1) unsupported on this build: default buffering
        qg_lat, qd_lat, kg_lat, kd_lat, loss = _run(None)

    return (loss[:n, 0], loss[:n, 1],
            qg_lat[:n], qd_lat[:n], kg_lat[:n], kd_lat[:n])


# ----------------------------------------------------------------------------
# Parameter setup (mirrors the PyTorch module's __init__ shapes)
# ----------------------------------------------------------------------------
def _make_mlpln_params(key, d_in, d_mid, d_out, d_proj):
    assert d_out == d_proj   # holds for the proj='linear' heads in this config
    ks = jax.random.split(key, 6)
    s1 = 1.0 / jnp.sqrt(d_in)
    s2 = 1.0 / jnp.sqrt(d_mid)
    s3 = 1.0 / jnp.sqrt(d_out)
    u = jax.random.uniform
    b1 = u(ks[1], (1, d_mid), jnp.float32, -s1, s1)
    gamma = jnp.ones((1, d_mid), jnp.float32)
    beta = jnp.zeros((1, d_mid), jnp.float32)
    b2 = u(ks[3], (1, d_out), jnp.float32, -s2, s2)
    bp = u(ks[5], (1, d_proj), jnp.float32, -s3, s3)
    return {
        # weights stored (in, out) in bf16 (MXU operands; halves HBM/DMA bytes)
        "w1": u(ks[0], (d_in, d_mid), jnp.float32, -s1, s1).astype(jnp.bfloat16),
        "vmid": jnp.concatenate([b1, gamma, beta], axis=0),        # (3, d_mid) f32
        "w2": u(ks[2], (d_mid, d_out), jnp.float32, -s2, s2).astype(jnp.bfloat16),
        "vout": jnp.concatenate([b2, bp], axis=0),                 # (2, d_out) f32
        "wp": u(ks[4], (d_out, d_proj), jnp.float32, -s3, s3).astype(jnp.bfloat16),
    }


class MoCoPairPallas:
    def __init__(self, key, *, gene_dim, drug_dim, enc_intldim, dc_intldim,
                 enc_hiddim, moco_k, temperature, num_drugs):
        k_ges, k_dc, k_qg, k_qd, k_drug = jax.random.split(key, 5)
        # encoder_q
        self.q_ges = _make_mlpln_params(k_ges, gene_dim, enc_intldim, enc_hiddim, enc_hiddim)
        self.q_dc = _make_mlpln_params(k_dc, drug_dim, dc_intldim, enc_hiddim, enc_hiddim)
        # encoder_k initialized as a copy of encoder_q (param_k.data.copy_(param_q))
        self.k_ges = {kk: jnp.array(v) for kk, v in self.q_ges.items()}
        self.k_dc = {kk: jnp.array(v) for kk, v in self.q_dc.items()}
        # MoCo queues: randn(enc_hiddim, K) normalized along dim 0; stored bf16
        qg = jax.random.normal(k_qg, (enc_hiddim, moco_k), jnp.float32)
        qd = jax.random.normal(k_qd, (enc_hiddim, moco_k), jnp.float32)
        qg = qg / jnp.maximum(jnp.linalg.norm(qg, axis=0, keepdims=True), 1e-12)
        qd = qd / jnp.maximum(jnp.linalg.norm(qd, axis=0, keepdims=True), 1e-12)
        self.queue_ges = qg.astype(jnp.bfloat16)
        self.queue_dc = qd.astype(jnp.bfloat16)
        self.temperature = temperature
        # stand-in for drug_repr_dict: deterministic table, rows = drug names
        self.drug_repr_table = jax.random.normal(k_drug, (num_drugs, drug_dim), jnp.float32)

    def _get_drug_repr(self, drug_indices):
        # emulates torch.cat([drug_repr_dict[d] for d in drug]).view(len(drug), -1).float()
        return self.drug_repr_table[jnp.asarray(drug_indices)].astype(jnp.float32)

    def forward(self, diff_ges, cell, drug, index_tensor=None, epoch=None):
        # TODO(synk): args.infocore / args.cellproj branches (classifier heads,
        # per-cell projection heads, reweighted InfoNCE) and the stateful
        # _momentum_update_key_encoder / _dequeue_and_enqueue methods (called
        # outside forward in torch) are not implemented; this reproduces the
        # infocore=False, cellproj=False forward path.
        if index_tensor is not None:
            drug = [drug[i] for i in index_tensor]
        drug_repr = self._get_drug_repr(drug)
        return moco_pair_fused(diff_ges, drug_repr,
                               self.q_ges, self.q_dc, self.k_ges, self.k_dc,
                               self.queue_dc, self.queue_ges, self.temperature)


# ----------------------------------------------------------------------------
# Pure-JAX f32 reference (same bf16-rounded weights/inputs) for validation
# ----------------------------------------------------------------------------
def _ref_forward(xg, xd, qp_ges, qp_dc, kp_ges, kp_dc, queue_dc, queue_ges, T):
    def enc(x, p):
        w1 = p["w1"].astype(jnp.float32)
        w2 = p["w2"].astype(jnp.float32)
        wp = p["wp"].astype(jnp.float32)
        vm, vo = p["vmid"], p["vout"]
        h = x @ w1 + vm[0]
        mu = h.mean(-1, keepdims=True)
        var = ((h - mu) ** 2).mean(-1, keepdims=True)
        h = (h - mu) / jnp.sqrt(var + _LN_EPS) * vm[1] + vm[2]
        h = h * jax.nn.sigmoid(h)
        e = h @ w2 + vo[0]
        l = e @ wp + vo[1]
        return l / jnp.maximum(jnp.linalg.norm(l, axis=-1, keepdims=True), 1e-12)

    qg, qd = enc(xg, qp_ges), enc(xd, qp_dc)
    kg, kd = enc(xg, kp_ges), enc(xd, kp_dc)

    def ce(q, k, queue):
        lpos = jnp.sum(q * k, axis=-1, keepdims=True) / T
        lneg = q @ queue.astype(jnp.float32) / T
        logits = jnp.concatenate([lpos, lneg], axis=1)
        return jax.nn.logsumexp(logits, axis=1) - lpos[:, 0]

    return ce(qg, kd, queue_dc), ce(qd, kg, queue_ges), qg, qd, kg, kd


# ----------------------------------------------------------------------------
# Main
# ----------------------------------------------------------------------------
if __name__ == "__main__":
    key = jax.random.PRNGKey(0)
    k_params, k_x = jax.random.split(key)

    # small shapes consistent with the module
    N = 8            # batch
    GENE_DIM = 64    # args.gene_dim
    DRUG_DIM = 48    # inferred drug_dim
    ENC_INTL = 32    # args.enc_intldim
    DC_INTL = 32     # args.dc_intldim
    ENC_HID = 32     # args.enc_hiddim
    K = 128          # args.moco_k
    T = 0.07         # args.temperature
    NUM_DRUGS = 16

    model = MoCoPairPallas(
        k_params, gene_dim=GENE_DIM, drug_dim=DRUG_DIM, enc_intldim=ENC_INTL,
        dc_intldim=DC_INTL, enc_hiddim=ENC_HID, moco_k=K, temperature=T,
        num_drugs=NUM_DRUGS)

    diff_ges = jax.random.normal(k_x, (N, GENE_DIM), jnp.float32)
    cell = ["A375"] * N                    # unused in this config
    drug = list(range(N))                  # drug "names" -> indices into the table

    outs = model.forward(diff_ges, cell, drug, index_tensor=None, epoch=0)
    outs = jax.block_until_ready(outs)

    loss_ges, loss_dc, q_ges_latent, q_dc_latent, k_ges_latent, k_dc_latent = outs
    assert loss_ges.shape == (N,) and loss_dc.shape == (N,)
    assert q_ges_latent.shape == (N, ENC_HID) and q_dc_latent.shape == (N, ENC_HID)
    assert k_ges_latent.shape == (N, ENC_HID) and k_dc_latent.shape == (N, ENC_HID)
    assert bool(jnp.all(jnp.isfinite(loss_ges))) and bool(jnp.all(jnp.isfinite(loss_dc)))
    # latents must be L2-normalized
    assert bool(jnp.allclose(jnp.sum(q_ges_latent**2, -1), 1.0, atol=1e-2))

    # reference check (kernel uses bf16 intermediates -> ~1e-2 level deviation)
    drug_repr = model._get_drug_repr(drug)
    xg32 = diff_ges.astype(jnp.bfloat16).astype(jnp.float32)
    xd32 = drug_repr.astype(jnp.bfloat16).astype(jnp.float32)
    r_lg, r_ld, r_qg, r_qd, r_kg, r_kd = _ref_forward(
        xg32, xd32, model.q_ges, model.q_dc, model.k_ges, model.k_dc,
        model.queue_dc, model.queue_ges, T)
    assert bool(jnp.allclose(q_ges_latent, r_qg, atol=3e-2))
    assert bool(jnp.allclose(q_dc_latent, r_qd, atol=3e-2))
    assert bool(jnp.allclose(k_ges_latent, r_kg, atol=3e-2))
    assert bool(jnp.allclose(k_dc_latent, r_kd, atol=3e-2))
    assert bool(jnp.allclose(loss_ges, r_lg, atol=3e-1, rtol=3e-2))
    assert bool(jnp.allclose(loss_dc, r_ld, atol=3e-1, rtol=3e-2))

    print("KERNEL_OK")
</pallas_src>

<mosaic_0001>
module attributes {stable_mosaic.version = 11 : i64} {
  func.func @_fused_moco_kernel(%arg0: i32, %arg1: i32, %arg2: memref<8x64xbf16, #tpu.memory_space<vmem>>, %arg3: memref<8x48xbf16, #tpu.memory_space<vmem>>, %arg4: memref<64x32xbf16, #tpu.memory_space<vmem>>, %arg5: memref<3x32xf32, #tpu.memory_space<vmem>>, %arg6: memref<32x32xbf16, #tpu.memory_space<vmem>>, %arg7: memref<2x32xf32, #tpu.memory_space<vmem>>, %arg8: memref<32x32xbf16, #tpu.memory_space<vmem>>, %arg9: memref<48x32xbf16, #tpu.memory_space<vmem>>, %arg10: memref<3x32xf32, #tpu.memory_space<vmem>>, %arg11: memref<32x32xbf16, #tpu.memory_space<vmem>>, %arg12: memref<2x32xf32, #tpu.memory_space<vmem>>, %arg13: memref<32x32xbf16, #tpu.memory_space<vmem>>, %arg14: memref<64x32xbf16, #tpu.memory_space<vmem>>, %arg15: memref<3x32xf32, #tpu.memory_space<vmem>>, %arg16: memref<32x32xbf16, #tpu.memory_space<vmem>>, %arg17: memref<2x32xf32, #tpu.memory_space<vmem>>, %arg18: memref<32x32xbf16, #tpu.memory_space<vmem>>, %arg19: memref<48x32xbf16, #tpu.memory_space<vmem>>, %arg20: memref<3x32xf32, #tpu.memory_space<vmem>>, %arg21: memref<32x32xbf16, #tpu.memory_space<vmem>>, %arg22: memref<2x32xf32, #tpu.memory_space<vmem>>, %arg23: memref<32x32xbf16, #tpu.memory_space<vmem>>, %arg24: memref<32x128xbf16, #tpu.memory_space<vmem>>, %arg25: memref<32x128xbf16, #tpu.memory_space<vmem>>, %arg26: memref<8x32xf32, #tpu.memory_space<vmem>>, %arg27: memref<8x32xf32, #tpu.memory_space<vmem>>, %arg28: memref<8x32xf32, #tpu.memory_space<vmem>>, %arg29: memref<8x32xf32, #tpu.memory_space<vmem>>, %arg30: memref<8x2xf32, #tpu.memory_space<vmem>>, %arg31: memref<8x32xbf16, #tpu.memory_space<vmem>>, %arg32: memref<8x32xbf16, #tpu.memory_space<vmem>>, %arg33: memref<8x1xf32, #tpu.memory_space<vmem>>, %arg34: memref<8x1xf32, #tpu.memory_space<vmem>>, %arg35: memref<8x1xf32, #tpu.memory_space<vmem>>, %arg36: memref<8x1xf32, #tpu.memory_space<vmem>>) attributes {dimension_semantics = [#tpu.dimension_semantics<parallel>, #tpu.dimension_semantics<arbitrary>], iteration_bounds = array<i64: 1, 1>, scalar_prefetch = 0 : i64, scratch_operands = 6 : i64, tpu.core_type = #tpu.core_type<tc>, window_params = [{transform_indices = @transform_0, window_bounds = array<i64: 8, 64>}, {transform_indices = @transform_1, window_bounds = array<i64: 8, 48>}, {pipeline_mode = #tpu.pipeline_mode<synchronous>, transform_indices = @transform_2, window_bounds = array<i64: 64, 32>}, {pipeline_mode = #tpu.pipeline_mode<synchronous>, transform_indices = @transform_3, window_bounds = array<i64: 3, 32>}, {pipeline_mode = #tpu.pipeline_mode<synchronous>, transform_indices = @transform_4, window_bounds = array<i64: 32, 32>}, {pipeline_mode = #tpu.pipeline_mode<synchronous>, transform_indices = @transform_5, window_bounds = array<i64: 2, 32>}, {pipeline_mode = #tpu.pipeline_mode<synchronous>, transform_indices = @transform_6, window_bounds = array<i64: 32, 32>}, {pipeline_mode = #tpu.pipeline_mode<synchronous>, transform_indices = @transform_7, window_bounds = array<i64: 48, 32>}, {pipeline_mode = #tpu.pipeline_mode<synchronous>, transform_indices = @transform_8, window_bounds = array<i64: 3, 32>}, {pipeline_mode = #tpu.pipeline_mode<synchronous>, transform_indices = @transform_9, window_bounds = array<i64: 32, 32>}, {pipeline_mode = #tpu.pipeline_mode<synchronous>, transform_indices = @transform_10, window_bounds = array<i64: 2, 32>}, {pipeline_mode = #tpu.pipeline_mode<synchronous>, transform_indices = @transform_11, window_bounds = array<i64: 32, 32>}, {pipeline_mode = #tpu.pipeline_mode<synchronous>, transform_indices = @transform_12, window_bounds = array<i64: 64, 32>}, {pipeline_mode = #tpu.pipeline_mode<synchronous>, transform_indices = @transform_13, window_bounds = array<i64: 3, 32>}, {pipeline_mode = #tpu.pipeline_mode<synchronous>, transform_indices = @transform_14, window_bounds = array<i64: 32, 32>}, {pipeline_mode = #tpu.pipeline_mode<synchronous>, transform_indices = @transform_15, window_bounds = array<i64: 2, 32>}, {pipeline_mode = #tpu.pipeline_mode<synchronous>, transform_indices = @transform_16, window_bounds = array<i64: 32, 32>}, {pipeline_mode = #tpu.pipeline_mode<synchronous>, transform_indices = @transform_17, window_bounds = array<i64: 48, 32>}, {pipeline_mode = #tpu.pipeline_mode<synchronous>, transform_indices = @transform_18, window_bounds = array<i64: 3, 32>}, {pipeline_mode = #tpu.pipeline_mode<synchronous>, transform_indices = @transform_19, window_bounds = array<i64: 32, 32>}, {pipeline_mode = #tpu.pipeline_mode<synchronous>, transform_indices = @transform_20, window_bounds = array<i64: 2, 32>}, {pipeline_mode = #tpu.pipeline_mode<synchronous>, transform_indices = @transform_21, window_bounds = array<i64: 32, 32>}, {transform_indices = @transform_22, window_bounds = array<i64: 32, 128>}, {transform_indices = @transform_23, window_bounds = array<i64: 32, 128>}, {transform_indices = @transform_24, window_bounds = array<i64: 8, 32>}, {transform_indices = @transform_25, window_bounds = array<i64: 8, 32>}, {transform_indices = @transform_26, window_bounds = array<i64: 8, 32>}, {transform_indices = @transform_27, window_bounds = array<i64: 8, 32>}, {transform_indices = @transform_28, window_bounds = array<i64: 8, 2>}]} {
    %c0_i32 = arith.constant 0 : i32
    %0 = arith.cmpi eq, %arg1, %c0_i32 : i32
    %1 = arith.extui %0 : i1 to i32
    %c0_i32_0 = arith.constant 0 : i32
    %2 = arith.cmpi ne, %1, %c0_i32_0 : i32
    scf.if %2 {
      %c0_23 = arith.constant 0 : index
      %c0_24 = arith.constant 0 : index
      %32 = vector.load %arg2[%c0_23, %c0_24] : memref<8x64xbf16, #tpu.memory_space<vmem>>, vector<8x64xbf16>
      %c0_25 = arith.constant 0 : index
      %c0_26 = arith.constant 0 : index
      %33 = vector.load %arg3[%c0_25, %c0_26] : memref<8x48xbf16, #tpu.memory_space<vmem>>, vector<8x48xbf16>
      %c0_27 = arith.constant 0 : index
      %c0_28 = arith.constant 0 : index
      %34 = vector.load %arg5[%c0_27, %c0_28] : memref<3x32xf32, #tpu.memory_space<vmem>>, vector<3x32xf32>
      %c0_29 = arith.constant 0 : index
      %c0_30 = arith.constant 0 : index
      %35 = vector.load %arg7[%c0_29, %c0_30] : memref<2x32xf32, #tpu.memory_space<vmem>>, vector<2x32xf32>
      %c0_31 = arith.constant 0 : index
      %c0_32 = arith.constant 0 : index
      %36 = vector.load %arg4[%c0_31, %c0_32] : memref<64x32xbf16, #tpu.memory_space<vmem>>, vector<64x32xbf16>
      %cst_33 = arith.constant dense<0.000000e+00> : vector<8x32xf32>
      %37 = tpu.matmul %32, %36, %cst_33 {dimension_numbers = #tpu.dot_dimension_numbers<[1], [0], [0], [1], [0, 0, 1, 1], [], []>} : vector<8x64xbf16>, vector<64x32xbf16>, vector<8x32xf32> -> vector<8x32xf32>
      %38 = vector.extract_strided_slice %34 {offsets = [0, 0], sizes = [1, 32], strides = [1, 1]} : vector<3x32xf32> to vector<1x32xf32>
      %39 = vector.broadcast %38 : vector<1x32xf32> to vector<8x32xf32>
      %40 = arith.addf %37, %39 : vector<8x32xf32>
      %cst_34 = arith.constant dense<0.000000e+00> : vector<8xf32>
      %41 = vector.multi_reduction <add>, %40, %cst_34 [1] : vector<8x32xf32> to vector<8xf32>
      %42 = vector.shape_cast %41 : vector<8xf32> to vector<8x1xf32>
      %cst_35 = arith.constant 3.200000e+01 : f32
      %43 = vector.broadcast %cst_35 : f32 to vector<8x1xf32>
      %44 = arith.divf %42, %43 : vector<8x1xf32>
      %45 = vector.broadcast %44 : vector<8x1xf32> to vector<8x32xf32>
      %46 = arith.subf %40, %45 : vector<8x32xf32>
      %47 = arith.mulf %46, %46 : vector<8x32xf32>
      %cst_36 = arith.constant dense<0.000000e+00> : vector<8xf32>
      %48 = vector.multi_reduction <add>, %47, %cst_36 [1] : vector<8x32xf32> to vector<8xf32>
      %49 = vector.shape_cast %48 : vector<8xf32> to vector<8x1xf32>
      %cst_37 = arith.constant 3.200000e+01 : f32
      %50 = vector.broadcast %cst_37 : f32 to vector<8x1xf32>
      %51 = arith.divf %49, %50 : vector<8x1xf32>
      %52 = vector.broadcast %44 : vector<8x1xf32> to vector<8x32xf32>
      %53 = arith.subf %40, %52 : vector<8x32xf32>
      %cst_38 = arith.constant 9.99999974E-6 : f32
      %54 = vector.broadcast %cst_38 : f32 to vector<8x1xf32>
      %55 = arith.addf %51, %54 : vector<8x1xf32>
      %56 = math.rsqrt %55 : vector<8x1xf32>
      %57 = vector.broadcast %56 : vector<8x1xf32> to vector<8x32xf32>
      %58 = arith.mulf %53, %57 : vector<8x32xf32>
      %59 = vector.extract_strided_slice %34 {offsets = [1, 0], sizes = [1, 32], strides = [1, 1]} : vector<3x32xf32> to vector<1x32xf32>
      %60 = vector.broadcast %59 : vector<1x32xf32> to vector<8x32xf32>
      %61 = arith.mulf %58, %60 : vector<8x32xf32>
      %62 = vector.extract_strided_slice %34 {offsets = [2, 0], sizes = [1, 32], strides = [1, 1]} : vector<3x32xf32> to vector<1x32xf32>
      %63 = vector.broadcast %62 : vector<1x32xf32> to vector<8x32xf32>
      %64 = arith.addf %61, %63 : vector<8x32xf32>
      %65 = arith.negf %64 : vector<8x32xf32>
      %66 = math.exp %65 : vector<8x32xf32>
      %cst_39 = arith.constant 1.000000e+00 : f32
      %67 = vector.broadcast %cst_39 : f32 to vector<8x32xf32>
      %68 = arith.addf %67, %66 : vector<8x32xf32>
      %69 = arith.divf %67, %68 : vector<8x32xf32>
      %70 = arith.mulf %64, %69 : vector<8x32xf32>
      %71 = arith.truncf %70 : vector<8x32xf32> to vector<8x32xbf16>
      %c0_40 = arith.constant 0 : index
      %c0_41 = arith.constant 0 : index
      %72 = vector.load %arg6[%c0_40, %c0_41] : memref<32x32xbf16, #tpu.memory_space<vmem>>, vector<32x32xbf16>
      %cst_42 = arith.constant dense<0.000000e+00> : vector<8x32xf32>
      %73 = tpu.matmul %71, %72, %cst_42 {dimension_numbers = #tpu.dot_dimension_numbers<[1], [0], [0], [1], [0, 0, 1, 1], [], []>} : vector<8x32xbf16>, vector<32x32xbf16>, vector<8x32xf32> -> vector<8x32xf32>
      %74 = vector.extract_strided_slice %35 {offsets = [0, 0], sizes = [1, 32], strides = [1, 1]} : vector<2x32xf32> to vector<1x32xf32>
      %75 = vector.broadcast %74 : vector<1x32xf32> to vector<8x32xf32>
      %76 = arith.addf %73, %75 : vector<8x32xf32>
      %77 = arith.truncf %76 : vector<8x32xf32> to vector<8x32xbf16>
      %c0_43 = arith.constant 0 : index
      %c0_44 = arith.constant 0 : index
      %78 = vector.load %arg8[%c0_43, %c0_44] : memref<32x32xbf16, #tpu.memory_space<vmem>>, vector<32x32xbf16>
      %cst_45 = arith.constant dense<0.000000e+00> : vector<8x32xf32>
      %79 = tpu.matmul %77, %78, %cst_45 {dimension_numbers = #tpu.dot_dimension_numbers<[1], [0], [0], [1], [0, 0, 1, 1], [], []>} : vector<8x32xbf16>, vector<32x32xbf16>, vector<8x32xf32> -> vector<8x32xf32>
      %80 = vector.extract_strided_slice %35 {offsets = [1, 0], sizes = [1, 32], strides = [1, 1]} : vector<2x32xf32> to vector<1x32xf32>
      %81 = vector.broadcast %80 : vector<1x32xf32> to vector<8x32xf32>
      %82 = arith.addf %79, %81 : vector<8x32xf32>
      %83 = arith.mulf %82, %82 : vector<8x32xf32>
      %cst_46 = arith.constant dense<0.000000e+00> : vector<8xf32>
      %84 = vector.multi_reduction <add>, %83, %cst_46 [1] : vector<8x32xf32> to vector<8xf32>
      %85 = vector.shape_cast %84 : vector<8xf32> to vector<8x1xf32>
      %cst_47 = arith.constant 1.000000e-24 : f32
      %86 = vector.broadcast %cst_47 : f32 to vector<8x1xf32>
      %87 = arith.maximumf %85, %86 : vector<8x1xf32>
      %88 = math.rsqrt %87 : vector<8x1xf32>
      %89 = vector.broadcast %88 : vector<8x1xf32> to vector<8x32xf32>
      %90 = arith.mulf %82, %89 : vector<8x32xf32>
      %c0_48 = arith.constant 0 : index
      %c0_49 = arith.constant 0 : index
      %91 = vector.load %arg10[%c0_48, %c0_49] : memref<3x32xf32, #tpu.memory_space<vmem>>, vector<3x32xf32>
      %c0_50 = arith.constant 0 : index
      %c0_51 = arith.constant 0 : index
      %92 = vector.load %arg12[%c0_50, %c0_51] : memref<2x32xf32, #tpu.memory_space<vmem>>, vector<2x32xf32>
      %c0_52 = arith.constant 0 : index
      %c0_53 = arith.constant 0 : index
      %93 = vector.load %arg9[%c0_52, %c0_53] : memref<48x32xbf16, #tpu.memory_space<vmem>>, vector<48x32xbf16>
      %cst_54 = arith.constant dense<0.000000e+00> : vector<8x32xf32>
      %94 = tpu.matmul %33, %93, %cst_54 {dimension_numbers = #tpu.dot_dimension_numbers<[1], [0], [0], [1], [0, 0, 1, 1], [], []>} : vector<8x48xbf16>, vector<48x32xbf16>, vector<8x32xf32> -> vector<8x32xf32>
      %95 = vector.extract_strided_slice %91 {offsets = [0, 0], sizes = [1, 32], strides = [1, 1]} : vector<3x32xf32> to vector<1x32xf32>
      %96 = vector.broadcast %95 : vector<1x32xf32> to vector<8x32xf32>
      %97 = arith.addf %94, %96 : vector<8x32xf32>
      %cst_55 = arith.constant dense<0.000000e+00> : vector<8xf32>
      %98 = vector.multi_reduction <add>, %97, %cst_55 [1] : vector<8x32xf32> to vector<8xf32>
      %99 = vector.shape_cast %98 : vector<8xf32> to vector<8x1xf32>
      %cst_56 = arith.constant 3.200000e+01 : f32
      %100 = vector.broadcast %cst_56 : f32 to vector<8x1xf32>
      %101 = arith.divf %99, %100 : vector<8x1xf32>
      %102 = vector.broadcast %101 : vector<8x1xf32> to vector<8x32xf32>
      %103 = arith.subf %97, %102 : vector<8x32xf32>
      %104 = arith.mulf %103, %103 : vector<8x32xf32>
      %cst_57 = arith.constant dense<0.000000e+00> : vector<8xf32>
      %105 = vector.multi_reduction <add>, %104, %cst_57 [1] : vector<8x32xf32> to vector<8xf32>
      %106 = vector.shape_cast %105 : vector<8xf32> to vector<8x1xf32>
      %cst_58 = arith.constant 3.200000e+01 : f32
      %107 = vector.broadcast %cst_58 : f32 to vector<8x1xf32>
      %108 = arith.divf %106, %107 : vector<8x1xf32>
      %109 = vector.broadcast %101 : vector<8x1xf32> to vector<8x32xf32>
      %110 = arith.subf %97, %109 : vector<8x32xf32>
      %cst_59 = arith.constant 9.99999974E-6 : f32
      %111 = vector.broadcast %cst_59 : f32 to vector<8x1xf32>
      %112 = arith.addf %108, %111 : vector<8x1xf32>
      %113 = math.rsqrt %112 : vector<8x1xf32>
      %114 = vector.broadcast %113 : vector<8x1xf32> to vector<8x32xf32>
      %115 = arith.mulf %110, %114 : vector<8x32xf32>
      %116 = vector.extract_strided_slice %91 {offsets = [1, 0], sizes = [1, 32], strides = [1, 1]} : vector<3x32xf32> to vector<1x32xf32>
      %117 = vector.broadcast %116 : vector<1x32xf32> to vector<8x32xf32>
      %118 = arith.mulf %115, %117 : vector<8x32xf32>
      %119 = vector.extract_strided_slice %91 {offsets = [2, 0], sizes = [1, 32], strides = [1, 1]} : vector<3x32xf32> to vector<1x32xf32>
      %120 = vector.broadcast %119 : vector<1x32xf32> to vector<8x32xf32>
      %121 = arith.addf %118, %120 : vector<8x32xf32>
      %122 = arith.negf %121 : vector<8x32xf32>
      %123 = math.exp %122 : vector<8x32xf32>
      %cst_60 = arith.constant 1.000000e+00 : f32
      %124 = vector.broadcast %cst_60 : f32 to vector<8x32xf32>
      %125 = arith.addf %124, %123 : vector<8x32xf32>
      %126 = arith.divf %124, %125 : vector<8x32xf32>
      %127 = arith.mulf %121, %126 : vector<8x32xf32>
      %128 = arith.truncf %127 : vector<8x32xf32> to vector<8x32xbf16>
      %c0_61 = arith.constant 0 : index
      %c0_62 = arith.constant 0 : index
      %129 = vector.load %arg11[%c0_61, %c0_62] : memref<32x32xbf16, #tpu.memory_space<vmem>>, vector<32x32xbf16>
      %cst_63 = arith.constant dense<0.000000e+00> : vector<8x32xf32>
      %130 = tpu.matmul %128, %129, %cst_63 {dimension_numbers = #tpu.dot_dimension_numbers<[1], [0], [0], [1], [0, 0, 1, 1], [], []>} : vector<8x32xbf16>, vector<32x32xbf16>, vector<8x32xf32> -> vector<8x32xf32>
      %131 = vector.extract_strided_slice %92 {offsets = [0, 0], sizes = [1, 32], strides = [1, 1]} : vector<2x32xf32> to vector<1x32xf32>
      %132 = vector.broadcast %131 : vector<1x32xf32> to vector<8x32xf32>
      %133 = arith.addf %130, %132 : vector<8x32xf32>
      %134 = arith.truncf %133 : vector<8x32xf32> to vector<8x32xbf16>
      %c0_64 = arith.constant 0 : index
      %c0_65 = arith.constant 0 : index
      %135 = vector.load %arg13[%c0_64, %c0_65] : memref<32x32xbf16, #tpu.memory_space<vmem>>, vector<32x32xbf16>
      %cst_66 = arith.constant dense<0.000000e+00> : vector<8x32xf32>
      %136 = tpu.matmul %134, %135, %cst_66 {dimension_numbers = #tpu.dot_dimension_numbers<[1], [0], [0], [1], [0, 0, 1, 1], [], []>} : vector<8x32xbf16>, vector<32x32xbf16>, vector<8x32xf32> -> vector<8x32xf32>
      %137 = vector.extract_strided_slice %92 {offsets = [1, 0], sizes = [1, 32], strides = [1, 1]} : vector<2x32xf32> to vector<1x32xf32>
      %138 = vector.broadcast %137 : vector<1x32xf32> to vector<8x32xf32>
      %139 = arith.addf %136, %138 : vector<8x32xf32>
      %140 = arith.mulf %139, %139 : vector<8x32xf32>
      %cst_67 = arith.constant dense<0.000000e+00> : vector<8xf32>
      %141 = vector.multi_reduction <add>, %140, %cst_67 [1] : vector<8x32xf32> to vector<8xf32>
      %142 = vector.shape_cast %141 : vector<8xf32> to vector<8x1xf32>
      %cst_68 = arith.constant 1.000000e-24 : f32
      %143 = vector.broadcast %cst_68 : f32 to vector<8x1xf32>
      %144 = arith.maximumf %142, %143 : vector<8x1xf32>
      %145 = math.rsqrt %144 : vector<8x1xf32>
      %146 = vector.broadcast %145 : vector<8x1xf32> to vector<8x32xf32>
      %147 = arith.mulf %139, %146 : vector<8x32xf32>
      %c0_69 = arith.constant 0 : index
      %c0_70 = arith.constant 0 : index
      %148 = vector.load %arg15[%c0_69, %c0_70] : memref<3x32xf32, #tpu.memory_space<vmem>>, vector<3x32xf32>
      %c0_71 = arith.constant 0 : index
      %c0_72 = arith.constant 0 : index
      %149 = vector.load %arg17[%c0_71, %c0_72] : memref<2x32xf32, #tpu.memory_space<vmem>>, vector<2x32xf32>
      %c0_73 = arith.constant 0 : index
      %c0_74 = arith.constant 0 : index
      %150 = vector.load %arg14[%c0_73, %c0_74] : memref<64x32xbf16, #tpu.memory_space<vmem>>, vector<64x32xbf16>
      %cst_75 = arith.constant dense<0.000000e+00> : vector<8x32xf32>
      %151 = tpu.matmul %32, %150, %cst_75 {dimension_numbers = #tpu.dot_dimension_numbers<[1], [0], [0], [1], [0, 0, 1, 1], [], []>} : vector<8x64xbf16>, vector<64x32xbf16>, vector<8x32xf32> -> vector<8x32xf32>
      %152 = vector.extract_strided_slice %148 {offsets = [0, 0], sizes = [1, 32], strides = [1, 1]} : vector<3x32xf32> to vector<1x32xf32>
      %153 = vector.broadcast %152 : vector<1x32xf32> to vector<8x32xf32>
      %154 = arith.addf %151, %153 : vector<8x32xf32>
      %cst_76 = arith.constant dense<0.000000e+00> : vector<8xf32>
      %155 = vector.multi_reduction <add>, %154, %cst_76 [1] : vector<8x32xf32> to vector<8xf32>
      %156 = vector.shape_cast %155 : vector<8xf32> to vector<8x1xf32>
      %cst_77 = arith.constant 3.200000e+01 : f32
      %157 = vector.broadcast %cst_77 : f32 to vector<8x1xf32>
      %158 = arith.divf %156, %157 : vector<8x1xf32>
      %159 = vector.broadcast %158 : vector<8x1xf32> to vector<8x32xf32>
      %160 = arith.subf %154, %159 : vector<8x32xf32>
      %161 = arith.mulf %160, %160 : vector<8x32xf32>
      %cst_78 = arith.constant dense<0.000000e+00> : vector<8xf32>
      %162 = vector.multi_reduction <add>, %161, %cst_78 [1] : vector<8x32xf32> to vector<8xf32>
      %163 = vector.shape_cast %162 : vector<8xf32> to vector<8x1xf32>
      %cst_79 = arith.constant 3.200000e+01 : f32
      %164 = vector.broadcast %cst_79 : f32 to vector<8x1xf32>
      %165 = arith.divf %163, %164 : vector<8x1xf32>
      %166 = vector.broadcast %158 : vector<8x1xf32> to vector<8x32xf32>
      %167 = arith.subf %154, %166 : vector<8x32xf32>
      %cst_80 = arith.constant 9.99999974E-6 : f32
      %168 = vector.broadcast %cst_80 : f32 to vector<8x1xf32>
      %169 = arith.addf %165, %168 : vector<8x1xf32>
      %170 = math.rsqrt %169 : vector<8x1xf32>
      %171 = vector.broadcast %170 : vector<8x1xf32> to vector<8x32xf32>
      %172 = arith.mulf %167, %171 : vector<8x32xf32>
      %173 = vector.extract_strided_slice %148 {offsets = [1, 0], sizes = [1, 32], strides = [1, 1]} : vector<3x32xf32> to vector<1x32xf32>
      %174 = vector.broadcast %173 : vector<1x32xf32> to vector<8x32xf32>
      %175 = arith.mulf %172, %174 : vector<8x32xf32>
      %176 = vector.extract_strided_slice %148 {offsets = [2, 0], sizes = [1, 32], strides = [1, 1]} : vector<3x32xf32> to vector<1x32xf32>
      %177 = vector.broadcast %176 : vector<1x32xf32> to vector<8x32xf32>
      %178 = arith.addf %175, %177 : vector<8x32xf32>
      %179 = arith.negf %178 : vector<8x32xf32>
      %180 = math.exp %179 : vector<8x32xf32>
      %cst_81 = arith.constant 1.000000e+00 : f32
      %181 = vector.broadcast %cst_81 : f32 to vector<8x32xf32>
      %182 = arith.addf %181, %180 : vector<8x32xf32>
      %183 = arith.divf %181, %182 : vector<8x32xf32>
      %184 = arith.mulf %178, %183 : vector<8x32xf32>
      %185 = arith.truncf %184 : vector<8x32xf32> to vector<8x32xbf16>
      %c0_82 = arith.constant 0 : index
      %c0_83 = arith.constant 0 : index
      %186 = vector.load %arg16[%c0_82, %c0_83] : memref<32x32xbf16, #tpu.memory_space<vmem>>, vector<32x32xbf16>
      %cst_84 = arith.constant dense<0.000000e+00> : vector<8x32xf32>
      %187 = tpu.matmul %185, %186, %cst_84 {dimension_numbers = #tpu.dot_dimension_numbers<[1], [0], [0], [1], [0, 0, 1, 1], [], []>} : vector<8x32xbf16>, vector<32x32xbf16>, vector<8x32xf32> -> vector<8x32xf32>
      %188 = vector.extract_strided_slice %149 {offsets = [0, 0], sizes = [1, 32], strides = [1, 1]} : vector<2x32xf32> to vector<1x32xf32>
      %189 = vector.broadcast %188 : vector<1x32xf32> to vector<8x32xf32>
      %190 = arith.addf %187, %189 : vector<8x32xf32>
      %191 = arith.truncf %190 : vector<8x32xf32> to vector<8x32xbf16>
      %c0_85 = arith.constant 0 : index
      %c0_86 = arith.constant 0 : index
      %192 = vector.load %arg18[%c0_85, %c0_86] : memref<32x32xbf16, #tpu.memory_space<vmem>>, vector<32x32xbf16>
      %cst_87 = arith.constant dense<0.000000e+00> : vector<8x32xf32>
      %193 = tpu.matmul %191, %192, %cst_87 {dimension_numbers = #tpu.dot_dimension_numbers<[1], [0], [0], [1], [0, 0, 1, 1], [], []>} : vector<8x32xbf16>, vector<32x32xbf16>, vector<8x32xf32> -> vector<8x32xf32>
      %194 = vector.extract_strided_slice %149 {offsets = [1, 0], sizes = [1, 32], strides = [1, 1]} : vector<2x32xf32> to vector<1x32xf32>
      %195 = vector.broadcast %194 : vector<1x32xf32> to vector<8x32xf32>
      %196 = arith.addf %193, %195 : vector<8x32xf32>
      %197 = arith.mulf %196, %196 : vector<8x32xf32>
      %cst_88 = arith.constant dense<0.000000e+00> : vector<8xf32>
      %198 = vector.multi_reduction <add>, %197, %cst_88 [1] : vector<8x32xf32> to vector<8xf32>
      %199 = vector.shape_cast %198 : vector<8xf32> to vector<8x1xf32>
      %cst_89 = arith.constant 1.000000e-24 : f32
      %200 = vector.broadcast %cst_89 : f32 to vector<8x1xf32>
      %201 = arith.maximumf %199, %200 : vector<8x1xf32>
      %202 = math.rsqrt %201 : vector<8x1xf32>
      %203 = vector.broadcast %202 : vector<8x1xf32> to vector<8x32xf32>
      %204 = arith.mulf %196, %203 : vector<8x32xf32>
      %c0_90 = arith.constant 0 : index
      %c0_91 = arith.constant 0 : index
      %205 = vector.load %arg20[%c0_90, %c0_91] : memref<3x32xf32, #tpu.memory_space<vmem>>, vector<3x32xf32>
      %c0_92 = arith.constant 0 : index
      %c0_93 = arith.constant 0 : index
      %206 = vector.load %arg22[%c0_92, %c0_93] : memref<2x32xf32, #tpu.memory_space<vmem>>, vector<2x32xf32>
      %c0_94 = arith.constant 0 : index
      %c0_95 = arith.constant 0 : index
      %207 = vector.load %arg19[%c0_94, %c0_95] : memref<48x32xbf16, #tpu.memory_space<vmem>>, vector<48x32xbf16>
      %cst_96 = arith.constant dense<0.000000e+00> : vector<8x32xf32>
      %208 = tpu.matmul %33, %207, %cst_96 {dimension_numbers = #tpu.dot_dimension_numbers<[1], [0], [0], [1], [0, 0, 1, 1], [], []>} : vector<8x48xbf16>, vector<48x32xbf16>, vector<8x32xf32> -> vector<8x32xf32>
      %209 = vector.extract_strided_slice %205 {offsets = [0, 0], sizes = [1, 32], strides = [1, 1]} : vector<3x32xf32> to vector<1x32xf32>
      %210 = vector.broadcast %209 : vector<1x32xf32> to vector<8x32xf32>
      %211 = arith.addf %208, %210 : vector<8x32xf32>
      %cst_97 = arith.constant dense<0.000000e+00> : vector<8xf32>
      %212 = vector.multi_reduction <add>, %211, %cst_97 [1] : vector<8x32xf32> to vector<8xf32>
      %213 = vector.shape_cast %212 : vector<8xf32> to vector<8x1xf32>
      %cst_98 = arith.constant 3.200000e+01 : f32
      %214 = vector.broadcast %cst_98 : f32 to vector<8x1xf32>
      %215 = arith.divf %213, %214 : vector<8x1xf32>
      %216 = vector.broadcast %215 : vector<8x1xf32> to vector<8x32xf32>
      %217 = arith.subf %211, %216 : vector<8x32xf32>
      %218 = arith.mulf %217, %217 : vector<8x32xf32>
      %cst_99 = arith.constant dense<0.000000e+00> : vector<8xf32>
      %219 = vector.multi_reduction <add>, %218, %cst_99 [1] : vector<8x32xf32> to vector<8xf32>
      %220 = vector.shape_cast %219 : vector<8xf32> to vector<8x1xf32>
      %cst_100 = arith.constant 3.200000e+01 : f32
      %221 = vector.broadcast %cst_100 : f32 to vector<8x1xf32>
      %222 = arith.divf %220, %221 : vector<8x1xf32>
      %223 = vector.broadcast %215 : vector<8x1xf32> to vector<8x32xf32>
      %224 = arith.subf %211, %223 : vector<8x32xf32>
      %cst_101 = arith.constant 9.99999974E-6 : f32
      %225 = vector.broadcast %cst_101 : f32 to vector<8x1xf32>
      %226 = arith.addf %222, %225 : vector<8x1xf32>
      %227 = math.rsqrt %226 : vector<8x1xf32>
      %228 = vector.broadcast %227 : vector<8x1xf32> to vector<8x32xf32>
      %229 = arith.mulf %224, %228 : vector<8x32xf32>
      %230 = vector.extract_strided_slice %205 {offsets = [1, 0], sizes = [1, 32], strides = [1, 1]} : vector<3x32xf32> to vector<1x32xf32>
      %231 = vector.broadcast %230 : vector<1x32xf32> to vector<8x32xf32>
      %232 = arith.mulf %229, %231 : vector<8x32xf32>
      %233 = vector.extract_strided_slice %205 {offsets = [2, 0], sizes = [1, 32], strides = [1, 1]} : vector<3x32xf32> to vector<1x32xf32>
      %234 = vector.broadcast %233 : vector<1x32xf32> to vector<8x32xf32>
      %235 = arith.addf %232, %234 : vector<8x32xf32>
      %236 = arith.negf %235 : vector<8x32xf32>
      %237 = math.exp %236 : vector<8x32xf32>
      %cst_102 = arith.constant 1.000000e+00 : f32
      %238 = vector.broadcast %cst_102 : f32 to vector<8x32xf32>
      %239 = arith.addf %238, %237 : vector<8x32xf32>
      %240 = arith.divf %238, %239 : vector<8x32xf32>
      %241 = arith.mulf %235, %240 : vector<8x32xf32>
      %242 = arith.truncf %241 : vector<8x32xf32> to vector<8x32xbf16>
      %c0_103 = arith.constant 0 : index
      %c0_104 = arith.constant 0 : index
      %243 = vector.load %arg21[%c0_103, %c0_104] : memref<32x32xbf16, #tpu.memory_space<vmem>>, vector<32x32xbf16>
      %cst_105 = arith.constant dense<0.000000e+00> : vector<8x32xf32>
      %244 = tpu.matmul %242, %243, %cst_105 {dimension_numbers = #tpu.dot_dimension_numbers<[1], [0], [0], [1], [0, 0, 1, 1], [], []>} : vector<8x32xbf16>, vector<32x32xbf16>, vector<8x32xf32> -> vector<8x32xf32>
      %245 = vector.extract_strided_slice %206 {offsets = [0, 0], sizes = [1, 32], strides = [1, 1]} : vector<2x32xf32> to vector<1x32xf32>
      %246 = vector.broadcast %245 : vector<1x32xf32> to vector<8x32xf32>
      %247 = arith.addf %244, %246 : vector<8x32xf32>
      %248 = arith.truncf %247 : vector<8x32xf32> to vector<8x32xbf16>
      %c0_106 = arith.constant 0 : index
      %c0_107 = arith.constant 0 : index
      %249 = vector.load %arg23[%c0_106, %c0_107] : memref<32x32xbf16, #tpu.memory_space<vmem>>, vector<32x32xbf16>
      %cst_108 = arith.constant dense<0.000000e+00> : vector<8x32xf32>
      %250 = tpu.matmul %248, %249, %cst_108 {dimension_numbers = #tpu.dot_dimension_numbers<[1], [0], [0], [1], [0, 0, 1, 1], [], []>} : vector<8x32xbf16>, vector<32x32xbf16>, vector<8x32xf32> -> vector<8x32xf32>
      %251 = vector.extract_strided_slice %206 {offsets = [1, 0], sizes = [1, 32], strides = [1, 1]} : vector<2x32xf32> to vector<1x32xf32>
      %252 = vector.broadcast %251 : vector<1x32xf32> to vector<8x32xf32>
      %253 = arith.addf %250, %252 : vector<8x32xf32>
      %254 = arith.mulf %253, %253 : vector<8x32xf32>
      %cst_109 = arith.constant dense<0.000000e+00> : vector<8xf32>
      %255 = vector.multi_reduction <add>, %254, %cst_109 [1] : vector<8x32xf32> to vector<8xf32>
      %256 = vector.shape_cast %255 : vector<8xf32> to vector<8x1xf32>
      %cst_110 = arith.constant 1.000000e-24 : f32
      %257 = vector.broadcast %cst_110 : f32 to vector<8x1xf32>
      %258 = arith.maximumf %256, %257 : vector<8x1xf32>
      %259 = math.rsqrt %258 : vector<8x1xf32>
      %260 = vector.broadcast %259 : vector<8x1xf32> to vector<8x32xf32>
      %261 = arith.mulf %253, %260 : vector<8x32xf32>
      %c0_111 = arith.constant 0 : index
      %c0_112 = arith.constant 0 : index
      %262 = vector.load %arg26[%c0_111, %c0_112] : memref<8x32xf32, #tpu.memory_space<vmem>>, vector<8x32xf32>
      tpu.vector_store %arg26[%c0_111, %c0_112], %90 {strides = array<i32>} : memref<8x32xf32, #tpu.memory_space<vmem>>, vector<8x32xf32>,
      %c0_113 = arith.constant 0 : index
      %c0_114 = arith.constant 0 : index
      %263 = vector.load %arg27[%c0_113, %c0_114] : memref<8x32xf32, #tpu.memory_space<vmem>>, vector<8x32xf32>
      tpu.vector_store %arg27[%c0_113, %c0_114], %147 {strides = array<i32>} : memref<8x32xf32, #tpu.memory_space<vmem>>, vector<8x32xf32>,
      %c0_115 = arith.constant 0 : index
      %c0_116 = arith.constant 0 : index
      %264 = vector.load %arg28[%c0_115, %c0_116] : memref<8x32xf32, #tpu.memory_space<vmem>>, vector<8x32xf32>
      tpu.vector_store %arg28[%c0_115, %c0_116], %204 {strides = array<i32>} : memref<8x32xf32, #tpu.memory_space<vmem>>, vector<8x32xf32>,
      %c0_117 = arith.constant 0 : index
      %c0_118 = arith.constant 0 : index
      %265 = vector.load %arg29[%c0_117, %c0_118] : memref<8x32xf32, #tpu.memory_space<vmem>>, vector<8x32xf32>
      tpu.vector_store %arg29[%c0_117, %c0_118], %261 {strides = array<i32>} : memref<8x32xf32, #tpu.memory_space<vmem>>, vector<8x32xf32>,
      %cst_119 = arith.constant 14.2857141 : f32
      %266 = vector.broadcast %cst_119 : f32 to vector<8x32xf32>
      %267 = arith.mulf %90, %266 : vector<8x32xf32>
      %268 = arith.truncf %267 : vector<8x32xf32> to vector<8x32xbf16>
      %c0_120 = arith.constant 0 : index
      %c0_121 = arith.constant 0 : index
      %269 = vector.load %arg31[%c0_120, %c0_121] : memref<8x32xbf16, #tpu.memory_space<vmem>>, vector<8x32xbf16>
      tpu.vector_store %arg31[%c0_120, %c0_121], %268 {strides = array<i32>} : memref<8x32xbf16, #tpu.memory_space<vmem>>, vector<8x32xbf16>,
      %cst_122 = arith.constant 14.2857141 : f32
      %270 = vector.broadcast %cst_122 : f32 to vector<8x32xf32>
      %271 = arith.mulf %147, %270 : vector<8x32xf32>
      %272 = arith.truncf %271 : vector<8x32xf32> to vector<8x32xbf16>
      %c0_123 = arith.constant 0 : index
      %c0_124 = arith.constant 0 : index
      %273 = vector.load %arg32[%c0_123, %c0_124] : memref<8x32xbf16, #tpu.memory_space<vmem>>, vector<8x32xbf16>
      tpu.vector_store %arg32[%c0_123, %c0_124], %272 {strides = array<i32>} : memref<8x32xbf16, #tpu.memory_space<vmem>>, vector<8x32xbf16>,
      %274 = arith.mulf %90, %261 : vector<8x32xf32>
      %cst_125 = arith.constant dense<0.000000e+00> : vector<8xf32>
      %275 = vector.multi_reduction <add>, %274, %cst_125 [1] : vector<8x32xf32> to vector<8xf32>
      %276 = vector.shape_cast %275 : vector<8xf32> to vector<8x1xf32>
      %cst_126 = arith.constant 14.2857141 : f32
      %277 = vector.broadcast %cst_126 : f32 to vector<8x1xf32>
      %278 = arith.mulf %276, %277 : vector<8x1xf32>
      %279 = arith.mulf %147, %204 : vector<8x32xf32>
      %cst_127 = arith.constant dense<0.000000e+00> : vector<8xf32>
      %280 = vector.multi_reduction <add>, %279, %cst_127 [1] : vector<8x32xf32> to vector<8xf32>
      %281 = vector.shape_cast %280 : vector<8xf32> to vector<8x1xf32>
      %cst_128 = arith.constant 14.2857141 : f32
      %282 = vector.broadcast %cst_128 : f32 to vector<8x1xf32>
      %283 = arith.mulf %281, %282 : vector<8x1xf32>
      %c0_129 = arith.constant 0 : index
      %c0_130 = arith.constant 0 : index
      %284 = vector.load %arg33[%c0_129, %c0_130] : memref<8x1xf32, #tpu.memory_space<vmem>>, vector<8x1xf32>
      tpu.vector_store %arg33[%c0_129, %c0_130], %278 {strides = array<i32>} : memref<8x1xf32, #tpu.memory_space<vmem>>, vector<8x1xf32>,
      %c0_131 = arith.constant 0 : index
      %c0_132 = arith.constant 0 : index
      %285 = vector.load %arg35[%c0_131, %c0_132] : memref<8x1xf32, #tpu.memory_space<vmem>>, vector<8x1xf32>
      tpu.vector_store %arg35[%c0_131, %c0_132], %283 {strides = array<i32>} : memref<8x1xf32, #tpu.memory_space<vmem>>, vector<8x1xf32>,
      %cst_133 = arith.constant 14.2857141 : f32
      %286 = vector.broadcast %cst_133 : f32 to vector<8x1xf32>
      %287 = arith.subf %278, %286 : vector<8x1xf32>
      %288 = math.exp %287 : vector<8x1xf32>
      %c0_134 = arith.constant 0 : index
      %c0_135 = arith.constant 0 : index
      %289 = vector.load %arg34[%c0_134, %c0_135] : memref<8x1xf32, #tpu.memory_space<vmem>>, vector<8x1xf32>
      tpu.vector_store %arg34[%c0_134, %c0_135], %288 {strides = array<i32>} : memref<8x1xf32, #tpu.memory_space<vmem>>, vector<8x1xf32>,
      %cst_136 = arith.constant 14.2857141 : f32
      %290 = vector.broadcast %cst_136 : f32 to vector<8x1xf32>
      %291 = arith.subf %283, %290 : vector<8x1xf32>
      %292 = math.exp %291 : vector<8x1xf32>
      %c0_137 = arith.constant 0 : index
      %c0_138 = arith.constant 0 : index
      %293 = vector.load %arg36[%c0_137, %c0_138] : memref<8x1xf32, #tpu.memory_space<vmem>>, vector<8x1xf32>
      tpu.vector_store %arg36[%c0_137, %c0_138], %292 {strides = array<i32>} : memref<8x1xf32, #tpu.memory_space<vmem>>, vector<8x1xf32>,
    } else {
    }
    %c0 = arith.constant 0 : index
    %c0_1 = arith.constant 0 : index
    %3 = vector.load %arg31[%c0, %c0_1] : memref<8x32xbf16, #tpu.memory_space<vmem>>, vector<8x32xbf16>
    %c0_2 = arith.constant 0 : index
    %c0_3 = arith.constant 0 : index
    %4 = vector.load %arg24[%c0_2, %c0_3] : memref<32x128xbf16, #tpu.memory_space<vmem>>, vector<32x128xbf16>
    %cst = arith.constant dense<0.000000e+00> : vector<8x128xf32>
    %5 = tpu.matmul %3, %4, %cst {dimension_numbers = #tpu.dot_dimension_numbers<[1], [0], [0], [1], [0, 0, 1, 1], [], []>} : vector<8x32xbf16>, vector<32x128xbf16>, vector<8x128xf32> -> vector<8x128xf32>
    %cst_4 = arith.constant 14.2857141 : f32
    %6 = vector.broadcast %cst_4 : f32 to vector<8x128xf32>
    %7 = arith.subf %5, %6 : vector<8x128xf32>
    %8 = arith.truncf %7 : vector<8x128xf32> to vector<8x128xbf16>
    %9 = math.exp %8 : vector<8x128xbf16>
    %c0_5 = arith.constant 0 : index
    %c0_6 = arith.constant 0 : index
    %10 = vector.load %arg34[%c0_5, %c0_6] : memref<8x1xf32, #tpu.memory_space<vmem>>, vector<8x1xf32>
    %11 = arith.extf %9 : vector<8x128xbf16> to vector<8x128xf32>
    %cst_7 = arith.constant dense<0.000000e+00> : vector<8xf32>
    %12 = vector.multi_reduction <add>, %11, %cst_7 [1] : vector<8x128xf32> to vector<8xf32>
    %13 = vector.shape_cast %12 : vector<8xf32> to vector<8x1xf32>
    %14 = arith.addf %10, %13 : vector<8x1xf32>
    %c0_8 = arith.constant 0 : index
    %c0_9 = arith.constant 0 : index
    %15 = vector.load %arg34[%c0_8, %c0_9] : memref<8x1xf32, #tpu.memory_space<vmem>>, vector<8x1xf32>
    tpu.vector_store %arg34[%c0_8, %c0_9], %14 {strides = array<i32>} : memref<8x1xf32, #tpu.memory_space<vmem>>, vector<8x1xf32>,
    %c0_10 = arith.constant 0 : index
    %c0_11 = arith.constant 0 : index
    %16 = vector.load %arg32[%c0_10, %c0_11] : memref<8x32xbf16, #tpu.memory_space<vmem>>, vector<8x32xbf16>
    %c0_12 = arith.constant 0 : index
    %c0_13 = arith.constant 0 : index
    %17 = vector.load %arg25[%c0_12, %c0_13] : memref<32x128xbf16, #tpu.memory_space<vmem>>, vector<32x128xbf16>
    %cst_14 = arith.constant dense<0.000000e+00> : vector<8x128xf32>
    %18 = tpu.matmul %16, %17, %cst_14 {dimension_numbers = #tpu.dot_dimension_numbers<[1], [0], [0], [1], [0, 0, 1, 1], [], []>} : vector<8x32xbf16>, vector<32x128xbf16>, vector<8x128xf32> -> vector<8x128xf32>
    %cst_15 = arith.constant 14.2857141 : f32
    %19 = vector.broadcast %cst_15 : f32 to vector<8x128xf32>
    %20 = arith.subf %18, %19 : vector<8x128xf32>
    %21 = arith.truncf %20 : vector<8x128xf32> to vector<8x128xbf16>
    %22 = math.exp %21 : vector<8x128xbf16>
    %c0_16 = arith.constant 0 : index
    %c0_17 = arith.constant 0 : index
    %23 = vector.load %arg36[%c0_16, %c0_17] : memref<8x1xf32, #tpu.memory_space<vmem>>, vector<8x1xf32>
    %24 = arith.extf %22 : vector<8x128xbf16> to vector<8x128xf32>
    %cst_18 = arith.constant dense<0.000000e+00> : vector<8xf32>
    %25 = vector.multi_reduction <add>, %24, %cst_18 [1] : vector<8x128xf32> to vector<8xf32>
    %26 = vector.shape_cast %25 : vector<8xf32> to vector<8x1xf32>
    %27 = arith.addf %23, %26 : vector<8x1xf32>
    %c0_19 = arith.constant 0 : index
    %c0_20 = arith.constant 0 : index
    %28 = vector.load %arg36[%c0_19, %c0_20] : memref<8x1xf32, #tpu.memory_space<vmem>>, vector<8x1xf32>
    tpu.vector_store %arg36[%c0_19, %c0_20], %27 {strides = array<i32>} : memref<8x1xf32, #tpu.memory_space<vmem>>, vector<8x1xf32>,
    %c0_i32_21 = arith.constant 0 : i32
    %29 = arith.cmpi eq, %arg1, %c0_i32_21 : i32
    %30 = arith.extui %29 : i1 to i32
    %c0_i32_22 = arith.constant 0 : i32
    %31 = arith.cmpi ne, %30, %c0_i32_22 : i32
    scf.if %31 {
      %c0_23 = arith.constant 0 : index
      %c0_24 = arith.constant 0 : index
      %32 = vector.load %arg34[%c0_23, %c0_24] : memref<8x1xf32, #tpu.memory_space<vmem>>, vector<8x1xf32>
      %33 = math.log %32 : vector<8x1xf32>
      %cst_25 = arith.constant 14.2857141 : f32
      %34 = vector.broadcast %cst_25 : f32 to vector<8x1xf32>
      %35 = arith.addf %34, %33 : vector<8x1xf32>
      %c0_26 = arith.constant 0 : index
      %c0_27 = arith.constant 0 : index
      %36 = vector.load %arg33[%c0_26, %c0_27] : memref<8x1xf32, #tpu.memory_space<vmem>>, vector<8x1xf32>
      %37 = arith.subf %35, %36 : vector<8x1xf32>
      %c0_28 = arith.constant 0 : index
      %c0_29 = arith.constant 0 : index
      %38 = vector.load %arg30[%c0_28, %c0_29] : memref<8x2xf32, #tpu.memory_space<vmem>>, vector<8x1xf32>
      tpu.vector_store %arg30[%c0_28, %c0_29], %37 {strides = array<i32>} : memref<8x2xf32, #tpu.memory_space<vmem>>, vector<8x1xf32>,
      %c0_30 = arith.constant 0 : index
      %c0_31 = arith.constant 0 : index
      %39 = vector.load %arg36[%c0_30, %c0_31] : memref<8x1xf32, #tpu.memory_space<vmem>>, vector<8x1xf32>
      %40 = math.log %39 : vector<8x1xf32>
      %cst_32 = arith.constant 14.2857141 : f32
      %41 = vector.broadcast %cst_32 : f32 to vector<8x1xf32>
      %42 = arith.addf %41, %40 : vector<8x1xf32>
      %c0_33 = arith.constant 0 : index
      %c0_34 = arith.constant 0 : index
      %43 = vector.load %arg35[%c0_33, %c0_34] : memref<8x1xf32, #tpu.memory_space<vmem>>, vector<8x1xf32>
      %44 = arith.subf %42, %43 : vector<8x1xf32>
      %c0_35 = arith.constant 0 : index
      %c1 = arith.constant 1 : index
      %45 = vector.load %arg30[%c0_35, %c1] : memref<8x2xf32, #tpu.memory_space<vmem>>, vector<8x1xf32>
      tpu.vector_store %arg30[%c0_35, %c1], %44 {strides = array<i32>} : memref<8x2xf32, #tpu.memory_space<vmem>>, vector<8x1xf32>,
    } else {
    }
    return
  }
  func.func @transform_0(%arg0: i32, %arg1: i32) -> (i32, i32) {
    %c0_i32 = arith.constant 0 : i32
    %c0_i32_0 = arith.constant 0 : i32
    return %arg0, %c0_i32 : i32, i32
  }
  func.func @transform_1(%arg0: i32, %arg1: i32) -> (i32, i32) {
    %c0_i32 = arith.constant 0 : i32
    %c0_i32_0 = arith.constant 0 : i32
    return %arg0, %c0_i32 : i32, i32
  }
  func.func @transform_2(%arg0: i32, %arg1: i32) -> (i32, i32) {
    %c0_i32 = arith.constant 0 : i32
    %c0_i32_0 = arith.constant 0 : i32
    %c0_i32_1 = arith.constant 0 : i32
    return %c0_i32, %c0_i32_0 : i32, i32
  }
  func.func @transform_3(%arg0: i32, %arg1: i32) -> (i32, i32) {
    %c0_i32 = arith.constant 0 : i32
    %c0_i32_0 = arith.constant 0 : i32
    %c0_i32_1 = arith.constant 0 : i32
    return %c0_i32, %c0_i32_0 : i32, i32
  }
  func.func @transform_4(%arg0: i32, %arg1: i32) -> (i32, i32) {
    %c0_i32 = arith.constant 0 : i32
    %c0_i32_0 = arith.constant 0 : i32
    %c0_i32_1 = arith.constant 0 : i32
    return %c0_i32, %c0_i32_0 : i32, i32
  }
  func.func @transform_5(%arg0: i32, %arg1: i32) -> (i32, i32) {
    %c0_i32 = arith.constant 0 : i32
    %c0_i32_0 = arith.constant 0 : i32
    %c0_i32_1 = arith.constant 0 : i32
    return %c0_i32, %c0_i32_0 : i32, i32
  }
  func.func @transform_6(%arg0: i32, %arg1: i32) -> (i32, i32) {
    %c0_i32 = arith.constant 0 : i32
    %c0_i32_0 = arith.constant 0 : i32
    %c0_i32_1 = arith.constant 0 : i32
    return %c0_i32, %c0_i32_0 : i32, i32
  }
  func.func @transform_7(%arg0: i32, %arg1: i32) -> (i32, i32) {
    %c0_i32 = arith.constant 0 : i32
    %c0_i32_0 = arith.constant 0 : i32
    %c0_i32_1 = arith.constant 0 : i32
    return %c0_i32, %c0_i32_0 : i32, i32
  }
  func.func @transform_8(%arg0: i32, %arg1: i32) -> (i32, i32) {
    %c0_i32 = arith.constant 0 : i32
    %c0_i32_0 = arith.constant 0 : i32
    %c0_i32_1 = arith.constant 0 : i32
    return %c0_i32, %c0_i32_0 : i32, i32
  }
  func.func @transform_9(%arg0: i32, %arg1: i32) -> (i32, i32) {
    %c0_i32 = arith.constant 0 : i32
    %c0_i32_0 = arith.constant 0 : i32
    %c0_i32_1 = arith.constant 0 : i32
    return %c0_i32, %c0_i32_0 : i32, i32
  }
  func.func @transform_10(%arg0: i32, %arg1: i32) -> (i32, i32) {
    %c0_i32 = arith.constant 0 : i32
    %c0_i32_0 = arith.constant 0 : i32
    %c0_i32_1 = arith.constant 0 : i32
    return %c0_i32, %c0_i32_0 : i32, i32
  }
  func.func @transform_11(%arg0: i32, %arg1: i32) -> (i32, i32) {
    %c0_i32 = arith.constant 0 : i32
    %c0_i32_0 = arith.constant 0 : i32
    %c0_i32_1 = arith.constant 0 : i32
    return %c0_i32, %c0_i32_0 : i32, i32
  }
  func.func @transform_12(%arg0: i32, %arg1: i32) -> (i32, i32) {
    %c0_i32 = arith.constant 0 : i32
    %c0_i32_0 = arith.constant 0 : i32
    %c0_i32_1 = arith.constant 0 : i32
    return %c0_i32, %c0_i32_0 : i32, i32
  }
  func.func @transform_13(%arg0: i32, %arg1: i32) -> (i32, i32) {
    %c0_i32 = arith.constant 0 : i32
    %c0_i32_0 = arith.constant 0 : i32
    %c0_i32_1 = arith.constant 0 : i32
    return %c0_i32, %c0_i32_0 : i32, i32
  }
  func.func @transform_14(%arg0: i32, %arg1: i32) -> (i32, i32) {
    %c0_i32 = arith.constant 0 : i32
    %c0_i32_0 = arith.constant 0 : i32
    %c0_i32_1 = arith.constant 0 : i32
    return %c0_i32, %c0_i32_0 : i32, i32
  }
  func.func @transform_15(%arg0: i32, %arg1: i32) -> (i32, i32) {
    %c0_i32 = arith.constant 0 : i32
    %c0_i32_0 = arith.constant 0 : i32
    %c0_i32_1 = arith.constant 0 : i32
    return %c0_i32, %c0_i32_0 : i32, i32
  }
  func.func @transform_16(%arg0: i32, %arg1: i32) -> (i32, i32) {
    %c0_i32 = arith.constant 0 : i32
    %c0_i32_0 = arith.constant 0 : i32
    %c0_i32_1 = arith.constant 0 : i32
    return %c0_i32, %c0_i32_0 : i32, i32
  }
  func.func @transform_17(%arg0: i32, %arg1: i32) -> (i32, i32) {
    %c0_i32 = arith.constant 0 : i32
    %c0_i32_0 = arith.constant 0 : i32
    %c0_i32_1 = arith.constant 0 : i32
    return %c0_i32, %c0_i32_0 : i32, i32
  }
  func.func @transform_18(%arg0: i32, %arg1: i32) -> (i32, i32) {
    %c0_i32 = arith.constant 0 : i32
    %c0_i32_0 = arith.constant 0 : i32
    %c0_i32_1 = arith.constant 0 : i32
    return %c0_i32, %c0_i32_0 : i32, i32
  }
  func.func @transform_19(%arg0: i32, %arg1: i32) -> (i32, i32) {
    %c0_i32 = arith.constant 0 : i32
    %c0_i32_0 = arith.constant 0 : i32
    %c0_i32_1 = arith.constant 0 : i32
    return %c0_i32, %c0_i32_0 : i32, i32
  }
  func.func @transform_20(%arg0: i32, %arg1: i32) -> (i32, i32) {
    %c0_i32 = arith.constant 0 : i32
    %c0_i32_0 = arith.constant 0 : i32
    %c0_i32_1 = arith.constant 0 : i32
    return %c0_i32, %c0_i32_0 : i32, i32
  }
  func.func @transform_21(%arg0: i32, %arg1: i32) -> (i32, i32) {
    %c0_i32 = arith.constant 0 : i32
    %c0_i32_0 = arith.constant 0 : i32
    %c0_i32_1 = arith.constant 0 : i32
    return %c0_i32, %c0_i32_0 : i32, i32
  }
  func.func @transform_22(%arg0: i32, %arg1: i32) -> (i32, i32) {
    %c0_i32 = arith.constant 0 : i32
    %c0_i32_0 = arith.constant 0 : i32
    return %c0_i32, %arg1 : i32, i32
  }
  func.func @transform_23(%arg0: i32, %arg1: i32) -> (i32, i32) {
    %c0_i32 = arith.constant 0 : i32
    %c0_i32_0 = arith.constant 0 : i32
    return %c0_i32, %arg1 : i32, i32
  }
  func.func @transform_24(%arg0: i32, %arg1: i32) -> (i32, i32) {
    %c0_i32 = arith.constant 0 : i32
    %c0_i32_0 = arith.constant 0 : i32
    return %arg0, %c0_i32 : i32, i32
  }
  func.func @transform_25(%arg0: i32, %arg1: i32) -> (i32, i32) {
    %c0_i32 = arith.constant 0 : i32
    %c0_i32_0 = arith.constant 0 : i32
    return %arg0, %c0_i32 : i32, i32
  }
  func.func @transform_26(%arg0: i32, %arg1: i32) -> (i32, i32) {
    %c0_i32 = arith.constant 0 : i32
    %c0_i32_0 = arith.constant 0 : i32
    return %arg0, %c0_i32 : i32, i32
  }
  func.func @transform_27(%arg0: i32, %arg1: i32) -> (i32, i32) {
    %c0_i32 = arith.constant 0 : i32
    %c0_i32_0 = arith.constant 0 : i32
    return %arg0, %c0_i32 : i32, i32
  }
  func.func @transform_28(%arg0: i32, %arg1: i32) -> (i32, i32) {
    %c0_i32 = arith.constant 0 : i32
    %c0_i32_0 = arith.constant 0 : i32
    return %arg0, %c0_i32 : i32, i32
  }
}

module attributes {stable_mosaic.version = 11 : i64} {
  func.func @_fused_moco_kernel(%arg0: i32, %arg1: i32, %arg2: memref<8x64xbf16, #tpu.memory_space<vmem>>, %arg3: memref<8x48xbf16, #tpu.memory_space<vmem>>, %arg4: memref<64x32xbf16, #tpu.memory_space<vmem>>, %arg5: memref<3x32xf32, #tpu.memory_space<vmem>>, %arg6: memref<32x32xbf16, #tpu.memory_space<vmem>>, %arg7: memref<2x32xf32, #tpu.memory_space<vmem>>, %arg8: memref<32x32xbf16, #tpu.memory_space<vmem>>, %arg9: memref<48x32xbf16, #tpu.memory_space<vmem>>, %arg10: memref<3x32xf32, #tpu.memory_space<vmem>>, %arg11: memref<32x32xbf16, #tpu.memory_space<vmem>>, %arg12: memref<2x32xf32, #tpu.memory_space<vmem>>, %arg13: memref<32x32xbf16, #tpu.memory_space<vmem>>, %arg14: memref<64x32xbf16, #tpu.memory_space<vmem>>, %arg15: memref<3x32xf32, #tpu.memory_space<vmem>>, %arg16: memref<32x32xbf16, #tpu.memory_space<vmem>>, %arg17: memref<2x32xf32, #tpu.memory_space<vmem>>, %arg18: memref<32x32xbf16, #tpu.memory_space<vmem>>, %arg19: memref<48x32xbf16, #tpu.memory_space<vmem>>, %arg20: memref<3x32xf32, #tpu.memory_space<vmem>>, %arg21: memref<32x32xbf16, #tpu.memory_space<vmem>>, %arg22: memref<2x32xf32, #tpu.memory_space<vmem>>, %arg23: memref<32x32xbf16, #tpu.memory_space<vmem>>, %arg24: memref<32x128xbf16, #tpu.memory_space<vmem>>, %arg25: memref<32x128xbf16, #tpu.memory_space<vmem>>, %arg26: memref<8x32xf32, #tpu.memory_space<vmem>>, %arg27: memref<8x32xf32, #tpu.memory_space<vmem>>, %arg28: memref<8x32xf32, #tpu.memory_space<vmem>>, %arg29: memref<8x32xf32, #tpu.memory_space<vmem>>, %arg30: memref<8x2xf32, #tpu.memory_space<vmem>>, %arg31: memref<8x32xbf16, #tpu.memory_space<vmem>>, %arg32: memref<8x32xbf16, #tpu.memory_space<vmem>>, %arg33: memref<8x1xf32, #tpu.memory_space<vmem>>, %arg34: memref<8x1xf32, #tpu.memory_space<vmem>>, %arg35: memref<8x1xf32, #tpu.memory_space<vmem>>, %arg36: memref<8x1xf32, #tpu.memory_space<vmem>>) attributes {dimension_semantics = [#tpu.dimension_semantics<parallel>, #tpu.dimension_semantics<arbitrary>], iteration_bounds = array<i64: 1, 1>, scalar_prefetch = 0 : i64, scratch_operands = 6 : i64, tpu.core_type = #tpu.core_type<tc>, window_params = [{transform_indices = @transform_0, window_bounds = array<i64: 8, 64>}, {transform_indices = @transform_1, window_bounds = array<i64: 8, 48>}, {pipeline_mode = #tpu.pipeline_mode<synchronous>, transform_indices = @transform_2, window_bounds = array<i64: 64, 32>}, {pipeline_mode = #tpu.pipeline_mode<synchronous>, transform_indices = @transform_3, window_bounds = array<i64: 3, 32>}, {pipeline_mode = #tpu.pipeline_mode<synchronous>, transform_indices = @transform_4, window_bounds = array<i64: 32, 32>}, {pipeline_mode = #tpu.pipeline_mode<synchronous>, transform_indices = @transform_5, window_bounds = array<i64: 2, 32>}, {pipeline_mode = #tpu.pipeline_mode<synchronous>, transform_indices = @transform_6, window_bounds = array<i64: 32, 32>}, {pipeline_mode = #tpu.pipeline_mode<synchronous>, transform_indices = @transform_7, window_bounds = array<i64: 48, 32>}, {pipeline_mode = #tpu.pipeline_mode<synchronous>, transform_indices = @transform_8, window_bounds = array<i64: 3, 32>}, {pipeline_mode = #tpu.pipeline_mode<synchronous>, transform_indices = @transform_9, window_bounds = array<i64: 32, 32>}, {pipeline_mode = #tpu.pipeline_mode<synchronous>, transform_indices = @transform_10, window_bounds = array<i64: 2, 32>}, {pipeline_mode = #tpu.pipeline_mode<synchronous>, transform_indices = @transform_11, window_bounds = array<i64: 32, 32>}, {pipeline_mode = #tpu.pipeline_mode<synchronous>, transform_indices = @transform_12, window_bounds = array<i64: 64, 32>}, {pipeline_mode = #tpu.pipeline_mode<synchronous>, transform_indices = @transform_13, window_bounds = array<i64: 3, 32>}, {pipeline_mode = #tpu.pipeline_mode<synchronous>, transform_indices = @transform_14, window_bounds = array<i64: 32, 32>}, {pipeline_mode = #tpu.pipeline_mode<synchronous>, transform_indices = @transform_15, window_bounds = array<i64: 2, 32>}, {pipeline_mode = #tpu.pipeline_mode<synchronous>, transform_indices = @transform_16, window_bounds = array<i64: 32, 32>}, {pipeline_mode = #tpu.pipeline_mode<synchronous>, transform_indices = @transform_17, window_bounds = array<i64: 48, 32>}, {pipeline_mode = #tpu.pipeline_mode<synchronous>, transform_indices = @transform_18, window_bounds = array<i64: 3, 32>}, {pipeline_mode = #tpu.pipeline_mode<synchronous>, transform_indices = @transform_19, window_bounds = array<i64: 32, 32>}, {pipeline_mode = #tpu.pipeline_mode<synchronous>, transform_indices = @transform_20, window_bounds = array<i64: 2, 32>}, {pipeline_mode = #tpu.pipeline_mode<synchronous>, transform_indices = @transform_21, window_bounds = array<i64: 32, 32>}, {transform_indices = @transform_22, window_bounds = array<i64: 32, 128>}, {transform_indices = @transform_23, window_bounds = array<i64: 32, 128>}, {transform_indices = @transform_24, window_bounds = array<i64: 8, 32>}, {transform_indices = @transform_25, window_bounds = array<i64: 8, 32>}, {transform_indices = @transform_26, window_bounds = array<i64: 8, 32>}, {transform_indices = @transform_27, window_bounds = array<i64: 8, 32>}, {transform_indices = @transform_28, window_bounds = array<i64: 8, 2>}]} {
    %c0_i32 = arith.constant 0 : i32
    %0 = arith.cmpi eq, %arg1, %c0_i32 : i32
    %1 = arith.extui %0 : i1 to i32
    %c0_i32_0 = arith.constant 0 : i32
    %2 = arith.cmpi ne, %1, %c0_i32_0 : i32
    scf.if %2 {
      %c0_23 = arith.constant 0 : index
      %c0_24 = arith.constant 0 : index
      %32 = vector.load %arg2[%c0_23, %c0_24] : memref<8x64xbf16, #tpu.memory_space<vmem>>, vector<8x64xbf16>
      %c0_25 = arith.constant 0 : index
      %c0_26 = arith.constant 0 : index
      %33 = vector.load %arg3[%c0_25, %c0_26] : memref<8x48xbf16, #tpu.memory_space<vmem>>, vector<8x48xbf16>
      %c0_27 = arith.constant 0 : index
      %c0_28 = arith.constant 0 : index
      %34 = vector.load %arg5[%c0_27, %c0_28] : memref<3x32xf32, #tpu.memory_space<vmem>>, vector<3x32xf32>
      %c0_29 = arith.constant 0 : index
      %c0_30 = arith.constant 0 : index
      %35 = vector.load %arg7[%c0_29, %c0_30] : memref<2x32xf32, #tpu.memory_space<vmem>>, vector<2x32xf32>
      %c0_31 = arith.constant 0 : index
      %c0_32 = arith.constant 0 : index
      %36 = vector.load %arg4[%c0_31, %c0_32] : memref<64x32xbf16, #tpu.memory_space<vmem>>, vector<64x32xbf16>
      %cst_33 = arith.constant dense<0.000000e+00> : vector<8x32xf32>
      %37 = tpu.matmul %32, %36, %cst_33 {dimension_numbers = #tpu.dot_dimension_numbers<[1], [0], [0], [1], [0, 0, 1, 1], [], []>} : vector<8x64xbf16>, vector<64x32xbf16>, vector<8x32xf32> -> vector<8x32xf32>
      %38 = vector.extract_strided_slice %34 {offsets = [0, 0], sizes = [1, 32], strides = [1, 1]} : vector<3x32xf32> to vector<1x32xf32>
      %39 = vector.broadcast %38 : vector<1x32xf32> to vector<8x32xf32>
      %40 = arith.addf %37, %39 : vector<8x32xf32>
      %cst_34 = arith.constant dense<0.000000e+00> : vector<8xf32>
      %41 = vector.multi_reduction <add>, %40, %cst_34 [1] : vector<8x32xf32> to vector<8xf32>
      %42 = vector.shape_cast %41 : vector<8xf32> to vector<8x1xf32>
      %cst_35 = arith.constant 3.200000e+01 : f32
      %43 = vector.broadcast %cst_35 : f32 to vector<8x1xf32>
      %44 = arith.divf %42, %43 : vector<8x1xf32>
      %45 = vector.broadcast %44 : vector<8x1xf32> to vector<8x32xf32>
      %46 = arith.subf %40, %45 : vector<8x32xf32>
      %47 = arith.mulf %46, %46 : vector<8x32xf32>
      %cst_36 = arith.constant dense<0.000000e+00> : vector<8xf32>
      %48 = vector.multi_reduction <add>, %47, %cst_36 [1] : vector<8x32xf32> to vector<8xf32>
      %49 = vector.shape_cast %48 : vector<8xf32> to vector<8x1xf32>
      %cst_37 = arith.constant 3.200000e+01 : f32
      %50 = vector.broadcast %cst_37 : f32 to vector<8x1xf32>
      %51 = arith.divf %49, %50 : vector<8x1xf32>
      %52 = vector.broadcast %44 : vector<8x1xf32> to vector<8x32xf32>
      %53 = arith.subf %40, %52 : vector<8x32xf32>
      %cst_38 = arith.constant 9.99999974E-6 : f32
      %54 = vector.broadcast %cst_38 : f32 to vector<8x1xf32>
      %55 = arith.addf %51, %54 : vector<8x1xf32>
      %56 = math.rsqrt %55 : vector<8x1xf32>
      %57 = vector.broadcast %56 : vector<8x1xf32> to vector<8x32xf32>
      %58 = arith.mulf %53, %57 : vector<8x32xf32>
      %59 = vector.extract_strided_slice %34 {offsets = [1, 0], sizes = [1, 32], strides = [1, 1]} : vector<3x32xf32> to vector<1x32xf32>
      %60 = vector.broadcast %59 : vector<1x32xf32> to vector<8x32xf32>
      %61 = arith.mulf %58, %60 : vector<8x32xf32>
      %62 = vector.extract_strided_slice %34 {offsets = [2, 0], sizes = [1, 32], strides = [1, 1]} : vector<3x32xf32> to vector<1x32xf32>
      %63 = vector.broadcast %62 : vector<1x32xf32> to vector<8x32xf32>
      %64 = arith.addf %61, %63 : vector<8x32xf32>
      %65 = arith.negf %64 : vector<8x32xf32>
      %66 = math.exp %65 : vector<8x32xf32>
      %cst_39 = arith.constant 1.000000e+00 : f32
      %67 = vector.broadcast %cst_39 : f32 to vector<8x32xf32>
      %68 = arith.addf %67, %66 : vector<8x32xf32>
      %69 = arith.divf %67, %68 : vector<8x32xf32>
      %70 = arith.mulf %64, %69 : vector<8x32xf32>
      %71 = arith.truncf %70 : vector<8x32xf32> to vector<8x32xbf16>
      %c0_40 = arith.constant 0 : index
      %c0_41 = arith.constant 0 : index
      %72 = vector.load %arg6[%c0_40, %c0_41] : memref<32x32xbf16, #tpu.memory_space<vmem>>, vector<32x32xbf16>
      %cst_42 = arith.constant dense<0.000000e+00> : vector<8x32xf32>
      %73 = tpu.matmul %71, %72, %cst_42 {dimension_numbers = #tpu.dot_dimension_numbers<[1], [0], [0], [1], [0, 0, 1, 1], [], []>} : vector<8x32xbf16>, vector<32x32xbf16>, vector<8x32xf32> -> vector<8x32xf32>
      %74 = vector.extract_strided_slice %35 {offsets = [0, 0], sizes = [1, 32], strides = [1, 1]} : vector<2x32xf32> to vector<1x32xf32>
      %75 = vector.broadcast %74 : vector<1x32xf32> to vector<8x32xf32>
      %76 = arith.addf %73, %75 : vector<8x32xf32>
      %77 = arith.truncf %76 : vector<8x32xf32> to vector<8x32xbf16>
      %c0_43 = arith.constant 0 : index
      %c0_44 = arith.constant 0 : index
      %78 = vector.load %arg8[%c0_43, %c0_44] : memref<32x32xbf16, #tpu.memory_space<vmem>>, vector<32x32xbf16>
      %cst_45 = arith.constant dense<0.000000e+00> : vector<8x32xf32>
      %79 = tpu.matmul %77, %78, %cst_45 {dimension_numbers = #tpu.dot_dimension_numbers<[1], [0], [0], [1], [0, 0, 1, 1], [], []>} : vector<8x32xbf16>, vector<32x32xbf16>, vector<8x32xf32> -> vector<8x32xf32>
      %80 = vector.extract_strided_slice %35 {offsets = [1, 0], sizes = [1, 32], strides = [1, 1]} : vector<2x32xf32> to vector<1x32xf32>
      %81 = vector.broadcast %80 : vector<1x32xf32> to vector<8x32xf32>
      %82 = arith.addf %79, %81 : vector<8x32xf32>
      %83 = arith.mulf %82, %82 : vector<8x32xf32>
      %cst_46 = arith.constant dense<0.000000e+00> : vector<8xf32>
      %84 = vector.multi_reduction <add>, %83, %cst_46 [1] : vector<8x32xf32> to vector<8xf32>
      %85 = vector.shape_cast %84 : vector<8xf32> to vector<8x1xf32>
      %cst_47 = arith.constant 1.000000e-24 : f32
      %86 = vector.broadcast %cst_47 : f32 to vector<8x1xf32>
      %87 = arith.maximumf %85, %86 : vector<8x1xf32>
      %88 = math.rsqrt %87 : vector<8x1xf32>
      %89 = vector.broadcast %88 : vector<8x1xf32> to vector<8x32xf32>
      %90 = arith.mulf %82, %89 : vector<8x32xf32>
      %c0_48 = arith.constant 0 : index
      %c0_49 = arith.constant 0 : index
      %91 = vector.load %arg10[%c0_48, %c0_49] : memref<3x32xf32, #tpu.memory_space<vmem>>, vector<3x32xf32>
      %c0_50 = arith.constant 0 : index
      %c0_51 = arith.constant 0 : index
      %92 = vector.load %arg12[%c0_50, %c0_51] : memref<2x32xf32, #tpu.memory_space<vmem>>, vector<2x32xf32>
      %c0_52 = arith.constant 0 : index
      %c0_53 = arith.constant 0 : index
      %93 = vector.load %arg9[%c0_52, %c0_53] : memref<48x32xbf16, #tpu.memory_space<vmem>>, vector<48x32xbf16>
      %cst_54 = arith.constant dense<0.000000e+00> : vector<8x32xf32>
      %94 = tpu.matmul %33, %93, %cst_54 {dimension_numbers = #tpu.dot_dimension_numbers<[1], [0], [0], [1], [0, 0, 1, 1], [], []>} : vector<8x48xbf16>, vector<48x32xbf16>, vector<8x32xf32> -> vector<8x32xf32>
      %95 = vector.extract_strided_slice %91 {offsets = [0, 0], sizes = [1, 32], strides = [1, 1]} : vector<3x32xf32> to vector<1x32xf32>
      %96 = vector.broadcast %95 : vector<1x32xf32> to vector<8x32xf32>
      %97 = arith.addf %94, %96 : vector<8x32xf32>
      %cst_55 = arith.constant dense<0.000000e+00> : vector<8xf32>
      %98 = vector.multi_reduction <add>, %97, %cst_55 [1] : vector<8x32xf32> to vector<8xf32>
      %99 = vector.shape_cast %98 : vector<8xf32> to vector<8x1xf32>
      %cst_56 = arith.constant 3.200000e+01 : f32
      %100 = vector.broadcast %cst_56 : f32 to vector<8x1xf32>
      %101 = arith.divf %99, %100 : vector<8x1xf32>
      %102 = vector.broadcast %101 : vector<8x1xf32> to vector<8x32xf32>
      %103 = arith.subf %97, %102 : vector<8x32xf32>
      %104 = arith.mulf %103, %103 : vector<8x32xf32>
      %cst_57 = arith.constant dense<0.000000e+00> : vector<8xf32>
      %105 = vector.multi_reduction <add>, %104, %cst_57 [1] : vector<8x32xf32> to vector<8xf32>
      %106 = vector.shape_cast %105 : vector<8xf32> to vector<8x1xf32>
      %cst_58 = arith.constant 3.200000e+01 : f32
      %107 = vector.broadcast %cst_58 : f32 to vector<8x1xf32>
      %108 = arith.divf %106, %107 : vector<8x1xf32>
      %109 = vector.broadcast %101 : vector<8x1xf32> to vector<8x32xf32>
      %110 = arith.subf %97, %109 : vector<8x32xf32>
      %cst_59 = arith.constant 9.99999974E-6 : f32
      %111 = vector.broadcast %cst_59 : f32 to vector<8x1xf32>
      %112 = arith.addf %108, %111 : vector<8x1xf32>
      %113 = math.rsqrt %112 : vector<8x1xf32>
      %114 = vector.broadcast %113 : vector<8x1xf32> to vector<8x32xf32>
      %115 = arith.mulf %110, %114 : vector<8x32xf32>
      %116 = vector.extract_strided_slice %91 {offsets = [1, 0], sizes = [1, 32], strides = [1, 1]} : vector<3x32xf32> to vector<1x32xf32>
      %117 = vector.broadcast %116 : vector<1x32xf32> to vector<8x32xf32>
      %118 = arith.mulf %115, %117 : vector<8x32xf32>
      %119 = vector.extract_strided_slice %91 {offsets = [2, 0], sizes = [1, 32], strides = [1, 1]} : vector<3x32xf32> to vector<1x32xf32>
      %120 = vector.broadcast %119 : vector<1x32xf32> to vector<8x32xf32>
      %121 = arith.addf %118, %120 : vector<8x32xf32>
      %122 = arith.negf %121 : vector<8x32xf32>
      %123 = math.exp %122 : vector<8x32xf32>
      %cst_60 = arith.constant 1.000000e+00 : f32
      %124 = vector.broadcast %cst_60 : f32 to vector<8x32xf32>
      %125 = arith.addf %124, %123 : vector<8x32xf32>
      %126 = arith.divf %124, %125 : vector<8x32xf32>
      %127 = arith.mulf %121, %126 : vector<8x32xf32>
      %128 = arith.truncf %127 : vector<8x32xf32> to vector<8x32xbf16>
      %c0_61 = arith.constant 0 : index
      %c0_62 = arith.constant 0 : index
      %129 = vector.load %arg11[%c0_61, %c0_62] : memref<32x32xbf16, #tpu.memory_space<vmem>>, vector<32x32xbf16>
      %cst_63 = arith.constant dense<0.000000e+00> : vector<8x32xf32>
      %130 = tpu.matmul %128, %129, %cst_63 {dimension_numbers = #tpu.dot_dimension_numbers<[1], [0], [0], [1], [0, 0, 1, 1], [], []>} : vector<8x32xbf16>, vector<32x32xbf16>, vector<8x32xf32> -> vector<8x32xf32>
      %131 = vector.extract_strided_slice %92 {offsets = [0, 0], sizes = [1, 32], strides = [1, 1]} : vector<2x32xf32> to vector<1x32xf32>
      %132 = vector.broadcast %131 : vector<1x32xf32> to vector<8x32xf32>
      %133 = arith.addf %130, %132 : vector<8x32xf32>
      %134 = arith.truncf %133 : vector<8x32xf32> to vector<8x32xbf16>
      %c0_64 = arith.constant 0 : index
      %c0_65 = arith.constant 0 : index
      %135 = vector.load %arg13[%c0_64, %c0_65] : memref<32x32xbf16, #tpu.memory_space<vmem>>, vector<32x32xbf16>
      %cst_66 = arith.constant dense<0.000000e+00> : vector<8x32xf32>
      %136 = tpu.matmul %134, %135, %cst_66 {dimension_numbers = #tpu.dot_dimension_numbers<[1], [0], [0], [1], [0, 0, 1, 1], [], []>} : vector<8x32xbf16>, vector<32x32xbf16>, vector<8x32xf32> -> vector<8x32xf32>
      %137 = vector.extract_strided_slice %92 {offsets = [1, 0], sizes = [1, 32], strides = [1, 1]} : vector<2x32xf32> to vector<1x32xf32>
      %138 = vector.broadcast %137 : vector<1x32xf32> to vector<8x32xf32>
      %139 = arith.addf %136, %138 : vector<8x32xf32>
      %140 = arith.mulf %139, %139 : vector<8x32xf32>
      %cst_67 = arith.constant dense<0.000000e+00> : vector<8xf32>
      %141 = vector.multi_reduction <add>, %140, %cst_67 [1] : vector<8x32xf32> to vector<8xf32>
      %142 = vector.shape_cast %141 : vector<8xf32> to vector<8x1xf32>
      %cst_68 = arith.constant 1.000000e-24 : f32
      %143 = vector.broadcast %cst_68 : f32 to vector<8x1xf32>
      %144 = arith.maximumf %142, %143 : vector<8x1xf32>
      %145 = math.rsqrt %144 : vector<8x1xf32>
      %146 = vector.broadcast %145 : vector<8x1xf32> to vector<8x32xf32>
      %147 = arith.mulf %139, %146 : vector<8x32xf32>
      %c0_69 = arith.constant 0 : index
      %c0_70 = arith.constant 0 : index
      %148 = vector.load %arg15[%c0_69, %c0_70] : memref<3x32xf32, #tpu.memory_space<vmem>>, vector<3x32xf32>
      %c0_71 = arith.constant 0 : index
      %c0_72 = arith.constant 0 : index
      %149 = vector.load %arg17[%c0_71, %c0_72] : memref<2x32xf32, #tpu.memory_space<vmem>>, vector<2x32xf32>
      %c0_73 = arith.constant 0 : index
      %c0_74 = arith.constant 0 : index
      %150 = vector.load %arg14[%c0_73, %c0_74] : memref<64x32xbf16, #tpu.memory_space<vmem>>, vector<64x32xbf16>
      %cst_75 = arith.constant dense<0.000000e+00> : vector<8x32xf32>
      %151 = tpu.matmul %32, %150, %cst_75 {dimension_numbers = #tpu.dot_dimension_numbers<[1], [0], [0], [1], [0, 0, 1, 1], [], []>} : vector<8x64xbf16>, vector<64x32xbf16>, vector<8x32xf32> -> vector<8x32xf32>
      %152 = vector.extract_strided_slice %148 {offsets = [0, 0], sizes = [1, 32], strides = [1, 1]} : vector<3x32xf32> to vector<1x32xf32>
      %153 = vector.broadcast %152 : vector<1x32xf32> to vector<8x32xf32>
      %154 = arith.addf %151, %153 : vector<8x32xf32>
      %cst_76 = arith.constant dense<0.000000e+00> : vector<8xf32>
      %155 = vector.multi_reduction <add>, %154, %cst_76 [1] : vector<8x32xf32> to vector<8xf32>
      %156 = vector.shape_cast %155 : vector<8xf32> to vector<8x1xf32>
      %cst_77 = arith.constant 3.200000e+01 : f32
      %157 = vector.broadcast %cst_77 : f32 to vector<8x1xf32>
      %158 = arith.divf %156, %157 : vector<8x1xf32>
      %159 = vector.broadcast %158 : vector<8x1xf32> to vector<8x32xf32>
      %160 = arith.subf %154, %159 : vector<8x32xf32>
      %161 = arith.mulf %160, %160 : vector<8x32xf32>
      %cst_78 = arith.constant dense<0.000000e+00> : vector<8xf32>
      %162 = vector.multi_reduction <add>, %161, %cst_78 [1] : vector<8x32xf32> to vector<8xf32>
      %163 = vector.shape_cast %162 : vector<8xf32> to vector<8x1xf32>
      %cst_79 = arith.constant 3.200000e+01 : f32
      %164 = vector.broadcast %cst_79 : f32 to vector<8x1xf32>
      %165 = arith.divf %163, %164 : vector<8x1xf32>
      %166 = vector.broadcast %158 : vector<8x1xf32> to vector<8x32xf32>
      %167 = arith.subf %154, %166 : vector<8x32xf32>
      %cst_80 = arith.constant 9.99999974E-6 : f32
      %168 = vector.broadcast %cst_80 : f32 to vector<8x1xf32>
      %169 = arith.addf %165, %168 : vector<8x1xf32>
      %170 = math.rsqrt %169 : vector<8x1xf32>
      %171 = vector.broadcast %170 : vector<8x1xf32> to vector<8x32xf32>
      %172 = arith.mulf %167, %171 : vector<8x32xf32>
      %173 = vector.extract_strided_slice %148 {offsets = [1, 0], sizes = [1, 32], strides = [1, 1]} : vector<3x32xf32> to vector<1x32xf32>
      %174 = vector.broadcast %173 : vector<1x32xf32> to vector<8x32xf32>
      %175 = arith.mulf %172, %174 : vector<8x32xf32>
      %176 = vector.extract_strided_slice %148 {offsets = [2, 0], sizes = [1, 32], strides = [1, 1]} : vector<3x32xf32> to vector<1x32xf32>
      %177 = vector.broadcast %176 : vector<1x32xf32> to vector<8x32xf32>
      %178 = arith.addf %175, %177 : vector<8x32xf32>
      %179 = arith.negf %178 : vector<8x32xf32>
      %180 = math.exp %179 : vector<8x32xf32>
      %cst_81 = arith.constant 1.000000e+00 : f32
      %181 = vector.broadcast %cst_81 : f32 to vector<8x32xf32>
      %182 = arith.addf %181, %180 : vector<8x32xf32>
      %183 = arith.divf %181, %182 : vector<8x32xf32>
      %184 = arith.mulf %178, %183 : vector<8x32xf32>
      %185 = arith.truncf %184 : vector<8x32xf32> to vector<8x32xbf16>
      %c0_82 = arith.constant 0 : index
      %c0_83 = arith.constant 0 : index
      %186 = vector.load %arg16[%c0_82, %c0_83] : memref<32x32xbf16, #tpu.memory_space<vmem>>, vector<32x32xbf16>
      %cst_84 = arith.constant dense<0.000000e+00> : vector<8x32xf32>
      %187 = tpu.matmul %185, %186, %cst_84 {dimension_numbers = #tpu.dot_dimension_numbers<[1], [0], [0], [1], [0, 0, 1, 1], [], []>} : vector<8x32xbf16>, vector<32x32xbf16>, vector<8x32xf32> -> vector<8x32xf32>
      %188 = vector.extract_strided_slice %149 {offsets = [0, 0], sizes = [1, 32], strides = [1, 1]} : vector<2x32xf32> to vector<1x32xf32>
      %189 = vector.broadcast %188 : vector<1x32xf32> to vector<8x32xf32>
      %190 = arith.addf %187, %189 : vector<8x32xf32>
      %191 = arith.truncf %190 : vector<8x32xf32> to vector<8x32xbf16>
      %c0_85 = arith.constant 0 : index
      %c0_86 = arith.constant 0 : index
      %192 = vector.load %arg18[%c0_85, %c0_86] : memref<32x32xbf16, #tpu.memory_space<vmem>>, vector<32x32xbf16>
      %cst_87 = arith.constant dense<0.000000e+00> : vector<8x32xf32>
      %193 = tpu.matmul %191, %192, %cst_87 {dimension_numbers = #tpu.dot_dimension_numbers<[1], [0], [0], [1], [0, 0, 1, 1], [], []>} : vector<8x32xbf16>, vector<32x32xbf16>, vector<8x32xf32> -> vector<8x32xf32>
      %194 = vector.extract_strided_slice %149 {offsets = [1, 0], sizes = [1, 32], strides = [1, 1]} : vector<2x32xf32> to vector<1x32xf32>
      %195 = vector.broadcast %194 : vector<1x32xf32> to vector<8x32xf32>
      %196 = arith.addf %193, %195 : vector<8x32xf32>
      %197 = arith.mulf %196, %196 : vector<8x32xf32>
      %cst_88 = arith.constant dense<0.000000e+00> : vector<8xf32>
      %198 = vector.multi_reduction <add>, %197, %cst_88 [1] : vector<8x32xf32> to vector<8xf32>
      %199 = vector.shape_cast %198 : vector<8xf32> to vector<8x1xf32>
      %cst_89 = arith.constant 1.000000e-24 : f32
      %200 = vector.broadcast %cst_89 : f32 to vector<8x1xf32>
      %201 = arith.maximumf %199, %200 : vector<8x1xf32>
      %202 = math.rsqrt %201 : vector<8x1xf32>
      %203 = vector.broadcast %202 : vector<8x1xf32> to vector<8x32xf32>
      %204 = arith.mulf %196, %203 : vector<8x32xf32>
      %c0_90 = arith.constant 0 : index
      %c0_91 = arith.constant 0 : index
      %205 = vector.load %arg20[%c0_90, %c0_91] : memref<3x32xf32, #tpu.memory_space<vmem>>, vector<3x32xf32>
      %c0_92 = arith.constant 0 : index
      %c0_93 = arith.constant 0 : index
      %206 = vector.load %arg22[%c0_92, %c0_93] : memref<2x32xf32, #tpu.memory_space<vmem>>, vector<2x32xf32>
      %c0_94 = arith.constant 0 : index
      %c0_95 = arith.constant 0 : index
      %207 = vector.load %arg19[%c0_94, %c0_95] : memref<48x32xbf16, #tpu.memory_space<vmem>>, vector<48x32xbf16>
      %cst_96 = arith.constant dense<0.000000e+00> : vector<8x32xf32>
      %208 = tpu.matmul %33, %207, %cst_96 {dimension_numbers = #tpu.dot_dimension_numbers<[1], [0], [0], [1], [0, 0, 1, 1], [], []>} : vector<8x48xbf16>, vector<48x32xbf16>, vector<8x32xf32> -> vector<8x32xf32>
      %209 = vector.extract_strided_slice %205 {offsets = [0, 0], sizes = [1, 32], strides = [1, 1]} : vector<3x32xf32> to vector<1x32xf32>
      %210 = vector.broadcast %209 : vector<1x32xf32> to vector<8x32xf32>
      %211 = arith.addf %208, %210 : vector<8x32xf32>
      %cst_97 = arith.constant dense<0.000000e+00> : vector<8xf32>
      %212 = vector.multi_reduction <add>, %211, %cst_97 [1] : vector<8x32xf32> to vector<8xf32>
      %213 = vector.shape_cast %212 : vector<8xf32> to vector<8x1xf32>
      %cst_98 = arith.constant 3.200000e+01 : f32
      %214 = vector.broadcast %cst_98 : f32 to vector<8x1xf32>
      %215 = arith.divf %213, %214 : vector<8x1xf32>
      %216 = vector.broadcast %215 : vector<8x1xf32> to vector<8x32xf32>
      %217 = arith.subf %211, %216 : vector<8x32xf32>
      %218 = arith.mulf %217, %217 : vector<8x32xf32>
      %cst_99 = arith.constant dense<0.000000e+00> : vector<8xf32>
      %219 = vector.multi_reduction <add>, %218, %cst_99 [1] : vector<8x32xf32> to vector<8xf32>
      %220 = vector.shape_cast %219 : vector<8xf32> to vector<8x1xf32>
      %cst_100 = arith.constant 3.200000e+01 : f32
      %221 = vector.broadcast %cst_100 : f32 to vector<8x1xf32>
      %222 = arith.divf %220, %221 : vector<8x1xf32>
      %223 = vector.broadcast %215 : vector<8x1xf32> to vector<8x32xf32>
      %224 = arith.subf %211, %223 : vector<8x32xf32>
      %cst_101 = arith.constant 9.99999974E-6 : f32
      %225 = vector.broadcast %cst_101 : f32 to vector<8x1xf32>
      %226 = arith.addf %222, %225 : vector<8x1xf32>
      %227 = math.rsqrt %226 : vector<8x1xf32>
      %228 = vector.broadcast %227 : vector<8x1xf32> to vector<8x32xf32>
      %229 = arith.mulf %224, %228 : vector<8x32xf32>
      %230 = vector.extract_strided_slice %205 {offsets = [1, 0], sizes = [1, 32], strides = [1, 1]} : vector<3x32xf32> to vector<1x32xf32>
      %231 = vector.broadcast %230 : vector<1x32xf32> to vector<8x32xf32>
      %232 = arith.mulf %229, %231 : vector<8x32xf32>
      %233 = vector.extract_strided_slice %205 {offsets = [2, 0], sizes = [1, 32], strides = [1, 1]} : vector<3x32xf32> to vector<1x32xf32>
      %234 = vector.broadcast %233 : vector<1x32xf32> to vector<8x32xf32>
      %235 = arith.addf %232, %234 : vector<8x32xf32>
      %236 = arith.negf %235 : vector<8x32xf32>
      %237 = math.exp %236 : vector<8x32xf32>
      %cst_102 = arith.constant 1.000000e+00 : f32
      %238 = vector.broadcast %cst_102 : f32 to vector<8x32xf32>
      %239 = arith.addf %238, %237 : vector<8x32xf32>
      %240 = arith.divf %238, %239 : vector<8x32xf32>
      %241 = arith.mulf %235, %240 : vector<8x32xf32>
      %242 = arith.truncf %241 : vector<8x32xf32> to vector<8x32xbf16>
      %c0_103 = arith.constant 0 : index
      %c0_104 = arith.constant 0 : index
      %243 = vector.load %arg21[%c0_103, %c0_104] : memref<32x32xbf16, #tpu.memory_space<vmem>>, vector<32x32xbf16>
      %cst_105 = arith.constant dense<0.000000e+00> : vector<8x32xf32>
      %244 = tpu.matmul %242, %243, %cst_105 {dimension_numbers = #tpu.dot_dimension_numbers<[1], [0], [0], [1], [0, 0, 1, 1], [], []>} : vector<8x32xbf16>, vector<32x32xbf16>, vector<8x32xf32> -> vector<8x32xf32>
      %245 = vector.extract_strided_slice %206 {offsets = [0, 0], sizes = [1, 32], strides = [1, 1]} : vector<2x32xf32> to vector<1x32xf32>
      %246 = vector.broadcast %245 : vector<1x32xf32> to vector<8x32xf32>
      %247 = arith.addf %244, %246 : vector<8x32xf32>
      %248 = arith.truncf %247 : vector<8x32xf32> to vector<8x32xbf16>
      %c0_106 = arith.constant 0 : index
      %c0_107 = arith.constant 0 : index
      %249 = vector.load %arg23[%c0_106, %c0_107] : memref<32x32xbf16, #tpu.memory_space<vmem>>, vector<32x32xbf16>
      %cst_108 = arith.constant dense<0.000000e+00> : vector<8x32xf32>
      %250 = tpu.matmul %248, %249, %cst_108 {dimension_numbers = #tpu.dot_dimension_numbers<[1], [0], [0], [1], [0, 0, 1, 1], [], []>} : vector<8x32xbf16>, vector<32x32xbf16>, vector<8x32xf32> -> vector<8x32xf32>
      %251 = vector.extract_strided_slice %206 {offsets = [1, 0], sizes = [1, 32], strides = [1, 1]} : vector<2x32xf32> to vector<1x32xf32>
      %252 = vector.broadcast %251 : vector<1x32xf32> to vector<8x32xf32>
      %253 = arith.addf %250, %252 : vector<8x32xf32>
      %254 = arith.mulf %253, %253 : vector<8x32xf32>
      %cst_109 = arith.constant dense<0.000000e+00> : vector<8xf32>
      %255 = vector.multi_reduction <add>, %254, %cst_109 [1] : vector<8x32xf32> to vector<8xf32>
      %256 = vector.shape_cast %255 : vector<8xf32> to vector<8x1xf32>
      %cst_110 = arith.constant 1.000000e-24 : f32
      %257 = vector.broadcast %cst_110 : f32 to vector<8x1xf32>
      %258 = arith.maximumf %256, %257 : vector<8x1xf32>
      %259 = math.rsqrt %258 : vector<8x1xf32>
      %260 = vector.broadcast %259 : vector<8x1xf32> to vector<8x32xf32>
      %261 = arith.mulf %253, %260 : vector<8x32xf32>
      %c0_111 = arith.constant 0 : index
      %c0_112 = arith.constant 0 : index
      %262 = vector.load %arg26[%c0_111, %c0_112] : memref<8x32xf32, #tpu.memory_space<vmem>>, vector<8x32xf32>
      tpu.vector_store %arg26[%c0_111, %c0_112], %90 {strides = array<i32>} : memref<8x32xf32, #tpu.memory_space<vmem>>, vector<8x32xf32>,
      %c0_113 = arith.constant 0 : index
      %c0_114 = arith.constant 0 : index
      %263 = vector.load %arg27[%c0_113, %c0_114] : memref<8x32xf32, #tpu.memory_space<vmem>>, vector<8x32xf32>
      tpu.vector_store %arg27[%c0_113, %c0_114], %147 {strides = array<i32>} : memref<8x32xf32, #tpu.memory_space<vmem>>, vector<8x32xf32>,
      %c0_115 = arith.constant 0 : index
      %c0_116 = arith.constant 0 : index
      %264 = vector.load %arg28[%c0_115, %c0_116] : memref<8x32xf32, #tpu.memory_space<vmem>>, vector<8x32xf32>
      tpu.vector_store %arg28[%c0_115, %c0_116], %204 {strides = array<i32>} : memref<8x32xf32, #tpu.memory_space<vmem>>, vector<8x32xf32>,
      %c0_117 = arith.constant 0 : index
      %c0_118 = arith.constant 0 : index
      %265 = vector.load %arg29[%c0_117, %c0_118] : memref<8x32xf32, #tpu.memory_space<vmem>>, vector<8x32xf32>
      tpu.vector_store %arg29[%c0_117, %c0_118], %261 {strides = array<i32>} : memref<8x32xf32, #tpu.memory_space<vmem>>, vector<8x32xf32>,
      %cst_119 = arith.constant 14.2857141 : f32
      %266 = vector.broadcast %cst_119 : f32 to vector<8x32xf32>
      %267 = arith.mulf %90, %266 : vector<8x32xf32>
      %268 = arith.truncf %267 : vector<8x32xf32> to vector<8x32xbf16>
      %c0_120 = arith.constant 0 : index
      %c0_121 = arith.constant 0 : index
      %269 = vector.load %arg31[%c0_120, %c0_121] : memref<8x32xbf16, #tpu.memory_space<vmem>>, vector<8x32xbf16>
      tpu.vector_store %arg31[%c0_120, %c0_121], %268 {strides = array<i32>} : memref<8x32xbf16, #tpu.memory_space<vmem>>, vector<8x32xbf16>,
      %cst_122 = arith.constant 14.2857141 : f32
      %270 = vector.broadcast %cst_122 : f32 to vector<8x32xf32>
      %271 = arith.mulf %147, %270 : vector<8x32xf32>
      %272 = arith.truncf %271 : vector<8x32xf32> to vector<8x32xbf16>
      %c0_123 = arith.constant 0 : index
      %c0_124 = arith.constant 0 : index
      %273 = vector.load %arg32[%c0_123, %c0_124] : memref<8x32xbf16, #tpu.memory_space<vmem>>, vector<8x32xbf16>
      tpu.vector_store %arg32[%c0_123, %c0_124], %272 {strides = array<i32>} : memref<8x32xbf16, #tpu.memory_space<vmem>>, vector<8x32xbf16>,
      %274 = arith.mulf %90, %261 : vector<8x32xf32>
      %cst_125 = arith.constant dense<0.000000e+00> : vector<8xf32>
      %275 = vector.multi_reduction <add>, %274, %cst_125 [1] : vector<8x32xf32> to vector<8xf32>
      %276 = vector.shape_cast %275 : vector<8xf32> to vector<8x1xf32>
      %cst_126 = arith.constant 14.2857141 : f32
      %277 = vector.broadcast %cst_126 : f32 to vector<8x1xf32>
      %278 = arith.mulf %276, %277 : vector<8x1xf32>
      %279 = arith.mulf %147, %204 : vector<8x32xf32>
      %cst_127 = arith.constant dense<0.000000e+00> : vector<8xf32>
      %280 = vector.multi_reduction <add>, %279, %cst_127 [1] : vector<8x32xf32> to vector<8xf32>
      %281 = vector.shape_cast %280 : vector<8xf32> to vector<8x1xf32>
      %cst_128 = arith.constant 14.2857141 : f32
      %282 = vector.broadcast %cst_128 : f32 to vector<8x1xf32>
      %283 = arith.mulf %281, %282 : vector<8x1xf32>
      %c0_129 = arith.constant 0 : index
      %c0_130 = arith.constant 0 : index
      %284 = vector.load %arg33[%c0_129, %c0_130] : memref<8x1xf32, #tpu.memory_space<vmem>>, vector<8x1xf32>
      tpu.vector_store %arg33[%c0_129, %c0_130], %278 {strides = array<i32>} : memref<8x1xf32, #tpu.memory_space<vmem>>, vector<8x1xf32>,
      %c0_131 = arith.constant 0 : index
      %c0_132 = arith.constant 0 : index
      %285 = vector.load %arg35[%c0_131, %c0_132] : memref<8x1xf32, #tpu.memory_space<vmem>>, vector<8x1xf32>
      tpu.vector_store %arg35[%c0_131, %c0_132], %283 {strides = array<i32>} : memref<8x1xf32, #tpu.memory_space<vmem>>, vector<8x1xf32>,
      %cst_133 = arith.constant 14.2857141 : f32
      %286 = vector.broadcast %cst_133 : f32 to vector<8x1xf32>
      %287 = arith.subf %278, %286 : vector<8x1xf32>
      %288 = math.exp %287 : vector<8x1xf32>
      %c0_134 = arith.constant 0 : index
      %c0_135 = arith.constant 0 : index
      %289 = vector.load %arg34[%c0_134, %c0_135] : memref<8x1xf32, #tpu.memory_space<vmem>>, vector<8x1xf32>
      tpu.vector_store %arg34[%c0_134, %c0_135], %288 {strides = array<i32>} : memref<8x1xf32, #tpu.memory_space<vmem>>, vector<8x1xf32>,
      %cst_136 = arith.constant 14.2857141 : f32
      %290 = vector.broadcast %cst_136 : f32 to vector<8x1xf32>
      %291 = arith.subf %283, %290 : vector<8x1xf32>
      %292 = math.exp %291 : vector<8x1xf32>
      %c0_137 = arith.constant 0 : index
      %c0_138 = arith.constant 0 : index
      %293 = vector.load %arg36[%c0_137, %c0_138] : memref<8x1xf32, #tpu.memory_space<vmem>>, vector<8x1xf32>
      tpu.vector_store %arg36[%c0_137, %c0_138], %292 {strides = array<i32>} : memref<8x1xf32, #tpu.memory_space<vmem>>, vector<8x1xf32>,
    } else {
    }
    %c0 = arith.constant 0 : index
    %c0_1 = arith.constant 0 : index
    %3 = vector.load %arg31[%c0, %c0_1] : memref<8x32xbf16, #tpu.memory_space<vmem>>, vector<8x32xbf16>
    %c0_2 = arith.constant 0 : index
    %c0_3 = arith.constant 0 : index
    %4 = vector.load %arg24[%c0_2, %c0_3] : memref<32x128xbf16, #tpu.memory_space<vmem>>, vector<32x128xbf16>
    %cst = arith.constant dense<0.000000e+00> : vector<8x128xf32>
    %5 = tpu.matmul %3, %4, %cst {dimension_numbers = #tpu.dot_dimension_numbers<[1], [0], [0], [1], [0, 0, 1, 1], [], []>} : vector<8x32xbf16>, vector<32x128xbf16>, vector<8x128xf32> -> vector<8x128xf32>
    %cst_4 = arith.constant 14.2857141 : f32
    %6 = vector.broadcast %cst_4 : f32 to vector<8x128xf32>
    %7 = arith.subf %5, %6 : vector<8x128xf32>
    %8 = arith.truncf %7 : vector<8x128xf32> to vector<8x128xbf16>
    %9 = math.exp %8 : vector<8x128xbf16>
    %c0_5 = arith.constant 0 : index
    %c0_6 = arith.constant 0 : index
    %10 = vector.load %arg34[%c0_5, %c0_6] : memref<8x1xf32, #tpu.memory_space<vmem>>, vector<8x1xf32>
    %11 = arith.extf %9 : vector<8x128xbf16> to vector<8x128xf32>
    %cst_7 = arith.constant dense<0.000000e+00> : vector<8xf32>
    %12 = vector.multi_reduction <add>, %11, %cst_7 [1] : vector<8x128xf32> to vector<8xf32>
    %13 = vector.shape_cast %12 : vector<8xf32> to vector<8x1xf32>
    %14 = arith.addf %10, %13 : vector<8x1xf32>
    %c0_8 = arith.constant 0 : index
    %c0_9 = arith.constant 0 : index
    %15 = vector.load %arg34[%c0_8, %c0_9] : memref<8x1xf32, #tpu.memory_space<vmem>>, vector<8x1xf32>
    tpu.vector_store %arg34[%c0_8, %c0_9], %14 {strides = array<i32>} : memref<8x1xf32, #tpu.memory_space<vmem>>, vector<8x1xf32>,
    %c0_10 = arith.constant 0 : index
    %c0_11 = arith.constant 0 : index
    %16 = vector.load %arg32[%c0_10, %c0_11] : memref<8x32xbf16, #tpu.memory_space<vmem>>, vector<8x32xbf16>
    %c0_12 = arith.constant 0 : index
    %c0_13 = arith.constant 0 : index
    %17 = vector.load %arg25[%c0_12, %c0_13] : memref<32x128xbf16, #tpu.memory_space<vmem>>, vector<32x128xbf16>
    %cst_14 = arith.constant dense<0.000000e+00> : vector<8x128xf32>
    %18 = tpu.matmul %16, %17, %cst_14 {dimension_numbers = #tpu.dot_dimension_numbers<[1], [0], [0], [1], [0, 0, 1, 1], [], []>} : vector<8x32xbf16>, vector<32x128xbf16>, vector<8x128xf32> -> vector<8x128xf32>
    %cst_15 = arith.constant 14.2857141 : f32
    %19 = vector.broadcast %cst_15 : f32 to vector<8x128xf32>
    %20 = arith.subf %18, %19 : vector<8x128xf32>
    %21 = arith.truncf %20 : vector<8x128xf32> to vector<8x128xbf16>
    %22 = math.exp %21 : vector<8x128xbf16>
    %c0_16 = arith.constant 0 : index
    %c0_17 = arith.constant 0 : index
    %23 = vector.load %arg36[%c0_16, %c0_17] : memref<8x1xf32, #tpu.memory_space<vmem>>, vector<8x1xf32>
    %24 = arith.extf %22 : vector<8x128xbf16> to vector<8x128xf32>
    %cst_18 = arith.constant dense<0.000000e+00> : vector<8xf32>
    %25 = vector.multi_reduction <add>, %24, %cst_18 [1] : vector<8x128xf32> to vector<8xf32>
    %26 = vector.shape_cast %25 : vector<8xf32> to vector<8x1xf32>
    %27 = arith.addf %23, %26 : vector<8x1xf32>
    %c0_19 = arith.constant 0 : index
    %c0_20 = arith.constant 0 : index
    %28 = vector.load %arg36[%c0_19, %c0_20] : memref<8x1xf32, #tpu.memory_space<vmem>>, vector<8x1xf32>
    tpu.vector_store %arg36[%c0_19, %c0_20], %27 {strides = array<i32>} : memref<8x1xf32, #tpu.memory_space<vmem>>, vector<8x1xf32>,
    %c0_i32_21 = arith.constant 0 : i32
    %29 = arith.cmpi eq, %arg1, %c0_i32_21 : i32
    %30 = arith.extui %29 : i1 to i32
    %c0_i32_22 = arith.constant 0 : i32
    %31 = arith.cmpi ne, %30, %c0_i32_22 : i32
    scf.if %31 {
      %c0_23 = arith.constant 0 : index
      %c0_24 = arith.constant 0 : index
      %32 = vector.load %arg34[%c0_23, %c0_24] : memref<8x1xf32, #tpu.memory_space<vmem>>, vector<8x1xf32>
      %33 = math.log %32 : vector<8x1xf32>
      %cst_25 = arith.constant 14.2857141 : f32
      %34 = vector.broadcast %cst_25 : f32 to vector<8x1xf32>
      %35 = arith.addf %34, %33 : vector<8x1xf32>
      %c0_26 = arith.constant 0 : index
      %c0_27 = arith.constant 0 : index
      %36 = vector.load %arg33[%c0_26, %c0_27] : memref<8x1xf32, #tpu.memory_space<vmem>>, vector<8x1xf32>
      %37 = arith.subf %35, %36 : vector<8x1xf32>
      %c0_28 = arith.constant 0 : index
      %c0_29 = arith.constant 0 : index
      %38 = vector.load %arg30[%c0_28, %c0_29] : memref<8x2xf32, #tpu.memory_space<vmem>>, vector<8x1xf32>
      tpu.vector_store %arg30[%c0_28, %c0_29], %37 {strides = array<i32>} : memref<8x2xf32, #tpu.memory_space<vmem>>, vector<8x1xf32>,
      %c0_30 = arith.constant 0 : index
      %c0_31 = arith.constant 0 : index
      %39 = vector.load %arg36[%c0_30, %c0_31] : memref<8x1xf32, #tpu.memory_space<vmem>>, vector<8x1xf32>
      %40 = math.log %39 : vector<8x1xf32>
      %cst_32 = arith.constant 14.2857141 : f32
      %41 = vector.broadcast %cst_32 : f32 to vector<8x1xf32>
      %42 = arith.addf %41, %40 : vector<8x1xf32>
      %c0_33 = arith.constant 0 : index
      %c0_34 = arith.constant 0 : index
      %43 = vector.load %arg35[%c0_33, %c0_34] : memref<8x1xf32, #tpu.memory_space<vmem>>, vector<8x1xf32>
      %44 = arith.subf %42, %43 : vector<8x1xf32>
      %c0_35 = arith.constant 0 : index
      %c1 = arith.constant 1 : index
      %45 = vector.load %arg30[%c0_35, %c1] : memref<8x2xf32, #tpu.memory_space<vmem>>, vector<8x1xf32>
      tpu.vector_store %arg30[%c0_35, %c1], %44 {strides = array<i32>} : memref<8x2xf32, #tpu.memory_space<vmem>>, vector<8x1xf32>,
    } else {
    }
    return
  }
  func.func @transform_0(%arg0: i32, %arg1: i32) -> (i32, i32) {
    %c0_i32 = arith.constant 0 : i32
    %c0_i32_0 = arith.constant 0 : i32
    return %arg0, %c0_i32 : i32, i32
  }
  func.func @transform_1(%arg0: i32, %arg1: i32) -> (i32, i32) {
    %c0_i32 = arith.constant 0 : i32
    %c0_i32_0 = arith.constant 0 : i32
    return %arg0, %c0_i32 : i32, i32
  }
  func.func @transform_2(%arg0: i32, %arg1: i32) -> (i32, i32) {
    %c0_i32 = arith.constant 0 : i32
    %c0_i32_0 = arith.constant 0 : i32
    %c0_i32_1 = arith.constant 0 : i32
    return %c0_i32, %c0_i32_0 : i32, i32
  }
  func.func @transform_3(%arg0: i32, %arg1: i32) -> (i32, i32) {
    %c0_i32 = arith.constant 0 : i32
    %c0_i32_0 = arith.constant 0 : i32
    %c0_i32_1 = arith.constant 0 : i32
    return %c0_i32, %c0_i32_0 : i32, i32
  }
  func.func @transform_4(%arg0: i32, %arg1: i32) -> (i32, i32) {
    %c0_i32 = arith.constant 0 : i32
    %c0_i32_0 = arith.constant 0 : i32
    %c0_i32_1 = arith.constant 0 : i32
    return %c0_i32, %c0_i32_0 : i32, i32
  }
  func.func @transform_5(%arg0: i32, %arg1: i32) -> (i32, i32) {
    %c0_i32 = arith.constant 0 : i32
    %c0_i32_0 = arith.constant 0 : i32
    %c0_i32_1 = arith.constant 0 : i32
    return %c0_i32, %c0_i32_0 : i32, i32
  }
  func.func @transform_6(%arg0: i32, %arg1: i32) -> (i32, i32) {
    %c0_i32 = arith.constant 0 : i32
    %c0_i32_0 = arith.constant 0 : i32
    %c0_i32_1 = arith.constant 0 : i32
    return %c0_i32, %c0_i32_0 : i32, i32
  }
  func.func @transform_7(%arg0: i32, %arg1: i32) -> (i32, i32) {
    %c0_i32 = arith.constant 0 : i32
    %c0_i32_0 = arith.constant 0 : i32
    %c0_i32_1 = arith.constant 0 : i32
    return %c0_i32, %c0_i32_0 : i32, i32
  }
  func.func @transform_8(%arg0: i32, %arg1: i32) -> (i32, i32) {
    %c0_i32 = arith.constant 0 : i32
    %c0_i32_0 = arith.constant 0 : i32
    %c0_i32_1 = arith.constant 0 : i32
    return %c0_i32, %c0_i32_0 : i32, i32
  }
  func.func @transform_9(%arg0: i32, %arg1: i32) -> (i32, i32) {
    %c0_i32 = arith.constant 0 : i32
    %c0_i32_0 = arith.constant 0 : i32
    %c0_i32_1 = arith.constant 0 : i32
    return %c0_i32, %c0_i32_0 : i32, i32
  }
  func.func @transform_10(%arg0: i32, %arg1: i32) -> (i32, i32) {
    %c0_i32 = arith.constant 0 : i32
    %c0_i32_0 = arith.constant 0 : i32
    %c0_i32_1 = arith.constant 0 : i32
    return %c0_i32, %c0_i32_0 : i32, i32
  }
  func.func @transform_11(%arg0: i32, %arg1: i32) -> (i32, i32) {
    %c0_i32 = arith.constant 0 : i32
    %c0_i32_0 = arith.constant 0 : i32
    %c0_i32_1 = arith.constant 0 : i32
    return %c0_i32, %c0_i32_0 : i32, i32
  }
  func.func @transform_12(%arg0: i32, %arg1: i32) -> (i32, i32) {
    %c0_i32 = arith.constant 0 : i32
    %c0_i32_0 = arith.constant 0 : i32
    %c0_i32_1 = arith.constant 0 : i32
    return %c0_i32, %c0_i32_0 : i32, i32
  }
  func.func @transform_13(%arg0: i32, %arg1: i32) -> (i32, i32) {
    %c0_i32 = arith.constant 0 : i32
    %c0_i32_0 = arith.constant 0 : i32
    %c0_i32_1 = arith.constant 0 : i32
    return %c0_i32, %c0_i32_0 : i32, i32
  }
  func.func @transform_14(%arg0: i32, %arg1: i32) -> (i32, i32) {
    %c0_i32 = arith.constant 0 : i32
    %c0_i32_0 = arith.constant 0 : i32
    %c0_i32_1 = arith.constant 0 : i32
    return %c0_i32, %c0_i32_0 : i32, i32
  }
  func.func @transform_15(%arg0: i32, %arg1: i32) -> (i32, i32) {
    %c0_i32 = arith.constant 0 : i32
    %c0_i32_0 = arith.constant 0 : i32
    %c0_i32_1 = arith.constant 0 : i32
    return %c0_i32, %c0_i32_0 : i32, i32
  }
  func.func @transform_16(%arg0: i32, %arg1: i32) -> (i32, i32) {
    %c0_i32 = arith.constant 0 : i32
    %c0_i32_0 = arith.constant 0 : i32
    %c0_i32_1 = arith.constant 0 : i32
    return %c0_i32, %c0_i32_0 : i32, i32
  }
  func.func @transform_17(%arg0: i32, %arg1: i32) -> (i32, i32) {
    %c0_i32 = arith.constant 0 : i32
    %c0_i32_0 = arith.constant 0 : i32
    %c0_i32_1 = arith.constant 0 : i32
    return %c0_i32, %c0_i32_0 : i32, i32
  }
  func.func @transform_18(%arg0: i32, %arg1: i32) -> (i32, i32) {
    %c0_i32 = arith.constant 0 : i32
    %c0_i32_0 = arith.constant 0 : i32
    %c0_i32_1 = arith.constant 0 : i32
    return %c0_i32, %c0_i32_0 : i32, i32
  }
  func.func @transform_19(%arg0: i32, %arg1: i32) -> (i32, i32) {
    %c0_i32 = arith.constant 0 : i32
    %c0_i32_0 = arith.constant 0 : i32
    %c0_i32_1 = arith.constant 0 : i32
    return %c0_i32, %c0_i32_0 : i32, i32
  }
  func.func @transform_20(%arg0: i32, %arg1: i32) -> (i32, i32) {
    %c0_i32 = arith.constant 0 : i32
    %c0_i32_0 = arith.constant 0 : i32
    %c0_i32_1 = arith.constant 0 : i32
    return %c0_i32, %c0_i32_0 : i32, i32
  }
  func.func @transform_21(%arg0: i32, %arg1: i32) -> (i32, i32) {
    %c0_i32 = arith.constant 0 : i32
    %c0_i32_0 = arith.constant 0 : i32
    %c0_i32_1 = arith.constant 0 : i32
    return %c0_i32, %c0_i32_0 : i32, i32
  }
  func.func @transform_22(%arg0: i32, %arg1: i32) -> (i32, i32) {
    %c0_i32 = arith.constant 0 : i32
    %c0_i32_0 = arith.constant 0 : i32
    return %c0_i32, %arg1 : i32, i32
  }
  func.func @transform_23(%arg0: i32, %arg1: i32) -> (i32, i32) {
    %c0_i32 = arith.constant 0 : i32
    %c0_i32_0 = arith.constant 0 : i32
    return %c0_i32, %arg1 : i32, i32
  }
  func.func @transform_24(%arg0: i32, %arg1: i32) -> (i32, i32) {
    %c0_i32 = arith.constant 0 : i32
    %c0_i32_0 = arith.constant 0 : i32
    return %arg0, %c0_i32 : i32, i32
  }
  func.func @transform_25(%arg0: i32, %arg1: i32) -> (i32, i32) {
    %c0_i32 = arith.constant 0 : i32
    %c0_i32_0 = arith.constant 0 : i32
    return %arg0, %c0_i32 : i32, i32
  }
  func.func @transform_26(%arg0: i32, %arg1: i32) -> (i32, i32) {
    %c0_i32 = arith.constant 0 : i32
    %c0_i32_0 = arith.constant 0 : i32
    return %arg0, %c0_i32 : i32, i32
  }
  func.func @transform_27(%arg0: i32, %arg1: i32) -> (i32, i32) {
    %c0_i32 = arith.constant 0 : i32
    %c0_i32_0 = arith.constant 0 : i32
    return %arg0, %c0_i32 : i32, i32
  }
  func.func @transform_28(%arg0: i32, %arg1: i32) -> (i32, i32) {
    %c0_i32 = arith.constant 0 : i32
    %c0_i32_0 = arith.constant 0 : i32
    return %arg0, %c0_i32 : i32, i32
  }
}

</mosaic_0001>

<llo_original>
// kernel: tpu_custom_call.1
$region0: #{tpu_custom_call.1}
  #allocation0 [shape = 'u32[]', space=smem, size = 0x4, offset = 0x4, fixed_abs, tag = 'smem constant byte address 0x4 - core index']
  #allocation1 [shape = 'u32[144,128]{1,0:T(1,128)}', space=vmem, size = 0x12000, scoped, tag = 'internal scratch']
  #allocation2 [shape = 'bf16[8,32]{1,0:T(8,128)(2,1)}', space=vmem, size = 0x800, scoped, tag = 'scratch operand']
  #allocation3 [shape = 'bf16[8,32]{1,0:T(8,128)(2,1)}', space=vmem, size = 0x800, scoped, tag = 'scratch operand']
  #allocation4 [shape = 'f32[8,1]{1,0:T(8,128)}', space=vmem, size = 0x1000, scoped, tag = 'scratch operand']
  #allocation5 [shape = 'f32[8,1]{1,0:T(8,128)}', space=vmem, size = 0x1000, scoped, tag = 'scratch operand']
  #allocation6 [shape = 'f32[8,1]{1,0:T(8,128)}', space=vmem, size = 0x1000, scoped, tag = 'scratch operand']
  #allocation7 [shape = 'f32[8,1]{1,0:T(8,128)}', space=vmem, size = 0x1000, scoped, tag = 'scratch operand']
  %s0 = inlined_call_operand.hbm [shape: bf16[8,64], index: 0, kind: input, shape index: {}]
  %s1 = inlined_call_operand.hbm [shape: bf16[8,48], index: 1, kind: input, shape index: {}]
  %s2 = inlined_call_operand.hbm [shape: bf16[64,32], index: 2, kind: input, shape index: {}]
  %s3 = inlined_call_operand.hbm [shape: f32[3,32], index: 3, kind: input, shape index: {}]
  %s4 = inlined_call_operand.hbm [shape: bf16[32,32], index: 4, kind: input, shape index: {}]
  %s5 = inlined_call_operand.hbm [shape: f32[2,32], index: 5, kind: input, shape index: {}]
  %s6 = inlined_call_operand.hbm [shape: bf16[32,32], index: 6, kind: input, shape index: {}]
  %s7 = inlined_call_operand.hbm [shape: bf16[48,32], index: 7, kind: input, shape index: {}]
  %s8 = inlined_call_operand.hbm [shape: f32[3,32], index: 8, kind: input, shape index: {}]
  %s9 = inlined_call_operand.hbm [shape: bf16[32,32], index: 9, kind: input, shape index: {}]
  %s10 = inlined_call_operand.hbm [shape: f32[2,32], index: 10, kind: input, shape index: {}]
  %s11 = inlined_call_operand.hbm [shape: bf16[32,32], index: 11, kind: input, shape index: {}]
  %s12 = inlined_call_operand.hbm [shape: bf16[64,32], index: 12, kind: input, shape index: {}]
  %s13 = inlined_call_operand.hbm [shape: f32[3,32], index: 13, kind: input, shape index: {}]
  %s14 = inlined_call_operand.hbm [shape: bf16[32,32], index: 14, kind: input, shape index: {}]
  %s15 = inlined_call_operand.hbm [shape: f32[2,32], index: 15, kind: input, shape index: {}]
  %s16 = inlined_call_operand.hbm [shape: bf16[32,32], index: 16, kind: input, shape index: {}]
  %s17 = inlined_call_operand.hbm [shape: bf16[48,32], index: 17, kind: input, shape index: {}]
  %s18 = inlined_call_operand.hbm [shape: f32[3,32], index: 18, kind: input, shape index: {}]
  %s19 = inlined_call_operand.hbm [shape: bf16[32,32], index: 19, kind: input, shape index: {}]
  %s20 = inlined_call_operand.hbm [shape: f32[2,32], index: 20, kind: input, shape index: {}]
  %s21 = inlined_call_operand.hbm [shape: bf16[32,32], index: 21, kind: input, shape index: {}]
  %s22 = inlined_call_operand.hbm [shape: bf16[32,128], index: 22, kind: input, shape index: {}]
  %s23 = inlined_call_operand.hbm [shape: bf16[32,128], index: 23, kind: input, shape index: {}]
  %s24 = inlined_call_operand.hbm [shape: f32[8,32], index: 24, kind: output, shape index: {0}]
  %s25 = inlined_call_operand.hbm [shape: f32[8,32], index: 25, kind: output, shape index: {1}]
  %s26 = inlined_call_operand.hbm [shape: f32[8,32], index: 26, kind: output, shape index: {2}]
  %s27 = inlined_call_operand.hbm [shape: f32[8,32], index: 27, kind: output, shape index: {3}]
  %s28 = inlined_call_operand.hbm [shape: f32[8,2], index: 28, kind: output, shape index: {4}]
  %29 = xla_tuple %s24, %s25, %s26, %s27, %s28
  %s30 = sld [smem:[#allocation0]]
  $region242: #{tpu_custom_call.1} parent=0
    _
  %s32 = ssub.s32 1, %s30
  %s33 = scalar_select 0, %s32, %s30
  $region1: #{tpu_custom_call.1} parent=0
    #allocation8 [shape = 'u8[2048]{0}', space=vmem, size = 0x800, scoped, tag = 'input window, operand 0, single buffered']
    #allocation9 [shape = 's32[1]{0}', space=sflag, size = 0x4, scoped, tag = 'scoped memory for tpu_custom_call.1']
    #allocation10 [shape = 's32[1]{0}', space=sflag, size = 0x4, scoped, tag = 'scoped memory for tpu_custom_call.1']
    #allocation11 [shape = 'u8[2048]{0}', space=vmem, size = 0x800, scoped, tag = 'input window, operand 1, single buffered']
    #allocation12 [shape = 's32[1]{0}', space=sflag, size = 0x4, scoped, tag = 'scoped memory for tpu_custom_call.1']
    #allocation13 [shape = 'u8[16384]{0}', space=vmem, size = 0x4000, scoped, tag = 'input window, operand 2, single buffered']
    #allocation14 [shape = 'u8[2048]{0}', space=vmem, size = 0x800, scoped, tag = 'input window, operand 3, single buffered']
    #allocation15 [shape = 's32[1]{0}', space=sflag, size = 0x4, scoped, tag = 'scoped memory for tpu_custom_call.1']
    #allocation16 [shape = 'u8[8192]{0}', space=vmem, size = 0x2000, scoped, tag = 'input window, operand 4, single buffered']
    #allocation17 [shape = 'u8[1024]{0}', space=vmem, size = 0x400, scoped, tag = 'input window, operand 5, single buffered']
    #allocation18 [shape = 's32[1]{0}', space=sflag, size = 0x4, scoped, tag = 'scoped memory for tpu_custom_call.1']
    #allocation19 [shape = 'u8[8192]{0}', space=vmem, size = 0x2000, scoped, tag = 'input window, operand 6, single buffered']
    #allocation20 [shape = 'u8[12288]{0}', space=vmem, size = 0x3000, scoped, tag = 'input window, operand 7, single buffered']
    #allocation21 [shape = 's32[1]{0}', space=sflag, size = 0x4, scoped, tag = 'scoped memory for tpu_custom_call.1']
    #allocation22 [shape = 'u8[2048]{0}', space=vmem, size = 0x800, scoped, tag = 'input window, operand 8, single buffered']
    #allocation23 [shape = 'u8[8192]{0}', space=vmem, size = 0x2000, scoped, tag = 'input window, operand 9, single buffered']
    #allocation24 [shape = 's32[1]{0}', space=sflag, size = 0x4, scoped, tag = 'scoped memory for tpu_custom_call.1']
    #allocation25 [shape = 'u8[1024]{0}', space=vmem, size = 0x400, scoped, tag = 'input window, operand 10, single buffered']
    #allocation26 [shape = 'u8[8192]{0}', space=vmem, size = 0x2000, scoped, tag = 'input window, operand 11, single buffered']
    #allocation27 [shape = 's32[1]{0}', space=sflag, size = 0x4, scoped, tag = 'scoped memory for tpu_custom_call.1']
    #allocation28 [shape = 'u8[16384]{0}', space=vmem, size = 0x4000, scoped, tag = 'input window, operand 12, single buffered']
    #allocation29 [shape = 'u8[2048]{0}', space=vmem, size = 0x800, scoped, tag = 'input window, operand 13, single buffered']
    #allocation30 [shape = 's32[1]{0}', space=sflag, size = 0x4, scoped, tag = 'scoped memory for tpu_custom_call.1']
    #allocation31 [shape = 'u8[8192]{0}', space=vmem, size = 0x2000, scoped, tag = 'input window, operand 14, single buffered']
    #allocation32 [shape = 'u8[1024]{0}', space=vmem, size = 0x400, scoped, tag = 'input window, operand 15, single buffered']
    #allocation33 [shape = 's32[1]{0}', space=sflag, size = 0x4, scoped, tag = 'scoped memory for tpu_custom_call.1']
    #allocation34 [shape = 'u8[8192]{0}', space=vmem, size = 0x2000, scoped, tag = 'input window, operand 16, single buffered']
    #allocation35 [shape = 'u8[12288]{0}', space=vmem, size = 0x3000, scoped, tag = 'input window, operand 17, single buffered']
    #allocation36 [shape = 's32[1]{0}', space=sflag, size = 0x4, scoped, tag = 'scoped memory for tpu_custom_call.1']
    #allocation37 [shape = 'u8[2048]{0}', space=vmem, size = 0x800, scoped, tag = 'input window, operand 18, single buffered']
    #allocation38 [shape = 'u8[8192]{0}', space=vmem, size = 0x2000, scoped, tag = 'input window, operand 19, single buffered']
    #allocation39 [shape = 's32[1]{0}', space=sflag, size = 0x4, scoped, tag = 'scoped memory for tpu_custom_call.1']
    #allocation40 [shape = 'u8[1024]{0}', space=vmem, size = 0x400, scoped, tag = 'input window, operand 20, single buffered']
    #allocation41 [shape = 'u8[8192]{0}', space=vmem, size = 0x2000, scoped, tag = 'input window, operand 21, single buffered']
    #allocation42 [shape = 's32[1]{0}', space=sflag, size = 0x4, scoped, tag = 'scoped memory for tpu_custom_call.1']
    #allocation43 [shape = 'u8[8192]{0}', space=vmem, size = 0x2000, scoped, tag = 'input window, operand 22, single buffered']
    #allocation44 [shape = 'u8[8192]{0}', space=vmem, size = 0x2000, scoped, tag = 'input window, operand 23, single buffered']
    #allocation45 [shape = 's32[1]{0}', space=sflag, size = 0x4, scoped, tag = 'scoped memory for tpu_custom_call.1']
    #allocation46 [shape = 'u8[4096]{0}', space=vmem, size = 0x1000, scoped, tag = 'output window, operand 0, single buffered']
    #allocation47 [shape = 'u8[4096]{0}', space=vmem, size = 0x1000, scoped, tag = 'output window, operand 1, single buffered']
    #allocation48 [shape = 's32[1]{0}', space=sflag, size = 0x4, scoped, tag = 'scoped memory for tpu_custom_call.1']
    #allocation49 [shape = 'u8[4096]{0}', space=vmem, size = 0x1000, scoped, tag = 'output window, operand 2, single buffered']
    #allocation50 [shape = 'u8[4096]{0}', space=vmem, size = 0x1000, scoped, tag = 'output window, operand 3, single buffered']
    #allocation51 [shape = 's32[1]{0}', space=sflag, size = 0x4, scoped, tag = 'scoped memory for tpu_custom_call.1']
    #allocation52 [shape = 'u8[4096]{0}', space=vmem, size = 0x1000, scoped, tag = 'output window, operand 4, single buffered']
    %34 = vsyncpa [#allocation9], 0
    %35 = vsyncpa [#allocation12], 0
    %36 = vsyncpa [#allocation15], 0
    %37 = vsyncpa [#allocation18], 0
    %38 = vsyncpa [#allocation21], 0
    %39 = vsyncpa [#allocation24], 0
    %40 = vsyncpa [#allocation27], 0
    %41 = vsyncpa [#allocation30], 0
    %42 = vsyncpa [#allocation33], 0
    %43 = vsyncpa [#allocation36], 0
    %44 = vsyncpa [#allocation39], 0
    %45 = vsyncpa [#allocation42], 0
    %46 = vsyncpa [#allocation45], 0
    %47 = vsyncpa [#allocation10], 0
    %48 = vsyncpa [#allocation48], 0
    %49 = vsyncpa [#allocation51], 0
    // Predicated region
    $region2: #{tpu_custom_call.1} parent=1 // pred_check
      _
    $region3: #{tpu_custom_call.1} parent=1 // pred_check_branch
      %51 = sbr.rel (0) target = $region5
    $region4: #{tpu_custom_call.1} parent=1 // pred_region
      %s53 = ssub.s32 64, 64
      %54 = vsyncadd [#allocation9], %s53
      %s56 = sshll.u32 [#allocation8], 4
      %s57 = int_to_ptr.vmem [resolvable:$true] %s56
      %59 = dma.hbm_to_vmem [thread:$0]  %s0, 64, %s57, [#allocation9]
    $region5: #{tpu_custom_call.1} parent=1 // pred_fallthru
      _
    // Predicated region
    $region6: #{tpu_custom_call.1} parent=1 // pred_check
      _
    $region7: #{tpu_custom_call.1} parent=1 // pred_check_branch
      %61 = sbr.rel (0) target = $region9
    $region8: #{tpu_custom_call.1} parent=1 // pred_region
      %s63 = ssub.s32 64, 64
      %64 = vsyncadd [#allocation12], %s63
      %s66 = sshll.u32 [#allocation11], 4
      %s67 = int_to_ptr.vmem [resolvable:$true] %s66
      %69 = dma.hbm_to_vmem [thread:$0]  %s1, 64, %s67, [#allocation12]
    $region9: #{tpu_custom_call.1} parent=1 // pred_fallthru
      _
    // Predicated region
    $region10: #{tpu_custom_call.1} parent=1 // pred_check
      _
    $region11: #{tpu_custom_call.1} parent=1 // pred_check_branch
      %71 = sbr.rel (0) target = $region13
    $region12: #{tpu_custom_call.1} parent=1 // pred_region
      %s73 = ssub.s32 512, 512
      %74 = vsyncadd [#allocation12], %s73
      %s75 = sshll.u32 [#allocation13], 4
      %s76 = int_to_ptr.vmem [resolvable:$true] %s75
      %81 = dma.hbm_to_vmem [thread:$0]  %s2, 512, %s76, [#allocation12], 64, 64, 4
    $region13: #{tpu_custom_call.1} parent=1 // pred_fallthru
      _
    // Predicated region
    $region14: #{tpu_custom_call.1} parent=1 // pred_check
      _
    $region15: #{tpu_custom_call.1} parent=1 // pred_check_branch
      %83 = sbr.rel (0) target = $region17
    $region16: #{tpu_custom_call.1} parent=1 // pred_region
      %s85 = ssub.s32 64, 64
      %86 = vsyncadd [#allocation15], %s85
      %s88 = sshll.u32 [#allocation14], 4
      %s89 = int_to_ptr.vmem [resolvable:$true] %s88
      %91 = dma.hbm_to_vmem [thread:$0]  %s3, 64, %s89, [#allocation15]
    $region17: #{tpu_custom_call.1} parent=1 // pred_fallthru
      _
    // Predicated region
    $region18: #{tpu_custom_call.1} parent=1 // pred_check
      _
    $region19: #{tpu_custom_call.1} parent=1 // pred_check_branch
      %93 = sbr.rel (0) target = $region21
    $region20: #{tpu_custom_call.1} parent=1 // pred_region
      %s95 = ssub.s32 256, 256
      %96 = vsyncadd [#allocation15], %s95
      %s97 = sshll.u32 [#allocation16], 4
      %s98 = int_to_ptr.vmem [resolvable:$true] %s97
      %103 = dma.hbm_to_vmem [thread:$0]  %s4, 256, %s98, [#allocation15], 64, 64, 4
    $region21: #{tpu_custom_call.1} parent=1 // pred_fallthru
      _
    // Predicated region
    $region22: #{tpu_custom_call.1} parent=1 // pred_check
      _
    $region23: #{tpu_custom_call.1} parent=1 // pred_check_branch
      %105 = sbr.rel (0) target = $region25
    $region24: #{tpu_custom_call.1} parent=1 // pred_region
      %s107 = ssub.s32 32, 32
      %108 = vsyncadd [#allocation18], %s107
      %s110 = sshll.u32 [#allocation17], 4
      %s111 = int_to_ptr.vmem [resolvable:$true] %s110
      %113 = dma.hbm_to_vmem [thread:$0]  %s5, 32, %s111, [#allocation18]
    $region25: #{tpu_custom_call.1} parent=1 // pred_fallthru
      _
    // Predicated region
    $region26: #{tpu_custom_call.1} parent=1 // pred_check
      _
    $region27: #{tpu_custom_call.1} parent=1 // pred_check_branch
      %115 = sbr.rel (0) target = $region29
    $region28: #{tpu_custom_call.1} parent=1 // pred_region
      %s117 = ssub.s32 256, 256
      %118 = vsyncadd [#allocation18], %s117
      %s119 = sshll.u32 [#allocation19], 4
      %s120 = int_to_ptr.vmem [resolvable:$true] %s119
      %125 = dma.hbm_to_vmem [thread:$0]  %s6, 256, %s120, [#allocation18], 64, 64, 4
    $region29: #{tpu_custom_call.1} parent=1 // pred_fallthru
      _
    // Predicated region
    $region30: #{tpu_custom_call.1} parent=1 // pred_check
      _
    $region31: #{tpu_custom_call.1} parent=1 // pred_check_branch
      %127 = sbr.rel (0) target = $region33
    $region32: #{tpu_custom_call.1} parent=1 // pred_region
      %s129 = ssub.s32 384, 384
      %130 = vsyncadd [#allocation21], %s129
      %s131 = sshll.u32 [#allocation20], 4
      %s132 = int_to_ptr.vmem [resolvable:$true] %s131
      %137 = dma.hbm_to_vmem [thread:$0]  %s7, 384, %s132, [#allocation21], 64, 64, 4
    $region33: #{tpu_custom_call.1} parent=1 // pred_fallthru
      _
    // Predicated region
    $region34: #{tpu_custom_call.1} parent=1 // pred_check
      _
    $region35: #{tpu_custom_call.1} parent=1 // pred_check_branch
      %139 = sbr.rel (0) target = $region37
    $region36: #{tpu_custom_call.1} parent=1 // pred_region
      %s141 = ssub.s32 64, 64
      %142 = vsyncadd [#allocation21], %s141
      %s144 = sshll.u32 [#allocation22], 4
      %s145 = int_to_ptr.vmem [resolvable:$true] %s144
      %147 = dma.hbm_to_vmem [thread:$0]  %s8, 64, %s145, [#allocation21]
    $region37: #{tpu_custom_call.1} parent=1 // pred_fallthru
      _
    // Predicated region
    $region38: #{tpu_custom_call.1} parent=1 // pred_check
      _
    $region39: #{tpu_custom_call.1} parent=1 // pred_check_branch
      %149 = sbr.rel (0) target = $region41
    $region40: #{tpu_custom_call.1} parent=1 // pred_region
      %s151 = ssub.s32 256, 256
      %152 = vsyncadd [#allocation24], %s151
      %s153 = sshll.u32 [#allocation23], 4
      %s154 = int_to_ptr.vmem [resolvable:$true] %s153
      %159 = dma.hbm_to_vmem [thread:$0]  %s9, 256, %s154, [#allocation24], 64, 64, 4
    $region41: #{tpu_custom_call.1} parent=1 // pred_fallthru
      _
    // Predicated region
    $region42: #{tpu_custom_call.1} parent=1 // pred_check
      _
    $region43: #{tpu_custom_call.1} parent=1 // pred_check_branch
      %161 = sbr.rel (0) target = $region45
    $region44: #{tpu_custom_call.1} parent=1 // pred_region
      %s163 = ssub.s32 32, 32
      %164 = vsyncadd [#allocation24], %s163
      %s166 = sshll.u32 [#allocation25], 4
      %s167 = int_to_ptr.vmem [resolvable:$true] %s166
      %169 = dma.hbm_to_vmem [thread:$0]  %s10, 32, %s167, [#allocation24]
    $region45: #{tpu_custom_call.1} parent=1 // pred_fallthru
      _
    // Predicated region
    $region46: #{tpu_custom_call.1} parent=1 // pred_check
      _
    $region47: #{tpu_custom_call.1} parent=1 // pred_check_branch
      %171 = sbr.rel (0) target = $region49
    $region48: #{tpu_custom_call.1} parent=1 // pred_region
      %s173 = ssub.s32 256, 256
      %174 = vsyncadd [#allocation27], %s173
      %s175 = sshll.u32 [#allocation26], 4
      %s176 = int_to_ptr.vmem [resolvable:$true] %s175
      %181 = dma.hbm_to_vmem [thread:$0]  %s11, 256, %s176, [#allocation27], 64, 64, 4
    $region49: #{tpu_custom_call.1} parent=1 // pred_fallthru
      _
    // Predicated region
    $region50: #{tpu_custom_call.1} parent=1 // pred_check
      _
    $region51: #{tpu_custom_call.1} parent=1 // pred_check_branch
      %183 = sbr.rel (0) target = $region53
    $region52: #{tpu_custom_call.1} parent=1 // pred_region
      %s185 = ssub.s32 512, 512
      %186 = vsyncadd [#allocation27], %s185
      %s187 = sshll.u32 [#allocation28], 4
      %s188 = int_to_ptr.vmem [resolvable:$true] %s187
      %193 = dma.hbm_to_vmem [thread:$0]  %s12, 512, %s188, [#allocation27], 64, 64, 4
    $region53: #{tpu_custom_call.1} parent=1 // pred_fallthru
      _
    // Predicated region
    $region54: #{tpu_custom_call.1} parent=1 // pred_check
      _
    $region55: #{tpu_custom_call.1} parent=1 // pred_check_branch
      %195 = sbr.rel (0) target = $region57
    $region56: #{tpu_custom_call.1} parent=1 // pred_region
      %s197 = ssub.s32 64, 64
      %198 = vsyncadd [#allocation30], %s197
      %s200 = sshll.u32 [#allocation29], 4
      %s201 = int_to_ptr.vmem [resolvable:$true] %s200
      %203 = dma.hbm_to_vmem [thread:$0]  %s13, 64, %s201, [#allocation30]
    $region57: #{tpu_custom_call.1} parent=1 // pred_fallthru
      _
    // Predicated region
    $region58: #{tpu_custom_call.1} parent=1 // pred_check
      _
    $region59: #{tpu_custom_call.1} parent=1 // pred_check_branch
      %205 = sbr.rel (0) target = $region61
    $region60: #{tpu_custom_call.1} parent=1 // pred_region
      %s207 = ssub.s32 256, 256
      %208 = vsyncadd [#allocation30], %s207
      %s209 = sshll.u32 [#allocation31], 4
      %s210 = int_to_ptr.vmem [resolvable:$true] %s209
      %215 = dma.hbm_to_vmem [thread:$0]  %s14, 256, %s210, [#allocation30], 64, 64, 4
    $region61: #{tpu_custom_call.1} parent=1 // pred_fallthru
      _
    // Predicated region
    $region62: #{tpu_custom_call.1} parent=1 // pred_check
      _
    $region63: #{tpu_custom_call.1} parent=1 // pred_check_branch
      %217 = sbr.rel (0) target = $region65
    $region64: #{tpu_custom_call.1} parent=1 // pred_region
      %s219 = ssub.s32 32, 32
      %220 = vsyncadd [#allocation33], %s219
      %s222 = sshll.u32 [#allocation32], 4
      %s223 = int_to_ptr.vmem [resolvable:$true] %s222
      %225 = dma.hbm_to_vmem [thread:$0]  %s15, 32, %s223, [#allocation33]
    $region65: #{tpu_custom_call.1} parent=1 // pred_fallthru
      _
    // Predicated region
    $region66: #{tpu_custom_call.1} parent=1 // pred_check
      _
    $region67: #{tpu_custom_call.1} parent=1 // pred_check_branch
      %227 = sbr.rel (0) target = $region69
    $region68: #{tpu_custom_call.1} parent=1 // pred_region
      %s229 = ssub.s32 256, 256
      %230 = vsyncadd [#allocation33], %s229
      %s231 = sshll.u32 [#allocation34], 4
      %s232 = int_to_ptr.vmem [resolvable:$true] %s231
      %237 = dma.hbm_to_vmem [thread:$0]  %s16, 256, %s232, [#allocation33], 64, 64, 4
    $region69: #{tpu_custom_call.1} parent=1 // pred_fallthru
      _
    // Predicated region
    $region70: #{tpu_custom_call.1} parent=1 // pred_check
      _
    $region71: #{tpu_custom_call.1} parent=1 // pred_check_branch
      %239 = sbr.rel (0) target = $region73
    $region72: #{tpu_custom_call.1} parent=1 // pred_region
      %s241 = ssub.s32 384, 384
      %242 = vsyncadd [#allocation36], %s241
      %s243 = sshll.u32 [#allocation35], 4
      %s244 = int_to_ptr.vmem [resolvable:$true] %s243
      %249 = dma.hbm_to_vmem [thread:$0]  %s17, 384, %s244, [#allocation36], 64, 64, 4
    $region73: #{tpu_custom_call.1} parent=1 // pred_fallthru
      _
    // Predicated region
    $region74: #{tpu_custom_call.1} parent=1 // pred_check
      _
    $region75: #{tpu_custom_call.1} parent=1 // pred_check_branch
      %251 = sbr.rel (0) target = $region77
    $region76: #{tpu_custom_call.1} parent=1 // pred_region
      %s253 = ssub.s32 64, 64
      %254 = vsyncadd [#allocation36], %s253
      %s256 = sshll.u32 [#allocation37], 4
      %s257 = int_to_ptr.vmem [resolvable:$true] %s256
      %259 = dma.hbm_to_vmem [thread:$0]  %s18, 64, %s257, [#allocation36]
    $region77: #{tpu_custom_call.1} parent=1 // pred_fallthru
      _
    // Predicated region
    $region78: #{tpu_custom_call.1} parent=1 // pred_check
      _
    $region79: #{tpu_custom_call.1} parent=1 // pred_check_branch
      %261 = sbr.rel (0) target = $region81
    $region80: #{tpu_custom_call.1} parent=1 // pred_region
      %s263 = ssub.s32 256, 256
      %264 = vsyncadd [#allocation39], %s263
      %s265 = sshll.u32 [#allocation38], 4
      %s266 = int_to_ptr.vmem [resolvable:$true] %s265
      %271 = dma.hbm_to_vmem [thread:$0]  %s19, 256, %s266, [#allocation39], 64, 64, 4
    $region81: #{tpu_custom_call.1} parent=1 // pred_fallthru
      _
    // Predicated region
    $region82: #{tpu_custom_call.1} parent=1 // pred_check
      _
    $region83: #{tpu_custom_call.1} parent=1 // pred_check_branch
      %273 = sbr.rel (0) target = $region85
    $region84: #{tpu_custom_call.1} parent=1 // pred_region
      %s275 = ssub.s32 32, 32
      %276 = vsyncadd [#allocation39], %s275
      %s278 = sshll.u32 [#allocation40], 4
      %s279 = int_to_ptr.vmem [resolvable:$true] %s278
      %281 = dma.hbm_to_vmem [thread:$0]  %s20, 32, %s279, [#allocation39]
    $region85: #{tpu_custom_call.1} parent=1 // pred_fallthru
      _
    // Predicated region
    $region86: #{tpu_custom_call.1} parent=1 // pred_check
      _
    $region87: #{tpu_custom_call.1} parent=1 // pred_check_branch
      %283 = sbr.rel (0) target = $region89
    $region88: #{tpu_custom_call.1} parent=1 // pred_region
      %s285 = ssub.s32 256, 256
      %286 = vsyncadd [#allocation42], %s285
      %s287 = sshll.u32 [#allocation41], 4
      %s288 = int_to_ptr.vmem [resolvable:$true] %s287
      %293 = dma.hbm_to_vmem [thread:$0]  %s21, 256, %s288, [#allocation42], 64, 64, 4
    $region89: #{tpu_custom_call.1} parent=1 // pred_fallthru
      _
    // Predicated region
    $region90: #{tpu_custom_call.1} parent=1 // pred_check
      _
    $region91: #{tpu_custom_call.1} parent=1 // pred_check_branch
      %295 = sbr.rel (0) target = $region93
    $region92: #{tpu_custom_call.1} parent=1 // pred_region
      %s297 = ssub.s32 256, 256
      %298 = vsyncadd [#allocation42], %s297
      %s299 = sshll.u32 [#allocation43], 4
      %s300 = int_to_ptr.vmem [resolvable:$true] %s299
      %305 = dma.hbm_to_vmem [thread:$0]  %s22, 256, %s300, [#allocation42], 64, 64, 4
    $region93: #{tpu_custom_call.1} parent=1 // pred_fallthru
      _
    // Predicated region
    $region94: #{tpu_custom_call.1} parent=1 // pred_check
      _
    $region95: #{tpu_custom_call.1} parent=1 // pred_check_branch
      %307 = sbr.rel (0) target = $region97
    $region96: #{tpu_custom_call.1} parent=1 // pred_region
      %s309 = ssub.s32 256, 256
      %310 = vsyncadd [#allocation45], %s309
      %s311 = sshll.u32 [#allocation44], 4
      %s312 = int_to_ptr.vmem [resolvable:$true] %s311
      %317 = dma.hbm_to_vmem [thread:$0]  %s23, 256, %s312, [#allocation45], 64, 64, 4
    $region97: #{tpu_custom_call.1} parent=1 // pred_fallthru
      _
    // Predicated region
    $region98: #{tpu_custom_call.1} parent=1 // pred_check
      _
    $region99: #{tpu_custom_call.1} parent=1 // pred_check_branch
      %319 = sbr.rel (0) target = $region101
    $region100: #{tpu_custom_call.1} parent=1 // pred_region
      %320 = dma.done [#allocation9], 64
    $region101: #{tpu_custom_call.1} parent=1 // pred_fallthru
      _
    // Predicated region
    $region102: #{tpu_custom_call.1} parent=1 // pred_check
      _
    $region103: #{tpu_custom_call.1} parent=1 // pred_check_branch
      %322 = sbr.rel (0) target = $region105
    $region104: #{tpu_custom_call.1} parent=1 // pred_region
      %323 = dma.done [#allocation12], 64
    $region105: #{tpu_custom_call.1} parent=1 // pred_fallthru
      _
    // Predicated region
    $region106: #{tpu_custom_call.1} parent=1 // pred_check
      _
    $region107: #{tpu_custom_call.1} parent=1 // pred_check_branch
      %325 = sbr.rel (0) target = $region109
    $region108: #{tpu_custom_call.1} parent=1 // pred_region
      %326 = dma.done [#allocation12], 512
    $region109: #{tpu_custom_call.1} parent=1 // pred_fallthru
      _
    // Predicated region
    $region110: #{tpu_custom_call.1} parent=1 // pred_check
      _
    $region111: #{tpu_custom_call.1} parent=1 // pred_check_branch
      %328 = sbr.rel (0) target = $region113
    $region112: #{tpu_custom_call.1} parent=1 // pred_region
      %329 = dma.done [#allocation15], 64
    $region113: #{tpu_custom_call.1} parent=1 // pred_fallthru
      _
    // Predicated region
    $region114: #{tpu_custom_call.1} parent=1 // pred_check
      _
    $region115: #{tpu_custom_call.1} parent=1 // pred_check_branch
      %331 = sbr.rel (0) target = $region117
    $region116: #{tpu_custom_call.1} parent=1 // pred_region
      %332 = dma.done [#allocation15], 256
    $region117: #{tpu_custom_call.1} parent=1 // pred_fallthru
      _
    // Predicated region
    $region118: #{tpu_custom_call.1} parent=1 // pred_check
      _
    $region119: #{tpu_custom_call.1} parent=1 // pred_check_branch
      %334 = sbr.rel (0) target = $region121
    $region120: #{tpu_custom_call.1} parent=1 // pred_region
      %335 = dma.done [#allocation18], 32
    $region121: #{tpu_custom_call.1} parent=1 // pred_fallthru
      _
    // Predicated region
    $region122: #{tpu_custom_call.1} parent=1 // pred_check
      _
    $region123: #{tpu_custom_call.1} parent=1 // pred_check_branch
      %337 = sbr.rel (0) target = $region125
    $region124: #{tpu_custom_call.1} parent=1 // pred_region
      %338 = dma.done [#allocation18], 256
    $region125: #{tpu_custom_call.1} parent=1 // pred_fallthru
      _
    // Predicated region
    $region126: #{tpu_custom_call.1} parent=1 // pred_check
      _
    $region127: #{tpu_custom_call.1} parent=1 // pred_check_branch
      %340 = sbr.rel (0) target = $region129
    $region128: #{tpu_custom_call.1} parent=1 // pred_region
      %341 = dma.done [#allocation21], 384
    $region129: #{tpu_custom_call.1} parent=1 // pred_fallthru
      _
    // Predicated region
    $region130: #{tpu_custom_call.1} parent=1 // pred_check
      _
    $region131: #{tpu_custom_call.1} parent=1 // pred_check_branch
      %343 = sbr.rel (0) target = $region133
    $region132: #{tpu_custom_call.1} parent=1 // pred_region
      %344 = dma.done [#allocation21], 64
    $region133: #{tpu_custom_call.1} parent=1 // pred_fallthru
      _
    // Predicated region
    $region134: #{tpu_custom_call.1} parent=1 // pred_check
      _
    $region135: #{tpu_custom_call.1} parent=1 // pred_check_branch
      %346 = sbr.rel (0) target = $region137
    $region136: #{tpu_custom_call.1} parent=1 // pred_region
      %347 = dma.done [#allocation24], 256
    $region137: #{tpu_custom_call.1} parent=1 // pred_fallthru
      _
    // Predicated region
    $region138: #{tpu_custom_call.1} parent=1 // pred_check
      _
    $region139: #{tpu_custom_call.1} parent=1 // pred_check_branch
      %349 = sbr.rel (0) target = $region141
    $region140: #{tpu_custom_call.1} parent=1 // pred_region
      %350 = dma.done [#allocation24], 32
    $region141: #{tpu_custom_call.1} parent=1 // pred_fallthru
      _
    // Predicated region
    $region142: #{tpu_custom_call.1} parent=1 // pred_check
      _
    $region143: #{tpu_custom_call.1} parent=1 // pred_check_branch
      %352 = sbr.rel (0) target = $region145
    $region144: #{tpu_custom_call.1} parent=1 // pred_region
      %353 = dma.done [#allocation27], 256
    $region145: #{tpu_custom_call.1} parent=1 // pred_fallthru
      _
    // Predicated region
    $region146: #{tpu_custom_call.1} parent=1 // pred_check
      _
    $region147: #{tpu_custom_call.1} parent=1 // pred_check_branch
      %355 = sbr.rel (0) target = $region149
    $region148: #{tpu_custom_call.1} parent=1 // pred_region
      %356 = dma.done [#allocation27], 512
    $region149: #{tpu_custom_call.1} parent=1 // pred_fallthru
      _
    // Predicated region
    $region150: #{tpu_custom_call.1} parent=1 // pred_check
      _
    $region151: #{tpu_custom_call.1} parent=1 // pred_check_branch
      %358 = sbr.rel (0) target = $region153
    $region152: #{tpu_custom_call.1} parent=1 // pred_region
      %359 = dma.done [#allocation30], 64
    $region153: #{tpu_custom_call.1} parent=1 // pred_fallthru
      _
    // Predicated region
    $region154: #{tpu_custom_call.1} parent=1 // pred_check
      _
    $region155: #{tpu_custom_call.1} parent=1 // pred_check_branch
      %361 = sbr.rel (0) target = $region157
    $region156: #{tpu_custom_call.1} parent=1 // pred_region
      %362 = dma.done [#allocation30], 256
    $region157: #{tpu_custom_call.1} parent=1 // pred_fallthru
      _
    // Predicated region
    $region158: #{tpu_custom_call.1} parent=1 // pred_check
      _
    $region159: #{tpu_custom_call.1} parent=1 // pred_check_branch
      %364 = sbr.rel (0) target = $region161
    $region160: #{tpu_custom_call.1} parent=1 // pred_region
      %365 = dma.done [#allocation33], 32
    $region161: #{tpu_custom_call.1} parent=1 // pred_fallthru
      _
    // Predicated region
    $region162: #{tpu_custom_call.1} parent=1 // pred_check
      _
    $region163: #{tpu_custom_call.1} parent=1 // pred_check_branch
      %367 = sbr.rel (0) target = $region165
    $region164: #{tpu_custom_call.1} parent=1 // pred_region
      %368 = dma.done [#allocation33], 256
    $region165: #{tpu_custom_call.1} parent=1 // pred_fallthru
      _
    // Predicated region
    $region166: #{tpu_custom_call.1} parent=1 // pred_check
      _
    $region167: #{tpu_custom_call.1} parent=1 // pred_check_branch
      %370 = sbr.rel (0) target = $region169
    $region168: #{tpu_custom_call.1} parent=1 // pred_region
      %371 = dma.done [#allocation36], 384
    $region169: #{tpu_custom_call.1} parent=1 // pred_fallthru
      _
    // Predicated region
    $region170: #{tpu_custom_call.1} parent=1 // pred_check
      _
    $region171: #{tpu_custom_call.1} parent=1 // pred_check_branch
      %373 = sbr.rel (0) target = $region173
    $region172: #{tpu_custom_call.1} parent=1 // pred_region
      %374 = dma.done [#allocation36], 64
    $region173: #{tpu_custom_call.1} parent=1 // pred_fallthru
      _
    // Predicated region
    $region174: #{tpu_custom_call.1} parent=1 // pred_check
      _
    $region175: #{tpu_custom_call.1} parent=1 // pred_check_branch
      %376 = sbr.rel (0) target = $region177
    $region176: #{tpu_custom_call.1} parent=1 // pred_region
      %377 = dma.done [#allocation39], 256
    $region177: #{tpu_custom_call.1} parent=1 // pred_fallthru
      _
    // Predicated region
    $region178: #{tpu_custom_call.1} parent=1 // pred_check
      _
    $region179: #{tpu_custom_call.1} parent=1 // pred_check_branch
      %379 = sbr.rel (0) target = $region181
    $region180: #{tpu_custom_call.1} parent=1 // pred_region
      %380 = dma.done [#allocation39], 32
    $region181: #{tpu_custom_call.1} parent=1 // pred_fallthru
      _
    // Predicated region
    $region182: #{tpu_custom_call.1} parent=1 // pred_check
      _
    $region183: #{tpu_custom_call.1} parent=1 // pred_check_branch
      %382 = sbr.rel (0) target = $region185
    $region184: #{tpu_custom_call.1} parent=1 // pred_region
      %383 = dma.done [#allocation42], 256
    $region185: #{tpu_custom_call.1} parent=1 // pred_fallthru
      _
    // Predicated region
    $region186: #{tpu_custom_call.1} parent=1 // pred_check
      _
    $region187: #{tpu_custom_call.1} parent=1 // pred_check_branch
      %385 = sbr.rel (0) target = $region189
    $region188: #{tpu_custom_call.1} parent=1 // pred_region
      %386 = dma.done [#allocation42], 256
    $region189: #{tpu_custom_call.1} parent=1 // pred_fallthru
      _
    // Predicated region
    $region190: #{tpu_custom_call.1} parent=1 // pred_check
      _
    $region191: #{tpu_custom_call.1} parent=1 // pred_check_branch
      %388 = sbr.rel (0) target = $region193
    $region192: #{tpu_custom_call.1} parent=1 // pred_region
      %389 = dma.done [#allocation45], 256
    $region193: #{tpu_custom_call.1} parent=1 // pred_fallthru
      _
    %p391 = scmp.eq.s32.totalorder 0, 0
    // Predicated region
    $region194: #{tpu_custom_call.1} parent=1 // pred_check
      %p392 = pneg %p391
    $region195: #{tpu_custom_call.1} parent=1 // pred_check_branch
      %394 = sbr.rel (%p392) target = $region197
    $region196: #{tpu_custom_call.1} parent=1 // pred_region
      %v395 = vld [vmem:[#allocation8] sm:$0xf]
      %v396 = vld [vmem:[#allocation11] sm:$0xf]
      %v397 = vld [vmem:[#allocation14] sm:$0x7]
      %v398 = vld [vmem:[#allocation17] sm:$0x3]
      %v399 = vld [vmem:[#allocation13] sm:$0xf]
      %v400 = vld [vmem:[#allocation13 + $0x4] sm:$0xf]
      %v401 = vld [vmem:[#allocation13 + $0x8] sm:$0xf]
      %v402 = vld [vmem:[#allocation13 + $0xc] sm:$0xf]
      %v403 = vld [vmem:[#allocation13 + $0x10] sm:$0xf]
      %v404 = vld [vmem:[#allocation13 + $0x14] sm:$0xf]
      %v405 = vld [vmem:[#allocation13 + $0x18] sm:$0xf]
      %v406 = vld [vmem:[#allocation13 + $0x1c] sm:$0xf]
      %v407 = vlaneseq
      %v408 = vshrl.u32 %v407, 7
      %v409 = vsub.s32 0, %v408
      %v410 = vrot.slane %v397, %v409
      %v419 = vunpack.c.l.b16 %v399
      %v420 = vunpack.c.l.b16 %v400
      %v421 = vunpack.c.l.b16 %v401
      %v422 = vunpack.c.l.b16 %v402
      %v423 = vunpack.c.l.b16 %v403
      %v424 = vunpack.c.l.b16 %v404
      %v425 = vunpack.c.l.b16 %v405
      %v426 = vunpack.c.l.b16 %v406
      %v427 = vpack.c.b16 %v420, %v419
      %v428 = vpack.c.b16 %v422, %v421
      %v429 = vpack.c.b16 %v424, %v423
      %v430 = vpack.c.b16 %v426, %v425
      %vm435 = vcmask 523264
      %v437 = vsel %vm435, %v395, 0
      %439 = vmatprep.subr.bf16.mxu0 0
      %440 = vmatpush1.bf16.msra.mxu0 %v427
      %441 = vmatprep.subr.bf16.mxu0 0
      %442 = vmatpush1.bf16.msra.mxu0 %v428
      %443 = vmatprep.subr.bf16.mxu0 0
      %444 = vmatpush1.bf16.msra.mxu0 %v429
      %445 = vmatprep.subr.bf16.mxu0 0
      %446 = vmatpush1.bf16.msra.mxu0 %v430
      %447 = vmatprep.subr.bf16.mxu0 0
      %448 = vmatpush1.bf16.msra.mxu0 0
      %449 = vmatprep.subr.bf16.mxu0 0
      %450 = vmatpush1.bf16.msra.mxu0 0
      %451 = vmatprep.subr.bf16.mxu0 0
      %452 = vmatpush1.bf16.msra.mxu0 0
      %453 = vmatprep.subr.bf16.mxu0 0
      %454 = vmatpush1.bf16.msra.mxu0 0
      %455 = vmatprep.subr.bf16.mxu0 0
      %456 = vmatpush1.bf16.msra.mxu0 0
      %457 = vmatprep.subr.bf16.mxu0 0
      %458 = vmatpush1.bf16.msra.mxu0 0
      %459 = vmatprep.subr.bf16.mxu0 0
      %460 = vmatpush1.bf16.msra.mxu0 0
      %461 = vmatprep.subr.bf16.mxu0 0
      %462 = vmatpush1.bf16.msra.mxu0 0
      %463 = vmatprep.subr.bf16.mxu0 0
      %464 = vmatpush1.bf16.msra.mxu0 0
      %465 = vmatprep.subr.bf16.mxu0 0
      %466 = vmatpush1.bf16.msra.mxu0 0
      %467 = vmatprep.subr.bf16.mxu0 0
      %468 = vmatpush1.bf16.msra.mxu0 0
      %469 = vmatprep.subr.bf16.mxu0 0
      %470 = vmatpush1.bf16.msra.mxu0 0
      %471 = vmatprep.mubr.bf16.mxu0 0
      %472 = vmatmul.mubr.bf16.gmra.mrb[0].mxu0 %v437
      %v473 = vpop.f32.mrb[0].mxu0
      %v474 = vadd.f32 %v410, %v473
      %v475 = vpop.f32.mrb[0].mxu0
      %v476 = vpop.f32.mrb[0].mxu0
      %v477 = vpop.f32.mrb[0].mxu0
      %478 = vdwg.mxu0
      %vm479 = vcmask 261120
      %v480 = vsel %vm479, %v474, 0.0
      %481 = vadd.xlane.f32.xlu0 %v480
      %v482 = vpop.xlane.xlu0 %481
      %v483 = vrcp.pop 32.0
      %v484 = vmul.f32 %v482, %v483
      %v485 = vsub.f32 %v474, %v484
      %v486 = vmul.f32 %v485, %v485
      %v487 = vsel %vm479, %v486, 0.0
      %488 = vadd.xlane.f32.xlu0 %v487
      %v489 = vpop.xlane.xlu0 %488
      %v490 = vmul.f32 %v489, %v483
      %v491 = vadd.f32 %v490, 1e-05
      %v492 = vrsqrt.pop %v491
      %v493 = vmul.f32 %v485, %v492
      %v494 = vlaneseq
      %v495 = vshrl.u32 %v494, 7
      %v496 = vsub.s32 1, %v495
      %v497 = vrot.slane %v397, %v496
      %v498 = vmul.f32 %v493, %v497
      %v499 = vlaneseq
      %v500 = vshrl.u32 %v499, 7
      %v501 = vsub.s32 2, %v500
      %v502 = vrot.slane %v397, %v501
      %v503 = vadd.f32 %v498, %v502
      %v504 = vxor.u32 %v503, 2147483648
      %v505 = vmul.f32 %v504, 1.442695
      %v506 = vpow.pop %v505
      %v507 = vadd.f32 %v506, 1.0
      %v508 = vrcp.pop %v507
      %v509 = vmul.f32 1.0, %v508
      %v510 = vmul.f32 %v503, %v509
      %v511 = vpack.c.bf16 %v510, %v510
      %v512 = vld [vmem:[#allocation16] sm:$0xf]
      %v513 = vld [vmem:[#allocation16 + $0x4] sm:$0xf]
      %v514 = vld [vmem:[#allocation16 + $0x8] sm:$0xf]
      %v515 = vld [vmem:[#allocation16 + $0xc] sm:$0xf]
      %v516 = vlaneseq
      %v517 = vshrl.u32 %v516, 7
      %v518 = vsub.s32 0, %v517
      %v519 = vrot.slane %v398, %v518
      %v524 = vunpack.c.l.b16 %v512
      %v525 = vunpack.c.l.b16 %v513
      %v526 = vunpack.c.l.b16 %v514
      %v527 = vunpack.c.l.b16 %v515
      %v528 = vpack.c.b16 %v525, %v524
      %v529 = vpack.c.b16 %v527, %v526
      %v533 = vsel %vm479, %v511, 0
      %535 = vmatprep.subr.bf16.mxu0 0
      %536 = vmatpush1.bf16.msra.mxu0 %v528
      %537 = vmatprep.subr.bf16.mxu0 0
      %538 = vmatpush1.bf16.msra.mxu0 %v529
      %539 = vmatprep.subr.bf16.mxu0 0
      %540 = vmatpush1.bf16.msra.mxu0 0
      %541 = vmatprep.subr.bf16.mxu0 0
      %542 = vmatpush1.bf16.msra.mxu0 0
      %543 = vmatprep.subr.bf16.mxu0 0
      %544 = vmatpush1.bf16.msra.mxu0 0
      %545 = vmatprep.subr.bf16.mxu0 0
      %546 = vmatpush1.bf16.msra.mxu0 0
      %547 = vmatprep.subr.bf16.mxu0 0
      %548 = vmatpush1.bf16.msra.mxu0 0
      %549 = vmatprep.subr.bf16.mxu0 0
      %550 = vmatpush1.bf16.msra.mxu0 0
      %551 = vmatprep.subr.bf16.mxu0 0
      %552 = vmatpush1.bf16.msra.mxu0 0
      %553 = vmatprep.subr.bf16.mxu0 0
      %554 = vmatpush1.bf16.msra.mxu0 0
      %555 = vmatprep.subr.bf16.mxu0 0
      %556 = vmatpush1.bf16.msra.mxu0 0
      %557 = vmatprep.subr.bf16.mxu0 0
      %558 = vmatpush1.bf16.msra.mxu0 0
      %559 = vmatprep.subr.bf16.mxu0 0
      %560 = vmatpush1.bf16.msra.mxu0 0
      %561 = vmatprep.subr.bf16.mxu0 0
      %562 = vmatpush1.bf16.msra.mxu0 0
      %563 = vmatprep.subr.bf16.mxu0 0
      %564 = vmatpush1.bf16.msra.mxu0 0
      %565 = vmatprep.subr.bf16.mxu0 0
      %566 = vmatpush1.bf16.msra.mxu0 0
      %567 = vmatprep.mubr.bf16.mxu0 0
      %568 = vmatmul.mubr.bf16.gmra.mrb[0].mxu0 %v533
      %v569 = vpop.f32.mrb[0].mxu0
      %v570 = vadd.f32 %v519, %v569
      %v571 = vpop.f32.mrb[0].mxu0
      %v572 = vpop.f32.mrb[0].mxu0
      %v573 = vpop.f32.mrb[0].mxu0
      %574 = vdwg.mxu0
      %v575 = vpack.c.bf16 %v570, %v570
      %v576 = vld [vmem:[#allocation19] sm:$0xf]
      %v577 = vld [vmem:[#allocation19 + $0x4] sm:$0xf]
      %v578 = vld [vmem:[#allocation19 + $0x8] sm:$0xf]
      %v579 = vld [vmem:[#allocation19 + $0xc] sm:$0xf]
      %v580 = vlaneseq
      %v581 = vshrl.u32 %v580, 7
      %v582 = vsub.s32 1, %v581
      %v583 = vrot.slane %v398, %v582
      %v588 = vunpack.c.l.b16 %v576
      %v589 = vunpack.c.l.b16 %v577
      %v590 = vunpack.c.l.b16 %v578
      %v591 = vunpack.c.l.b16 %v579
      %v592 = vpack.c.b16 %v589, %v588
      %v593 = vpack.c.b16 %v591, %v590
      %v597 = vsel %vm479, %v575, 0
      %599 = vmatprep.subr.bf16.mxu0 0
      %600 = vmatpush1.bf16.msra.mxu0 %v592
      %601 = vmatprep.subr.bf16.mxu0 0
      %602 = vmatpush1.bf16.msra.mxu0 %v593
      %603 = vmatprep.subr.bf16.mxu0 0
      %604 = vmatpush1.bf16.msra.mxu0 0
      %605 = vmatprep.subr.bf16.mxu0 0
      %606 = vmatpush1.bf16.msra.mxu0 0
      %607 = vmatprep.subr.bf16.mxu0 0
      %608 = vmatpush1.bf16.msra.mxu0 0
      %609 = vmatprep.subr.bf16.mxu0 0
      %610 = vmatpush1.bf16.msra.mxu0 0
      %611 = vmatprep.subr.bf16.mxu0 0
      %612 = vmatpush1.bf16.msra.mxu0 0
      %613 = vmatprep.subr.bf16.mxu0 0
      %614 = vmatpush1.bf16.msra.mxu0 0
      %615 = vmatprep.subr.bf16.mxu0 0
      %616 = vmatpush1.bf16.msra.mxu0 0
      %617 = vmatprep.subr.bf16.mxu0 0
      %618 = vmatpush1.bf16.msra.mxu0 0
      %619 = vmatprep.subr.bf16.mxu0 0
      %620 = vmatpush1.bf16.msra.mxu0 0
      %621 = vmatprep.subr.bf16.mxu0 0
      %622 = vmatpush1.bf16.msra.mxu0 0
      %623 = vmatprep.subr.bf16.mxu0 0
      %624 = vmatpush1.bf16.msra.mxu0 0
      %625 = vmatprep.subr.bf16.mxu0 0
      %626 = vmatpush1.bf16.msra.mxu0 0
      %627 = vmatprep.subr.bf16.mxu0 0
      %628 = vmatpush1.bf16.msra.mxu0 0
      %629 = vmatprep.subr.bf16.mxu0 0
      %630 = vmatpush1.bf16.msra.mxu0 0
      %631 = vmatprep.mubr.bf16.mxu0 0
      %632 = vmatmul.mubr.bf16.gmra.mrb[0].mxu0 %v597
      %v633 = vpop.f32.mrb[0].mxu0
      %v634 = vadd.f32 %v583, %v633
      %v635 = vpop.f32.mrb[0].mxu0
      %v636 = vpop.f32.mrb[0].mxu0
      %v637 = vpop.f32.mrb[0].mxu0
      %638 = vdwg.mxu0
      %v639 = vmul.f32 %v634, %v634
      %v640 = vsel %vm479, %v639, 0.0
      %641 = vadd.xlane.f32.xlu0 %v640
      %v642 = vpop.xlane.xlu0 %641
      %v643 = vmax.f32 %v642, 1e-24
      %v644 = vrsqrt.pop %v643
      %v645 = vmul.f32 %v634, %v644
      %v646 = vld [vmem:[#allocation22] sm:$0x7]
      %v647 = vld [vmem:[#allocation25] sm:$0x3]
      %v648 = vld [vmem:[#allocation20] sm:$0xf]
      %v649 = vld [vmem:[#allocation20 + $0x4] sm:$0xf]
      %v650 = vld [vmem:[#allocation20 + $0x8] sm:$0xf]
      %v651 = vld [vmem:[#allocation20 + $0xc] sm:$0xf]
      %v652 = vld [vmem:[#allocation20 + $0x10] sm:$0xf]
      %v653 = vld [vmem:[#allocation20 + $0x14] sm:$0xf]
      %v654 = vlaneseq
      %v655 = vshrl.u32 %v654, 7
      %v656 = vsub.s32 0, %v655
      %v657 = vrot.slane %v646, %v656
      %v664 = vunpack.c.l.b16 %v648
      %v665 = vunpack.c.l.b16 %v649
      %v666 = vunpack.c.l.b16 %v650
      %v667 = vunpack.c.l.b16 %v651
      %v668 = vunpack.c.l.b16 %v652
      %v669 = vunpack.c.l.b16 %v653
      %v670 = vpack.c.b16 %v665, %v664
      %v671 = vpack.c.b16 %v667, %v666
      %v672 = vpack.c.b16 %v669, %v668
      %vm676 = vcmask 392192
      %v678 = vsel %vm676, %v396, 0
      %680 = vmatprep.subr.bf16.mxu0 0
      %681 = vmatpush1.bf16.msra.mxu0 %v670
      %682 = vmatprep.subr.bf16.mxu0 0
      %683 = vmatpush1.bf16.msra.mxu0 %v671
      %684 = vmatprep.subr.bf16.mxu0 0
      %685 = vmatpush1.bf16.msra.mxu0 %v672
      %686 = vmatprep.subr.bf16.mxu0 0
      %687 = vmatpush1.bf16.msra.mxu0 0
      %688 = vmatprep.subr.bf16.mxu0 0
      %689 = vmatpush1.bf16.msra.mxu0 0
      %690 = vmatprep.subr.bf16.mxu0 0
      %691 = vmatpush1.bf16.msra.mxu0 0
      %692 = vmatprep.subr.bf16.mxu0 0
      %693 = vmatpush1.bf16.msra.mxu0 0
      %694 = vmatprep.subr.bf16.mxu0 0
      %695 = vmatpush1.bf16.msra.mxu0 0
      %696 = vmatprep.subr.bf16.mxu0 0
      %697 = vmatpush1.bf16.msra.mxu0 0
      %698 = vmatprep.subr.bf16.mxu0 0
      %699 = vmatpush1.bf16.msra.mxu0 0
      %700 = vmatprep.subr.bf16.mxu0 0
      %701 = vmatpush1.bf16.msra.mxu0 0
      %702 = vmatprep.subr.bf16.mxu0 0
      %703 = vmatpush1.bf16.msra.mxu0 0
      %704 = vmatprep.subr.bf16.mxu0 0
      %705 = vmatpush1.bf16.msra.mxu0 0
      %706 = vmatprep.subr.bf16.mxu0 0
      %707 = vmatpush1.bf16.msra.mxu0 0
      %708 = vmatprep.subr.bf16.mxu0 0
      %709 = vmatpush1.bf16.msra.mxu0 0
      %710 = vmatprep.subr.bf16.mxu0 0
      %711 = vmatpush1.bf16.msra.mxu0 0
      %712 = vmatprep.mubr.bf16.mxu0 0
      %713 = vmatmul.mubr.bf16.gmra.mrb[0].mxu0 %v678
      %v714 = vpop.f32.mrb[0].mxu0
      %v715 = vadd.f32 %v657, %v714
      %v716 = vpop.f32.mrb[0].mxu0
      %v717 = vpop.f32.mrb[0].mxu0
      %v718 = vpop.f32.mrb[0].mxu0
      %719 = vdwg.mxu0
      %v720 = vsel %vm479, %v715, 0.0
      %721 = vadd.xlane.f32.xlu0 %v720
      %v722 = vpop.xlane.xlu0 %721
      %v723 = vmul.f32 %v722, %v483
      %v724 = vsub.f32 %v715, %v723
      %v725 = vmul.f32 %v724, %v724
      %v726 = vsel %vm479, %v725, 0.0
      %727 = vadd.xlane.f32.xlu0 %v726
      %v728 = vpop.xlane.xlu0 %727
      %v729 = vmul.f32 %v728, %v483
      %v730 = vadd.f32 %v729, 1e-05
      %v731 = vrsqrt.pop %v730
      %v732 = vmul.f32 %v724, %v731
      %v733 = vlaneseq
      %v734 = vshrl.u32 %v733, 7
      %v735 = vsub.s32 1, %v734
      %v736 = vrot.slane %v646, %v735
      %v737 = vmul.f32 %v732, %v736
      %v738 = vlaneseq
      %v739 = vshrl.u32 %v738, 7
      %v740 = vsub.s32 2, %v739
      %v741 = vrot.slane %v646, %v740
      %v742 = vadd.f32 %v737, %v741
      %v743 = vxor.u32 %v742, 2147483648
      %v744 = vmul.f32 %v743, 1.442695
      %v745 = vpow.pop %v744
      %v746 = vadd.f32 %v745, 1.0
      %v747 = vrcp.pop %v746
      %v748 = vmul.f32 1.0, %v747
      %v749 = vmul.f32 %v742, %v748
      %v750 = vpack.c.bf16 %v749, %v749
      %v751 = vld [vmem:[#allocation23] sm:$0xf]
      %v752 = vld [vmem:[#allocation23 + $0x4] sm:$0xf]
      %v753 = vld [vmem:[#allocation23 + $0x8] sm:$0xf]
      %v754 = vld [vmem:[#allocation23 + $0xc] sm:$0xf]
      %v755 = vlaneseq
      %v756 = vshrl.u32 %v755, 7
      %v757 = vsub.s32 0, %v756
      %v758 = vrot.slane %v647, %v757
      %v763 = vunpack.c.l.b16 %v751
      %v764 = vunpack.c.l.b16 %v752
      %v765 = vunpack.c.l.b16 %v753
      %v766 = vunpack.c.l.b16 %v754
      %v767 = vpack.c.b16 %v764, %v763
      %v768 = vpack.c.b16 %v766, %v765
      %v772 = vsel %vm479, %v750, 0
      %774 = vmatprep.subr.bf16.mxu0 0
      %775 = vmatpush1.bf16.msra.mxu0 %v767
      %776 = vmatprep.subr.bf16.mxu0 0
      %777 = vmatpush1.bf16.msra.mxu0 %v768
      %778 = vmatprep.subr.bf16.mxu0 0
      %779 = vmatpush1.bf16.msra.mxu0 0
      %780 = vmatprep.subr.bf16.mxu0 0
      %781 = vmatpush1.bf16.msra.mxu0 0
      %782 = vmatprep.subr.bf16.mxu0 0
      %783 = vmatpush1.bf16.msra.mxu0 0
      %784 = vmatprep.subr.bf16.mxu0 0
      %785 = vmatpush1.bf16.msra.mxu0 0
      %786 = vmatprep.subr.bf16.mxu0 0
      %787 = vmatpush1.bf16.msra.mxu0 0
      %788 = vmatprep.subr.bf16.mxu0 0
      %789 = vmatpush1.bf16.msra.mxu0 0
      %790 = vmatprep.subr.bf16.mxu0 0
      %791 = vmatpush1.bf16.msra.mxu0 0
      %792 = vmatprep.subr.bf16.mxu0 0
      %793 = vmatpush1.bf16.msra.mxu0 0
      %794 = vmatprep.subr.bf16.mxu0 0
      %795 = vmatpush1.bf16.msra.mxu0 0
      %796 = vmatprep.subr.bf16.mxu0 0
      %797 = vmatpush1.bf16.msra.mxu0 0
      %798 = vmatprep.subr.bf16.mxu0 0
      %799 = vmatpush1.bf16.msra.mxu0 0
      %800 = vmatprep.subr.bf16.mxu0 0
      %801 = vmatpush1.bf16.msra.mxu0 0
      %802 = vmatprep.subr.bf16.mxu0 0
      %803 = vmatpush1.bf16.msra.mxu0 0
      %804 = vmatprep.subr.bf16.mxu0 0
      %805 = vmatpush1.bf16.msra.mxu0 0
      %806 = vmatprep.mubr.bf16.mxu0 0
      %807 = vmatmul.mubr.bf16.gmra.mrb[0].mxu0 %v772
      %v808 = vpop.f32.mrb[0].mxu0
      %v809 = vadd.f32 %v758, %v808
      %v810 = vpop.f32.mrb[0].mxu0
      %v811 = vpop.f32.mrb[0].mxu0
      %v812 = vpop.f32.mrb[0].mxu0
      %813 = vdwg.mxu0
      %v814 = vpack.c.bf16 %v809, %v809
      %v815 = vld [vmem:[#allocation26] sm:$0xf]
      %v816 = vld [vmem:[#allocation26 + $0x4] sm:$0xf]
      %v817 = vld [vmem:[#allocation26 + $0x8] sm:$0xf]
      %v818 = vld [vmem:[#allocation26 + $0xc] sm:$0xf]
      %v819 = vlaneseq
      %v820 = vshrl.u32 %v819, 7
      %v821 = vsub.s32 1, %v820
      %v822 = vrot.slane %v647, %v821
      %v827 = vunpack.c.l.b16 %v815
      %v828 = vunpack.c.l.b16 %v816
      %v829 = vunpack.c.l.b16 %v817
      %v830 = vunpack.c.l.b16 %v818
      %v831 = vpack.c.b16 %v828, %v827
      %v832 = vpack.c.b16 %v830, %v829
      %v836 = vsel %vm479, %v814, 0
      %838 = vmatprep.subr.bf16.mxu0 0
      %839 = vmatpush1.bf16.msra.mxu0 %v831
      %840 = vmatprep.subr.bf16.mxu0 0
      %841 = vmatpush1.bf16.msra.mxu0 %v832
      %842 = vmatprep.subr.bf16.mxu0 0
      %843 = vmatpush1.bf16.msra.mxu0 0
      %844 = vmatprep.subr.bf16.mxu0 0
      %845 = vmatpush1.bf16.msra.mxu0 0
      %846 = vmatprep.subr.bf16.mxu0 0
      %847 = vmatpush1.bf16.msra.mxu0 0
      %848 = vmatprep.subr.bf16.mxu0 0
      %849 = vmatpush1.bf16.msra.mxu0 0
      %850 = vmatprep.subr.bf16.mxu0 0
      %851 = vmatpush1.bf16.msra.mxu0 0
      %852 = vmatprep.subr.bf16.mxu0 0
      %853 = vmatpush1.bf16.msra.mxu0 0
      %854 = vmatprep.subr.bf16.mxu0 0
      %855 = vmatpush1.bf16.msra.mxu0 0
      %856 = vmatprep.subr.bf16.mxu0 0
      %857 = vmatpush1.bf16.msra.mxu0 0
      %858 = vmatprep.subr.bf16.mxu0 0
      %859 = vmatpush1.bf16.msra.mxu0 0
      %860 = vmatprep.subr.bf16.mxu0 0
      %861 = vmatpush1.bf16.msra.mxu0 0
      %862 = vmatprep.subr.bf16.mxu0 0
      %863 = vmatpush1.bf16.msra.mxu0 0
      %864 = vmatprep.subr.bf16.mxu0 0
      %865 = vmatpush1.bf16.msra.mxu0 0
      %866 = vmatprep.subr.bf16.mxu0 0
      %867 = vmatpush1.bf16.msra.mxu0 0
      %868 = vmatprep.subr.bf16.mxu0 0
      %869 = vmatpush1.bf16.msra.mxu0 0
      %870 = vmatprep.mubr.bf16.mxu0 0
      %871 = vmatmul.mubr.bf16.gmra.mrb[0].mxu0 %v836
      %v872 = vpop.f32.mrb[0].mxu0
      %v873 = vadd.f32 %v822, %v872
      %v874 = vpop.f32.mrb[0].mxu0
      %v875 = vpop.f32.mrb[0].mxu0
      %v876 = vpop.f32.mrb[0].mxu0
      %877 = vdwg.mxu0
      %v878 = vmul.f32 %v873, %v873
      %v879 = vsel %vm479, %v878, 0.0
      %880 = vadd.xlane.f32.xlu0 %v879
      %v881 = vpop.xlane.xlu0 %880
      %v882 = vmax.f32 %v881, 1e-24
      %v883 = vrsqrt.pop %v882
      %v884 = vmul.f32 %v873, %v883
      %v885 = vld [vmem:[#allocation29] sm:$0x7]
      %v886 = vld [vmem:[#allocation32] sm:$0x3]
      %v887 = vld [vmem:[#allocation28] sm:$0xf]
      %v888 = vld [vmem:[#allocation28 + $0x4] sm:$0xf]
      %v889 = vld [vmem:[#allocation28 + $0x8] sm:$0xf]
      %v890 = vld [vmem:[#allocation28 + $0xc] sm:$0xf]
      %v891 = vld [vmem:[#allocation28 + $0x10] sm:$0xf]
      %v892 = vld [vmem:[#allocation28 + $0x14] sm:$0xf]
      %v893 = vld [vmem:[#allocation28 + $0x18] sm:$0xf]
      %v894 = vld [vmem:[#allocation28 + $0x1c] sm:$0xf]
      %v895 = vlaneseq
      %v896 = vshrl.u32 %v895, 7
      %v897 = vsub.s32 0, %v896
      %v898 = vrot.slane %v885, %v897
      %v907 = vunpack.c.l.b16 %v887
      %v908 = vunpack.c.l.b16 %v888
      %v909 = vunpack.c.l.b16 %v889
      %v910 = vunpack.c.l.b16 %v890
      %v911 = vunpack.c.l.b16 %v891
      %v912 = vunpack.c.l.b16 %v892
      %v913 = vunpack.c.l.b16 %v893
      %v914 = vunpack.c.l.b16 %v894
      %v915 = vpack.c.b16 %v908, %v907
      %v916 = vpack.c.b16 %v910, %v909
      %v917 = vpack.c.b16 %v912, %v911
      %v918 = vpack.c.b16 %v914, %v913
      %923 = vmatprep.subr.bf16.mxu0 0
      %924 = vmatpush1.bf16.msra.mxu0 %v915
      %925 = vmatprep.subr.bf16.mxu0 0
      %926 = vmatpush1.bf16.msra.mxu0 %v916
      %927 = vmatprep.subr.bf16.mxu0 0
      %928 = vmatpush1.bf16.msra.mxu0 %v917
      %929 = vmatprep.subr.bf16.mxu0 0
      %930 = vmatpush1.bf16.msra.mxu0 %v918
      %931 = vmatprep.subr.bf16.mxu0 0
      %932 = vmatpush1.bf16.msra.mxu0 0
      %933 = vmatprep.subr.bf16.mxu0 0
      %934 = vmatpush1.bf16.msra.mxu0 0
      %935 = vmatprep.subr.bf16.mxu0 0
      %936 = vmatpush1.bf16.msra.mxu0 0
      %937 = vmatprep.subr.bf16.mxu0 0
      %938 = vmatpush1.bf16.msra.mxu0 0
      %939 = vmatprep.subr.bf16.mxu0 0
      %940 = vmatpush1.bf16.msra.mxu0 0
      %941 = vmatprep.subr.bf16.mxu0 0
      %942 = vmatpush1.bf16.msra.mxu0 0
      %943 = vmatprep.subr.bf16.mxu0 0
      %944 = vmatpush1.bf16.msra.mxu0 0
      %945 = vmatprep.subr.bf16.mxu0 0
      %946 = vmatpush1.bf16.msra.mxu0 0
      %947 = vmatprep.subr.bf16.mxu0 0
      %948 = vmatpush1.bf16.msra.mxu0 0
      %949 = vmatprep.subr.bf16.mxu0 0
      %950 = vmatpush1.bf16.msra.mxu0 0
      %951 = vmatprep.subr.bf16.mxu0 0
      %952 = vmatpush1.bf16.msra.mxu0 0
      %953 = vmatprep.subr.bf16.mxu0 0
      %954 = vmatpush1.bf16.msra.mxu0 0
      %955 = vmatprep.mubr.bf16.mxu0 0
      %956 = vmatmul.mubr.bf16.gmra.mrb[0].mxu0 %v437
      %v957 = vpop.f32.mrb[0].mxu0
      %v958 = vadd.f32 %v898, %v957
      %v959 = vpop.f32.mrb[0].mxu0
      %v960 = vpop.f32.mrb[0].mxu0
      %v961 = vpop.f32.mrb[0].mxu0
      %962 = vdwg.mxu0
      %v963 = vsel %vm479, %v958, 0.0
      %964 = vadd.xlane.f32.xlu0 %v963
      %v965 = vpop.xlane.xlu0 %964
      %v966 = vmul.f32 %v965, %v483
      %v967 = vsub.f32 %v958, %v966
      %v968 = vmul.f32 %v967, %v967
      %v969 = vsel %vm479, %v968, 0.0
      %970 = vadd.xlane.f32.xlu0 %v969
      %v971 = vpop.xlane.xlu0 %970
      %v972 = vmul.f32 %v971, %v483
      %v973 = vadd.f32 %v972, 1e-05
      %v974 = vrsqrt.pop %v973
      %v975 = vmul.f32 %v967, %v974
      %v976 = vlaneseq
      %v977 = vshrl.u32 %v976, 7
      %v978 = vsub.s32 1, %v977
      %v979 = vrot.slane %v885, %v978
      %v980 = vmul.f32 %v975, %v979
      %v981 = vlaneseq
      %v982 = vshrl.u32 %v981, 7
      %v983 = vsub.s32 2, %v982
      %v984 = vrot.slane %v885, %v983
      %v985 = vadd.f32 %v980, %v984
      %v986 = vxor.u32 %v985, 2147483648
      %v987 = vmul.f32 %v986, 1.442695
      %v988 = vpow.pop %v987
      %v989 = vadd.f32 %v988, 1.0
      %v990 = vrcp.pop %v989
      %v991 = vmul.f32 1.0, %v990
      %v992 = vmul.f32 %v985, %v991
      %v993 = vpack.c.bf16 %v992, %v992
      %v994 = vld [vmem:[#allocation31] sm:$0xf]
      %v995 = vld [vmem:[#allocation31 + $0x4] sm:$0xf]
      %v996 = vld [vmem:[#allocation31 + $0x8] sm:$0xf]
      %v997 = vld [vmem:[#allocation31 + $0xc] sm:$0xf]
      %v998 = vlaneseq
      %v999 = vshrl.u32 %v998, 7
      %v1000 = vsub.s32 0, %v999
      %v1001 = vrot.slane %v886, %v1000
      %v1006 = vunpack.c.l.b16 %v994
      %v1007 = vunpack.c.l.b16 %v995
      %v1008 = vunpack.c.l.b16 %v996
      %v1009 = vunpack.c.l.b16 %v997
      %v1010 = vpack.c.b16 %v1007, %v1006
      %v1011 = vpack.c.b16 %v1009, %v1008
      %v1015 = vsel %vm479, %v993, 0
      %1017 = vmatprep.subr.bf16.mxu0 0
      %1018 = vmatpush1.bf16.msra.mxu0 %v1010
      %1019 = vmatprep.subr.bf16.mxu0 0
      %1020 = vmatpush1.bf16.msra.mxu0 %v1011
      %1021 = vmatprep.subr.bf16.mxu0 0
      %1022 = vmatpush1.bf16.msra.mxu0 0
      %1023 = vmatprep.subr.bf16.mxu0 0
      %1024 = vmatpush1.bf16.msra.mxu0 0
      %1025 = vmatprep.subr.bf16.mxu0 0
      %1026 = vmatpush1.bf16.msra.mxu0 0
      %1027 = vmatprep.subr.bf16.mxu0 0
      %1028 = vmatpush1.bf16.msra.mxu0 0
      %1029 = vmatprep.subr.bf16.mxu0 0
      %1030 = vmatpush1.bf16.msra.mxu0 0
      %1031 = vmatprep.subr.bf16.mxu0 0
      %1032 = vmatpush1.bf16.msra.mxu0 0
      %1033 = vmatprep.subr.bf16.mxu0 0
      %1034 = vmatpush1.bf16.msra.mxu0 0
      %1035 = vmatprep.subr.bf16.mxu0 0
      %1036 = vmatpush1.bf16.msra.mxu0 0
      %1037 = vmatprep.subr.bf16.mxu0 0
      %1038 = vmatpush1.bf16.msra.mxu0 0
      %1039 = vmatprep.subr.bf16.mxu0 0
      %1040 = vmatpush1.bf16.msra.mxu0 0
      %1041 = vmatprep.subr.bf16.mxu0 0
      %1042 = vmatpush1.bf16.msra.mxu0 0
      %1043 = vmatprep.subr.bf16.mxu0 0
      %1044 = vmatpush1.bf16.msra.mxu0 0
      %1045 = vmatprep.subr.bf16.mxu0 0
      %1046 = vmatpush1.bf16.msra.mxu0 0
      %1047 = vmatprep.subr.bf16.mxu0 0
      %1048 = vmatpush1.bf16.msra.mxu0 0
      %1049 = vmatprep.mubr.bf16.mxu0 0
      %1050 = vmatmul.mubr.bf16.gmra.mrb[0].mxu0 %v1015
      %v1051 = vpop.f32.mrb[0].mxu0
      %v1052 = vadd.f32 %v1001, %v1051
      %v1053 = vpop.f32.mrb[0].mxu0
      %v1054 = vpop.f32.mrb[0].mxu0
      %v1055 = vpop.f32.mrb[0].mxu0
      %1056 = vdwg.mxu0
      %v1057 = vpack.c.bf16 %v1052, %v1052
      %v1058 = vld [vmem:[#allocation34] sm:$0xf]
      %v1059 = vld [vmem:[#allocation34 + $0x4] sm:$0xf]
      %v1060 = vld [vmem:[#allocation34 + $0x8] sm:$0xf]
      %v1061 = vld [vmem:[#allocation34 + $0xc] sm:$0xf]
      %v1062 = vlaneseq
      %v1063 = vshrl.u32 %v1062, 7
      %v1064 = vsub.s32 1, %v1063
      %v1065 = vrot.slane %v886, %v1064
      %v1070 = vunpack.c.l.b16 %v1058
      %v1071 = vunpack.c.l.b16 %v1059
      %v1072 = vunpack.c.l.b16 %v1060
      %v1073 = vunpack.c.l.b16 %v1061
      %v1074 = vpack.c.b16 %v1071, %v1070
      %v1075 = vpack.c.b16 %v1073, %v1072
      %v1079 = vsel %vm479, %v1057, 0
      %1081 = vmatprep.subr.bf16.mxu0 0
      %1082 = vmatpush1.bf16.msra.mxu0 %v1074
      %1083 = vmatprep.subr.bf16.mxu0 0
      %1084 = vmatpush1.bf16.msra.mxu0 %v1075
      %1085 = vmatprep.subr.bf16.mxu0 0
      %1086 = vmatpush1.bf16.msra.mxu0 0
      %1087 = vmatprep.subr.bf16.mxu0 0
      %1088 = vmatpush1.bf16.msra.mxu0 0
      %1089 = vmatprep.subr.bf16.mxu0 0
      %1090 = vmatpush1.bf16.msra.mxu0 0
      %1091 = vmatprep.subr.bf16.mxu0 0
      %1092 = vmatpush1.bf16.msra.mxu0 0
      %1093 = vmatprep.subr.bf16.mxu0 0
      %1094 = vmatpush1.bf16.msra.mxu0 0
      %1095 = vmatprep.subr.bf16.mxu0 0
      %1096 = vmatpush1.bf16.msra.mxu0 0
      %1097 = vmatprep.subr.bf16.mxu0 0
      %1098 = vmatpush1.bf16.msra.mxu0 0
      %1099 = vmatprep.subr.bf16.mxu0 0
      %1100 = vmatpush1.bf16.msra.mxu0 0
      %1101 = vmatprep.subr.bf16.mxu0 0
      %1102 = vmatpush1.bf16.msra.mxu0 0
      %1103 = vmatprep.subr.bf16.mxu0 0
      %1104 = vmatpush1.bf16.msra.mxu0 0
      %1105 = vmatprep.subr.bf16.mxu0 0
      %1106 = vmatpush1.bf16.msra.mxu0 0
      %1107 = vmatprep.subr.bf16.mxu0 0
      %1108 = vmatpush1.bf16.msra.mxu0 0
      %1109 = vmatprep.subr.bf16.mxu0 0
      %1110 = vmatpush1.bf16.msra.mxu0 0
      %1111 = vmatprep.subr.bf16.mxu0 0
      %1112 = vmatpush1.bf16.msra.mxu0 0
      %1113 = vmatprep.mubr.bf16.mxu0 0
      %1114 = vmatmul.mubr.bf16.gmra.mrb[0].mxu0 %v1079
      %v1115 = vpop.f32.mrb[0].mxu0
      %v1116 = vadd.f32 %v1065, %v1115
      %v1117 = vpop.f32.mrb[0].mxu0
      %v1118 = vpop.f32.mrb[0].mxu0
      %v1119 = vpop.f32.mrb[0].mxu0
      %1120 = vdwg.mxu0
      %v1121 = vmul.f32 %v1116, %v1116
      %v1122 = vsel %vm479, %v1121, 0.0
      %1123 = vadd.xlane.f32.xlu0 %v1122
      %v1124 = vpop.xlane.xlu0 %1123
      %v1125 = vmax.f32 %v1124, 1e-24
      %v1126 = vrsqrt.pop %v1125
      %v1127 = vmul.f32 %v1116, %v1126
      %v1128 = vld [vmem:[#allocation37] sm:$0x7]
      %v1129 = vld [vmem:[#allocation40] sm:$0x3]
      %v1130 = vld [vmem:[#allocation35] sm:$0xf]
      %v1131 = vld [vmem:[#allocation35 + $0x4] sm:$0xf]
      %v1132 = vld [vmem:[#allocation35 + $0x8] sm:$0xf]
      %v1133 = vld [vmem:[#allocation35 + $0xc] sm:$0xf]
      %v1134 = vld [vmem:[#allocation35 + $0x10] sm:$0xf]
      %v1135 = vld [vmem:[#allocation35 + $0x14] sm:$0xf]
      %v1136 = vlaneseq
      %v1137 = vshrl.u32 %v1136, 7
      %v1138 = vsub.s32 0, %v1137
      %v1139 = vrot.slane %v1128, %v1138
      %v1146 = vunpack.c.l.b16 %v1130
      %v1147 = vunpack.c.l.b16 %v1131
      %v1148 = vunpack.c.l.b16 %v1132
      %v1149 = vunpack.c.l.b16 %v1133
      %v1150 = vunpack.c.l.b16 %v1134
      %v1151 = vunpack.c.l.b16 %v1135
      %v1152 = vpack.c.b16 %v1147, %v1146
      %v1153 = vpack.c.b16 %v1149, %v1148
      %v1154 = vpack.c.b16 %v1151, %v1150
      %1158 = vmatprep.subr.bf16.mxu0 0
      %1159 = vmatpush1.bf16.msra.mxu0 %v1152
      %1160 = vmatprep.subr.bf16.mxu0 0
      %1161 = vmatpush1.bf16.msra.mxu0 %v1153
      %1162 = vmatprep.subr.bf16.mxu0 0
      %1163 = vmatpush1.bf16.msra.mxu0 %v1154
      %1164 = vmatprep.subr.bf16.mxu0 0
      %1165 = vmatpush1.bf16.msra.mxu0 0
      %1166 = vmatprep.subr.bf16.mxu0 0
      %1167 = vmatpush1.bf16.msra.mxu0 0
      %1168 = vmatprep.subr.bf16.mxu0 0
      %1169 = vmatpush1.bf16.msra.mxu0 0
      %1170 = vmatprep.subr.bf16.mxu0 0
      %1171 = vmatpush1.bf16.msra.mxu0 0
      %1172 = vmatprep.subr.bf16.mxu0 0
      %1173 = vmatpush1.bf16.msra.mxu0 0
      %1174 = vmatprep.subr.bf16.mxu0 0
      %1175 = vmatpush1.bf16.msra.mxu0 0
      %1176 = vmatprep.subr.bf16.mxu0 0
      %1177 = vmatpush1.bf16.msra.mxu0 0
      %1178 = vmatprep.subr.bf16.mxu0 0
      %1179 = vmatpush1.bf16.msra.mxu0 0
      %1180 = vmatprep.subr.bf16.mxu0 0
      %1181 = vmatpush1.bf16.msra.mxu0 0
      %1182 = vmatprep.subr.bf16.mxu0 0
      %1183 = vmatpush1.bf16.msra.mxu0 0
      %1184 = vmatprep.subr.bf16.mxu0 0
      %1185 = vmatpush1.bf16.msra.mxu0 0
      %1186 = vmatprep.subr.bf16.mxu0 0
      %1187 = vmatpush1.bf16.msra.mxu0 0
      %1188 = vmatprep.subr.bf16.mxu0 0
      %1189 = vmatpush1.bf16.msra.mxu0 0
      %1190 = vmatprep.mubr.bf16.mxu0 0
      %1191 = vmatmul.mubr.bf16.gmra.mrb[0].mxu0 %v678
      %v1192 = vpop.f32.mrb[0].mxu0
      %v1193 = vadd.f32 %v1139, %v1192
      %v1194 = vpop.f32.mrb[0].mxu0
      %v1195 = vpop.f32.mrb[0].mxu0
      %v1196 = vpop.f32.mrb[0].mxu0
      %1197 = vdwg.mxu0
      %v1198 = vsel %vm479, %v1193, 0.0
      %1199 = vadd.xlane.f32.xlu0 %v1198
      %v1200 = vpop.xlane.xlu0 %1199
      %v1201 = vmul.f32 %v1200, %v483
      %v1202 = vsub.f32 %v1193, %v1201
      %v1203 = vmul.f32 %v1202, %v1202
      %v1204 = vsel %vm479, %v1203, 0.0
      %1205 = vadd.xlane.f32.xlu0 %v1204
      %v1206 = vpop.xlane.xlu0 %1205
      %v1207 = vmul.f32 %v1206, %v483
      %v1208 = vadd.f32 %v1207, 1e-05
      %v1209 = vrsqrt.pop %v1208
      %v1210 = vmul.f32 %v1202, %v1209
      %v1211 = vlaneseq
      %v1212 = vshrl.u32 %v1211, 7
      %v1213 = vsub.s32 1, %v1212
      %v1214 = vrot.slane %v1128, %v1213
      %v1215 = vmul.f32 %v1210, %v1214
      %v1216 = vlaneseq
      %v1217 = vshrl.u32 %v1216, 7
      %v1218 = vsub.s32 2, %v1217
      %v1219 = vrot.slane %v1128, %v1218
      %v1220 = vadd.f32 %v1215, %v1219
      %v1221 = vxor.u32 %v1220, 2147483648
      %v1222 = vmul.f32 %v1221, 1.442695
      %v1223 = vpow.pop %v1222
      %v1224 = vadd.f32 %v1223, 1.0
      %v1225 = vrcp.pop %v1224
      %v1226 = vmul.f32 1.0, %v1225
      %v1227 = vmul.f32 %v1220, %v1226
      %v1228 = vpack.c.bf16 %v1227, %v1227
      %v1229 = vld [vmem:[#allocation38] sm:$0xf]
      %v1230 = vld [vmem:[#allocation38 + $0x4] sm:$0xf]
      %v1231 = vld [vmem:[#allocation38 + $0x8] sm:$0xf]
      %v1232 = vld [vmem:[#allocation38 + $0xc] sm:$0xf]
      %v1233 = vlaneseq
      %v1234 = vshrl.u32 %v1233, 7
      %v1235 = vsub.s32 0, %v1234
      %v1236 = vrot.slane %v1129, %v1235
      %v1241 = vunpack.c.l.b16 %v1229
      %v1242 = vunpack.c.l.b16 %v1230
      %v1243 = vunpack.c.l.b16 %v1231
      %v1244 = vunpack.c.l.b16 %v1232
      %v1245 = vpack.c.b16 %v1242, %v1241
      %v1246 = vpack.c.b16 %v1244, %v1243
      %v1250 = vsel %vm479, %v1228, 0
      %1252 = vmatprep.subr.bf16.mxu0 0
      %1253 = vmatpush1.bf16.msra.mxu0 %v1245
      %1254 = vmatprep.subr.bf16.mxu0 0
      %1255 = vmatpush1.bf16.msra.mxu0 %v1246
      %1256 = vmatprep.subr.bf16.mxu0 0
      %1257 = vmatpush1.bf16.msra.mxu0 0
      %1258 = vmatprep.subr.bf16.mxu0 0
      %1259 = vmatpush1.bf16.msra.mxu0 0
      %1260 = vmatprep.subr.bf16.mxu0 0
      %1261 = vmatpush1.bf16.msra.mxu0 0
      %1262 = vmatprep.subr.bf16.mxu0 0
      %1263 = vmatpush1.bf16.msra.mxu0 0
      %1264 = vmatprep.subr.bf16.mxu0 0
      %1265 = vmatpush1.bf16.msra.mxu0 0
      %1266 = vmatprep.subr.bf16.mxu0 0
      %1267 = vmatpush1.bf16.msra.mxu0 0
      %1268 = vmatprep.subr.bf16.mxu0 0
      %1269 = vmatpush1.bf16.msra.mxu0 0
      %1270 = vmatprep.subr.bf16.mxu0 0
      %1271 = vmatpush1.bf16.msra.mxu0 0
      %1272 = vmatprep.subr.bf16.mxu0 0
      %1273 = vmatpush1.bf16.msra.mxu0 0
      %1274 = vmatprep.subr.bf16.mxu0 0
      %1275 = vmatpush1.bf16.msra.mxu0 0
      %1276 = vmatprep.subr.bf16.mxu0 0
      %1277 = vmatpush1.bf16.msra.mxu0 0
      %1278 = vmatprep.subr.bf16.mxu0 0
      %1279 = vmatpush1.bf16.msra.mxu0 0
      %1280 = vmatprep.subr.bf16.mxu0 0
      %1281 = vmatpush1.bf16.msra.mxu0 0
      %1282 = vmatprep.subr.bf16.mxu0 0
      %1283 = vmatpush1.bf16.msra.mxu0 0
      %1284 = vmatprep.mubr.bf16.mxu0 0
      %1285 = vmatmul.mubr.bf16.gmra.mrb[0].mxu0 %v1250
      %v1286 = vpop.f32.mrb[0].mxu0
      %v1287 = vadd.f32 %v1236, %v1286
      %v1288 = vpop.f32.mrb[0].mxu0
      %v1289 = vpop.f32.mrb[0].mxu0
      %v1290 = vpop.f32.mrb[0].mxu0
      %1291 = vdwg.mxu0
      %v1292 = vpack.c.bf16 %v1287, %v1287
      %v1293 = vld [vmem:[#allocation41] sm:$0xf]
      %v1294 = vld [vmem:[#allocation41 + $0x4] sm:$0xf]
      %v1295 = vld [vmem:[#allocation41 + $0x8] sm:$0xf]
      %v1296 = vld [vmem:[#allocation41 + $0xc] sm:$0xf]
      %v1297 = vlaneseq
      %v1298 = vshrl.u32 %v1297, 7
      %v1299 = vsub.s32 1, %v1298
      %v1300 = vrot.slane %v1129, %v1299
      %v1305 = vunpack.c.l.b16 %v1293
      %v1306 = vunpack.c.l.b16 %v1294
      %v1307 = vunpack.c.l.b16 %v1295
      %v1308 = vunpack.c.l.b16 %v1296
      %v1309 = vpack.c.b16 %v1306, %v1305
      %v1310 = vpack.c.b16 %v1308, %v1307
      %v1314 = vsel %vm479, %v1292, 0
      %1316 = vmatprep.subr.bf16.mxu0 0
      %1317 = vmatpush1.bf16.msra.mxu0 %v1309
      %1318 = vmatprep.subr.bf16.mxu0 0
      %1319 = vmatpush1.bf16.msra.mxu0 %v1310
      %1320 = vmatprep.subr.bf16.mxu0 0
      %1321 = vmatpush1.bf16.msra.mxu0 0
      %1322 = vmatprep.subr.bf16.mxu0 0
      %1323 = vmatpush1.bf16.msra.mxu0 0
      %1324 = vmatprep.subr.bf16.mxu0 0
      %1325 = vmatpush1.bf16.msra.mxu0 0
      %1326 = vmatprep.subr.bf16.mxu0 0
      %1327 = vmatpush1.bf16.msra.mxu0 0
      %1328 = vmatprep.subr.bf16.mxu0 0
      %1329 = vmatpush1.bf16.msra.mxu0 0
      %1330 = vmatprep.subr.bf16.mxu0 0
      %1331 = vmatpush1.bf16.msra.mxu0 0
      %1332 = vmatprep.subr.bf16.mxu0 0
      %1333 = vmatpush1.bf16.msra.mxu0 0
      %1334 = vmatprep.subr.bf16.mxu0 0
      %1335 = vmatpush1.bf16.msra.mxu0 0
      %1336 = vmatprep.subr.bf16.mxu0 0
      %1337 = vmatpush1.bf16.msra.mxu0 0
      %1338 = vmatprep.subr.bf16.mxu0 0
      %1339 = vmatpush1.bf16.msra.mxu0 0
      %1340 = vmatprep.subr.bf16.mxu0 0
      %1341 = vmatpush1.bf16.msra.mxu0 0
      %1342 = vmatprep.subr.bf16.mxu0 0
      %1343 = vmatpush1.bf16.msra.mxu0 0
      %1344 = vmatprep.subr.bf16.mxu0 0
      %1345 = vmatpush1.bf16.msra.mxu0 0
      %1346 = vmatprep.subr.bf16.mxu0 0
      %1347 = vmatpush1.bf16.msra.mxu0 0
      %1348 = vmatprep.mubr.bf16.mxu0 0
      %1349 = vmatmul.mubr.bf16.gmra.mrb[0].mxu0 %v1314
      %v1350 = vpop.f32.mrb[0].mxu0
      %v1351 = vadd.f32 %v1300, %v1350
      %v1352 = vpop.f32.mrb[0].mxu0
      %v1353 = vpop.f32.mrb[0].mxu0
      %v1354 = vpop.f32.mrb[0].mxu0
      %1355 = vdwg.mxu0
      %v1356 = vmul.f32 %v1351, %v1351
      %v1357 = vsel %vm479, %v1356, 0.0
      %1358 = vadd.xlane.f32.xlu0 %v1357
      %v1359 = vpop.xlane.xlu0 %1358
      %v1360 = vmax.f32 %v1359, 1e-24
      %v1361 = vrsqrt.pop %v1360
      %v1362 = vmul.f32 %v1351, %v1361
      %1363 = vst.msk [vmem:[#allocation46] sm:$0xff] %vm479, %v645
      %1364 = vst.msk [vmem:[#allocation47] sm:$0xff] %vm479, %v884
      %1365 = vst.msk [vmem:[#allocation49] sm:$0xff] %vm479, %v1127
      %1366 = vst.msk [vmem:[#allocation50] sm:$0xff] %vm479, %v1362
      %v1367 = vmul.f32 %v645, 14.285714
      %v1368 = vpack.c.bf16 %v1367, %v1367
      %vm1369 = vcmask 257024
      %1370 = vst.msk [vmem:[#allocation2] sm:$0xf] %vm1369, %v1368
      %v1371 = vmul.f32 %v884, 14.285714
      %v1372 = vpack.c.bf16 %v1371, %v1371
      %1373 = vst.msk [vmem:[#allocation3] sm:$0xf] %vm1369, %v1372
      %v1374 = vmul.f32 %v645, %v1362
      %v1375 = vsel %vm479, %v1374, 0.0
      %1376 = vadd.xlane.f32.xlu0 %v1375
      %v1377 = vpop.xlane.xlu0 %1376
      %v1378 = vmul.f32 %v1377, 14.285714
      %v1379 = vmul.f32 %v884, %v1127
      %v1380 = vsel %vm479, %v1379, 0.0
      %1381 = vadd.xlane.f32.xlu0 %v1380
      %v1382 = vpop.xlane.xlu0 %1381
      %v1383 = vmul.f32 %v1382, 14.285714
      %vm1384 = vcmask 7168
      %1385 = vst.msk [vmem:[#allocation4] sm:$0xff] %vm1384, %v1378
      %1386 = vst.msk [vmem:[#allocation6] sm:$0xff] %vm1384, %v1383
      %v1387 = vsub.f32 %v1378, 14.285714
      %v1388 = vmul.f32 %v1387, 1.442695
      %v1389 = vpow.pop %v1388
      %1390 = vst.msk [vmem:[#allocation5] sm:$0xff] %vm1384, %v1389
      %v1391 = vsub.f32 %v1383, 14.285714
      %v1392 = vmul.f32 %v1391, 1.442695
      %v1393 = vpow.pop %v1392
      %1394 = vst.msk [vmem:[#allocation7] sm:$0xff] %vm1384, %v1393
    $region197: #{tpu_custom_call.1} parent=1 // pred_fallthru
      _
    %v1395 = vld [vmem:[#allocation2] sm:$0xf]
    %v1396 = vld [vmem:[#allocation43] sm:$0xf]
    %v1397 = vld [vmem:[#allocation43 + $0x4] sm:$0xf]
    %v1398 = vld [vmem:[#allocation43 + $0x8] sm:$0xf]
    %v1399 = vld [vmem:[#allocation43 + $0xc] sm:$0xf]
    %v1404 = vunpack.c.l.b16 %v1396
    %v1405 = vunpack.c.l.b16 %v1397
    %v1406 = vunpack.c.l.b16 %v1398
    %v1407 = vunpack.c.l.b16 %v1399
    %v1408 = vpack.c.b16 %v1405, %v1404
    %v1409 = vpack.c.b16 %v1407, %v1406
    %vm1412 = vcmask 261120
    %v1414 = vsel %vm1412, %v1395, 0
    %1416 = vmatprep.subr.bf16.mxu0 0
    %1417 = vmatpush1.bf16.msra.mxu0 %v1408
    %1418 = vmatprep.subr.bf16.mxu0 0
    %1419 = vmatpush1.bf16.msra.mxu0 %v1409
    %1420 = vmatprep.subr.bf16.mxu0 0
    %1421 = vmatpush1.bf16.msra.mxu0 0
    %1422 = vmatprep.subr.bf16.mxu0 0
    %1423 = vmatpush1.bf16.msra.mxu0 0
    %1424 = vmatprep.subr.bf16.mxu0 0
    %1425 = vmatpush1.bf16.msra.mxu0 0
    %1426 = vmatprep.subr.bf16.mxu0 0
    %1427 = vmatpush1.bf16.msra.mxu0 0
    %1428 = vmatprep.subr.bf16.mxu0 0
    %1429 = vmatpush1.bf16.msra.mxu0 0
    %1430 = vmatprep.subr.bf16.mxu0 0
    %1431 = vmatpush1.bf16.msra.mxu0 0
    %1432 = vmatprep.subr.bf16.mxu0 0
    %1433 = vmatpush1.bf16.msra.mxu0 0
    %1434 = vmatprep.subr.bf16.mxu0 0
    %1435 = vmatpush1.bf16.msra.mxu0 0
    %1436 = vmatprep.subr.bf16.mxu0 0
    %1437 = vmatpush1.bf16.msra.mxu0 0
    %1438 = vmatprep.subr.bf16.mxu0 0
    %1439 = vmatpush1.bf16.msra.mxu0 0
    %1440 = vmatprep.subr.bf16.mxu0 0
    %1441 = vmatpush1.bf16.msra.mxu0 0
    %1442 = vmatprep.subr.bf16.mxu0 0
    %1443 = vmatpush1.bf16.msra.mxu0 0
    %1444 = vmatprep.subr.bf16.mxu0 0
    %1445 = vmatpush1.bf16.msra.mxu0 0
    %1446 = vmatprep.subr.bf16.mxu0 0
    %1447 = vmatpush1.bf16.msra.mxu0 0
    %1448 = vmatprep.mubr.bf16.mxu0 0
    %1449 = vmatmul.mubr.bf16.gmra.mrb[0].mxu0 %v1414
    %v1450 = vpop.f32.mrb[0].mxu0
    %v1451 = vadd.f32 0.0, %v1450
    %v1452 = vpop.f32.mrb[0].mxu0
    %v1453 = vpop.f32.mrb[0].mxu0
    %v1454 = vpop.f32.mrb[0].mxu0
    %1455 = vdwg.mxu0
    %v1456 = vsub.f32 %v1451, 14.285714
    %v1457 = vpack.c.bf16 %v1456, %v1456
    %v1459 = vmul.bf16 %v1457, 1069105081
    %v1460 = vpow.bf16.pop %v1459
    %v1461 = vld [vmem:[#allocation5] sm:$0xff]
    %v1462 = vunpack.c.l.bf16 %v1460
    %1463 = vadd.xlane.f32.xlu0 %v1462
    %v1464 = vpop.xlane.xlu0 %1463
    %v1465 = vadd.f32 %v1461, %v1464
    %vm1466 = vcmask 7168
    %1467 = vst.msk [vmem:[#allocation5] sm:$0xff] %vm1466, %v1465
    %v1468 = vld [vmem:[#allocation3] sm:$0xf]
    %v1469 = vld [vmem:[#allocation44] sm:$0xf]
    %v1470 = vld [vmem:[#allocation44 + $0x4] sm:$0xf]
    %v1471 = vld [vmem:[#allocation44 + $0x8] sm:$0xf]
    %v1472 = vld [vmem:[#allocation44 + $0xc] sm:$0xf]
    %v1477 = vunpack.c.l.b16 %v1469
    %v1478 = vunpack.c.l.b16 %v1470
    %v1479 = vunpack.c.l.b16 %v1471
    %v1480 = vunpack.c.l.b16 %v1472
    %v1481 = vpack.c.b16 %v1478, %v1477
    %v1482 = vpack.c.b16 %v1480, %v1479
    %v1486 = vsel %vm1412, %v1468, 0
    %1488 = vmatprep.subr.bf16.mxu0 0
    %1489 = vmatpush1.bf16.msra.mxu0 %v1481
    %1490 = vmatprep.subr.bf16.mxu0 0
    %1491 = vmatpush1.bf16.msra.mxu0 %v1482
    %1492 = vmatprep.subr.bf16.mxu0 0
    %1493 = vmatpush1.bf16.msra.mxu0 0
    %1494 = vmatprep.subr.bf16.mxu0 0
    %1495 = vmatpush1.bf16.msra.mxu0 0
    %1496 = vmatprep.subr.bf16.mxu0 0
    %1497 = vmatpush1.bf16.msra.mxu0 0
    %1498 = vmatprep.subr.bf16.mxu0 0
    %1499 = vmatpush1.bf16.msra.mxu0 0
    %1500 = vmatprep.subr.bf16.mxu0 0
    %1501 = vmatpush1.bf16.msra.mxu0 0
    %1502 = vmatprep.subr.bf16.mxu0 0
    %1503 = vmatpush1.bf16.msra.mxu0 0
    %1504 = vmatprep.subr.bf16.mxu0 0
    %1505 = vmatpush1.bf16.msra.mxu0 0
    %1506 = vmatprep.subr.bf16.mxu0 0
    %1507 = vmatpush1.bf16.msra.mxu0 0
    %1508 = vmatprep.subr.bf16.mxu0 0
    %1509 = vmatpush1.bf16.msra.mxu0 0
    %1510 = vmatprep.subr.bf16.mxu0 0
    %1511 = vmatpush1.bf16.msra.mxu0 0
    %1512 = vmatprep.subr.bf16.mxu0 0
    %1513 = vmatpush1.bf16.msra.mxu0 0
    %1514 = vmatprep.subr.bf16.mxu0 0
    %1515 = vmatpush1.bf16.msra.mxu0 0
    %1516 = vmatprep.subr.bf16.mxu0 0
    %1517 = vmatpush1.bf16.msra.mxu0 0
    %1518 = vmatprep.subr.bf16.mxu0 0
    %1519 = vmatpush1.bf16.msra.mxu0 0
    %1520 = vmatprep.mubr.bf16.mxu0 0
    %1521 = vmatmul.mubr.bf16.gmra.mrb[0].mxu0 %v1486
    %v1522 = vpop.f32.mrb[0].mxu0
    %v1523 = vadd.f32 0.0, %v1522
    %v1524 = vpop.f32.mrb[0].mxu0
    %v1525 = vpop.f32.mrb[0].mxu0
    %v1526 = vpop.f32.mrb[0].mxu0
    %1527 = vdwg.mxu0
    %v1528 = vsub.f32 %v1523, 14.285714
    %v1529 = vpack.c.bf16 %v1528, %v1528
    %v1531 = vmul.bf16 %v1529, 1069105081
    %v1532 = vpow.bf16.pop %v1531
    %v1533 = vld [vmem:[#allocation7] sm:$0xff]
    %v1534 = vunpack.c.l.bf16 %v1532
    %1535 = vadd.xlane.f32.xlu0 %v1534
    %v1536 = vpop.xlane.xlu0 %1535
    %v1537 = vadd.f32 %v1533, %v1536
    %1538 = vst.msk [vmem:[#allocation7] sm:$0xff] %vm1466, %v1537
    // Predicated region
    $region198: #{tpu_custom_call.1} parent=1 // pred_check
      %p1539 = pneg %p391
    $region199: #{tpu_custom_call.1} parent=1 // pred_check_branch
      %1541 = sbr.rel (%p1539) target = $region201
    $region200: #{tpu_custom_call.1} parent=1 // pred_region
      %v1542 = vld [vmem:[#allocation5] sm:$0xff]
      %v1543 = vlog2.pop %v1542
      %v1544 = vmul.f32 %v1543, 0.6931472
      %v1545 = vadd.f32 %v1544, 14.285714
      %v1546 = vld [vmem:[#allocation4] sm:$0xff]
      %v1547 = vsub.f32 %v1545, %v1546
      %1548 = vst.msk [vmem:[#allocation52] sm:$0xff] %vm1466, %v1547
      %v1549 = vld [vmem:[#allocation7] sm:$0xff]
      %v1550 = vlog2.pop %v1549
      %v1551 = vmul.f32 %v1550, 0.6931472
      %v1552 = vadd.f32 %v1551, 14.285714
      %v1553 = vld [vmem:[#allocation6] sm:$0xff]
      %v1554 = vsub.f32 %v1552, %v1553
      %1556 = vrot.lane.b32.xlu0 %v1554, 1
      %v1557 = vpop.permute.xlu0 %1556
      %vm1559 = vcmask 15368
      %1560 = vst.msk [vmem:[#allocation52] sm:$0xff] %vm1559, %v1557
    $region201: #{tpu_custom_call.1} parent=1 // pred_fallthru
      _
    // Predicated region
    $region202: #{tpu_custom_call.1} parent=1 // pred_check
      _
    $region203: #{tpu_custom_call.1} parent=1 // pred_check_branch
      %1562 = sbr.rel (0) target = $region205
    $region204: #{tpu_custom_call.1} parent=1 // pred_region
      %s1564 = ssub.s32 128, 128
      %1565 = vsyncadd [#allocation10], %s1564
      %s1567 = sshll.u32 [#allocation46], 4
      %s1568 = int_to_ptr.vmem [resolvable:$true] %s1567
      %1570 = dma.vmem_to_hbm [thread:$0]  %s1568, 128, %s24, [#allocation10]
    $region205: #{tpu_custom_call.1} parent=1 // pred_fallthru
      _
    // Predicated region
    $region206: #{tpu_custom_call.1} parent=1 // pred_check
      _
    $region207: #{tpu_custom_call.1} parent=1 // pred_check_branch
      %1572 = sbr.rel (0) target = $region209
    $region208: #{tpu_custom_call.1} parent=1 // pred_region
      %s1574 = ssub.s32 128, 128
      %1575 = vsyncadd [#allocation48], %s1574
      %s1577 = sshll.u32 [#allocation47], 4
      %s1578 = int_to_ptr.vmem [resolvable:$true] %s1577
      %1580 = dma.vmem_to_hbm [thread:$0]  %s1578, 128, %s25, [#allocation48]
    $region209: #{tpu_custom_call.1} parent=1 // pred_fallthru
      _
    // Predicated region
    $region210: #{tpu_custom_call.1} parent=1 // pred_check
      _
    $region211: #{tpu_custom_call.1} parent=1 // pred_check_branch
      %1582 = sbr.rel (0) target = $region213
    $region212: #{tpu_custom_call.1} parent=1 // pred_region
      %s1584 = ssub.s32 128, 128
      %1585 = vsyncadd [#allocation48], %s1584
      %s1587 = sshll.u32 [#allocation49], 4
      %s1588 = int_to_ptr.vmem [resolvable:$true] %s1587
      %1590 = dma.vmem_to_hbm [thread:$0]  %s1588, 128, %s26, [#allocation48]
    $region213: #{tpu_custom_call.1} parent=1 // pred_fallthru
      _
    // Predicated region
    $region214: #{tpu_custom_call.1} parent=1 // pred_check
      _
    $region215: #{tpu_custom_call.1} parent=1 // pred_check_branch
      %1592 = sbr.rel (0) target = $region217
    $region216: #{tpu_custom_call.1} parent=1 // pred_region
      %s1594 = ssub.s32 128, 128
      %1595 = vsyncadd [#allocation51], %s1594
      %s1597 = sshll.u32 [#allocation50], 4
      %s1598 = int_to_ptr.vmem [resolvable:$true] %s1597
      %1600 = dma.vmem_to_hbm [thread:$0]  %s1598, 128, %s27, [#allocation51]
    $region217: #{tpu_custom_call.1} parent=1 // pred_fallthru
      _
    // Predicated region
    $region218: #{tpu_custom_call.1} parent=1 // pred_check
      _
    $region219: #{tpu_custom_call.1} parent=1 // pred_check_branch
      %1602 = sbr.rel (0) target = $region221
    $region220: #{tpu_custom_call.1} parent=1 // pred_region
      %s1604 = ssub.s32 128, 128
      %1605 = vsyncadd [#allocation51], %s1604
      %s1607 = sshll.u32 [#allocation52], 4
      %s1608 = int_to_ptr.vmem [resolvable:$true] %s1607
      %1610 = dma.vmem_to_hbm [thread:$0]  %s1608, 128, %s28, [#allocation51]
    $region221: #{tpu_custom_call.1} parent=1 // pred_fallthru
      _
    // Predicated region
    $region222: #{tpu_custom_call.1} parent=1 // pred_check
      _
    $region223: #{tpu_custom_call.1} parent=1 // pred_check_branch
      %1612 = sbr.rel (0) target = $region225
    $region224: #{tpu_custom_call.1} parent=1 // pred_region
      %1613 = dma.done [#allocation10], 128
    $region225: #{tpu_custom_call.1} parent=1 // pred_fallthru
      _
    // Predicated region
    $region226: #{tpu_custom_call.1} parent=1 // pred_check
      _
    $region227: #{tpu_custom_call.1} parent=1 // pred_check_branch
      %1615 = sbr.rel (0) target = $region229
    $region228: #{tpu_custom_call.1} parent=1 // pred_region
      %1616 = dma.done [#allocation48], 128
    $region229: #{tpu_custom_call.1} parent=1 // pred_fallthru
      _
    // Predicated region
    $region230: #{tpu_custom_call.1} parent=1 // pred_check
      _
    $region231: #{tpu_custom_call.1} parent=1 // pred_check_branch
      %1618 = sbr.rel (0) target = $region233
    $region232: #{tpu_custom_call.1} parent=1 // pred_region
      %1619 = dma.done [#allocation48], 128
    $region233: #{tpu_custom_call.1} parent=1 // pred_fallthru
      _
    // Predicated region
    $region234: #{tpu_custom_call.1} parent=1 // pred_check
      _
    $region235: #{tpu_custom_call.1} parent=1 // pred_check_branch
      %1621 = sbr.rel (0) target = $region237
    $region236: #{tpu_custom_call.1} parent=1 // pred_region
      %1622 = dma.done [#allocation51], 128
    $region237: #{tpu_custom_call.1} parent=1 // pred_fallthru
      _
    // Predicated region
    $region238: #{tpu_custom_call.1} parent=1 // pred_check
      _
    $region239: #{tpu_custom_call.1} parent=1 // pred_check_branch
      %1624 = sbr.rel (0) target = $region241
    $region240: #{tpu_custom_call.1} parent=1 // pred_region
      %1625 = dma.done [#allocation51], 128
    $region241: #{tpu_custom_call.1} parent=1 // pred_fallthru
      _
    %1626 = vsyncpa [#allocation9], 1
    %1627 = vsyncpa [#allocation12], 1
    %1628 = vsyncpa [#allocation15], 1
    %1629 = vsyncpa [#allocation18], 1
    %1630 = vsyncpa [#allocation21], 1
    %1631 = vsyncpa [#allocation24], 1
    %1632 = vsyncpa [#allocation27], 1
    %1633 = vsyncpa [#allocation30], 1
    %1634 = vsyncpa [#allocation33], 1
    %1635 = vsyncpa [#allocation36], 1
    %1636 = vsyncpa [#allocation39], 1
    %1637 = vsyncpa [#allocation42], 1
    %1638 = vsyncpa [#allocation45], 1
    %1639 = vsyncpa [#allocation10], 1
    %1640 = vsyncpa [#allocation48], 1
    %1641 = vsyncpa [#allocation51], 1

// kernel: tpu_custom_call.1
$region0: #{tpu_custom_call.1}
  #allocation0 [shape = 'u32[]', space=smem, size = 0x4, offset = 0x4, fixed_abs, tag = 'smem constant byte address 0x4 - core index']
  #allocation1 [shape = 'u32[144,128]{1,0:T(1,128)}', space=vmem, size = 0x12000, scoped, tag = 'internal scratch']
  #allocation2 [shape = 'bf16[8,32]{1,0:T(8,128)(2,1)}', space=vmem, size = 0x800, scoped, tag = 'scratch operand']
  #allocation3 [shape = 'bf16[8,32]{1,0:T(8,128)(2,1)}', space=vmem, size = 0x800, scoped, tag = 'scratch operand']
  #allocation4 [shape = 'f32[8,1]{1,0:T(8,128)}', space=vmem, size = 0x1000, scoped, tag = 'scratch operand']
  #allocation5 [shape = 'f32[8,1]{1,0:T(8,128)}', space=vmem, size = 0x1000, scoped, tag = 'scratch operand']
  #allocation6 [shape = 'f32[8,1]{1,0:T(8,128)}', space=vmem, size = 0x1000, scoped, tag = 'scratch operand']
  #allocation7 [shape = 'f32[8,1]{1,0:T(8,128)}', space=vmem, size = 0x1000, scoped, tag = 'scratch operand']
  %s0 = inlined_call_operand.hbm [shape: bf16[8,64], index: 0, kind: input, shape index: {}]
  %s1 = inlined_call_operand.hbm [shape: bf16[8,48], index: 1, kind: input, shape index: {}]
  %s2 = inlined_call_operand.hbm [shape: bf16[64,32], index: 2, kind: input, shape index: {}]
  %s3 = inlined_call_operand.hbm [shape: f32[3,32], index: 3, kind: input, shape index: {}]
  %s4 = inlined_call_operand.hbm [shape: bf16[32,32], index: 4, kind: input, shape index: {}]
  %s5 = inlined_call_operand.hbm [shape: f32[2,32], index: 5, kind: input, shape index: {}]
  %s6 = inlined_call_operand.hbm [shape: bf16[32,32], index: 6, kind: input, shape index: {}]
  %s7 = inlined_call_operand.hbm [shape: bf16[48,32], index: 7, kind: input, shape index: {}]
  %s8 = inlined_call_operand.hbm [shape: f32[3,32], index: 8, kind: input, shape index: {}]
  %s9 = inlined_call_operand.hbm [shape: bf16[32,32], index: 9, kind: input, shape index: {}]
  %s10 = inlined_call_operand.hbm [shape: f32[2,32], index: 10, kind: input, shape index: {}]
  %s11 = inlined_call_operand.hbm [shape: bf16[32,32], index: 11, kind: input, shape index: {}]
  %s12 = inlined_call_operand.hbm [shape: bf16[64,32], index: 12, kind: input, shape index: {}]
  %s13 = inlined_call_operand.hbm [shape: f32[3,32], index: 13, kind: input, shape index: {}]
  %s14 = inlined_call_operand.hbm [shape: bf16[32,32], index: 14, kind: input, shape index: {}]
  %s15 = inlined_call_operand.hbm [shape: f32[2,32], index: 15, kind: input, shape index: {}]
  %s16 = inlined_call_operand.hbm [shape: bf16[32,32], index: 16, kind: input, shape index: {}]
  %s17 = inlined_call_operand.hbm [shape: bf16[48,32], index: 17, kind: input, shape index: {}]
  %s18 = inlined_call_operand.hbm [shape: f32[3,32], index: 18, kind: input, shape index: {}]
  %s19 = inlined_call_operand.hbm [shape: bf16[32,32], index: 19, kind: input, shape index: {}]
  %s20 = inlined_call_operand.hbm [shape: f32[2,32], index: 20, kind: input, shape index: {}]
  %s21 = inlined_call_operand.hbm [shape: bf16[32,32], index: 21, kind: input, shape index: {}]
  %s22 = inlined_call_operand.hbm [shape: bf16[32,128], index: 22, kind: input, shape index: {}]
  %s23 = inlined_call_operand.hbm [shape: bf16[32,128], index: 23, kind: input, shape index: {}]
  %s24 = inlined_call_operand.hbm [shape: f32[8,32], index: 24, kind: output, shape index: {0}]
  %s25 = inlined_call_operand.hbm [shape: f32[8,32], index: 25, kind: output, shape index: {1}]
  %s26 = inlined_call_operand.hbm [shape: f32[8,32], index: 26, kind: output, shape index: {2}]
  %s27 = inlined_call_operand.hbm [shape: f32[8,32], index: 27, kind: output, shape index: {3}]
  %s28 = inlined_call_operand.hbm [shape: f32[8,2], index: 28, kind: output, shape index: {4}]
  %29 = xla_tuple %s24, %s25, %s26, %s27, %s28
  %s30 = sld [smem:[#allocation0]]
  $region242: #{tpu_custom_call.1} parent=0
    _
  %s32 = ssub.s32 1, %s30
  %s33 = scalar_select 0, %s32, %s30
  $region1: #{tpu_custom_call.1} parent=0
    #allocation8 [shape = 'u8[2048]{0}', space=vmem, size = 0x800, scoped, tag = 'input window, operand 0, single buffered']
    #allocation9 [shape = 's32[1]{0}', space=sflag, size = 0x4, scoped, tag = 'scoped memory for tpu_custom_call.1']
    #allocation10 [shape = 's32[1]{0}', space=sflag, size = 0x4, scoped, tag = 'scoped memory for tpu_custom_call.1']
    #allocation11 [shape = 'u8[2048]{0}', space=vmem, size = 0x800, scoped, tag = 'input window, operand 1, single buffered']
    #allocation12 [shape = 's32[1]{0}', space=sflag, size = 0x4, scoped, tag = 'scoped memory for tpu_custom_call.1']
    #allocation13 [shape = 'u8[16384]{0}', space=vmem, size = 0x4000, scoped, tag = 'input window, operand 2, single buffered']
    #allocation14 [shape = 'u8[2048]{0}', space=vmem, size = 0x800, scoped, tag = 'input window, operand 3, single buffered']
    #allocation15 [shape = 's32[1]{0}', space=sflag, size = 0x4, scoped, tag = 'scoped memory for tpu_custom_call.1']
    #allocation16 [shape = 'u8[8192]{0}', space=vmem, size = 0x2000, scoped, tag = 'input window, operand 4, single buffered']
    #allocation17 [shape = 'u8[1024]{0}', space=vmem, size = 0x400, scoped, tag = 'input window, operand 5, single buffered']
    #allocation18 [shape = 's32[1]{0}', space=sflag, size = 0x4, scoped, tag = 'scoped memory for tpu_custom_call.1']
    #allocation19 [shape = 'u8[8192]{0}', space=vmem, size = 0x2000, scoped, tag = 'input window, operand 6, single buffered']
    #allocation20 [shape = 'u8[12288]{0}', space=vmem, size = 0x3000, scoped, tag = 'input window, operand 7, single buffered']
    #allocation21 [shape = 's32[1]{0}', space=sflag, size = 0x4, scoped, tag = 'scoped memory for tpu_custom_call.1']
    #allocation22 [shape = 'u8[2048]{0}', space=vmem, size = 0x800, scoped, tag = 'input window, operand 8, single buffered']
    #allocation23 [shape = 'u8[8192]{0}', space=vmem, size = 0x2000, scoped, tag = 'input window, operand 9, single buffered']
    #allocation24 [shape = 's32[1]{0}', space=sflag, size = 0x4, scoped, tag = 'scoped memory for tpu_custom_call.1']
    #allocation25 [shape = 'u8[1024]{0}', space=vmem, size = 0x400, scoped, tag = 'input window, operand 10, single buffered']
    #allocation26 [shape = 'u8[8192]{0}', space=vmem, size = 0x2000, scoped, tag = 'input window, operand 11, single buffered']
    #allocation27 [shape = 's32[1]{0}', space=sflag, size = 0x4, scoped, tag = 'scoped memory for tpu_custom_call.1']
    #allocation28 [shape = 'u8[16384]{0}', space=vmem, size = 0x4000, scoped, tag = 'input window, operand 12, single buffered']
    #allocation29 [shape = 'u8[2048]{0}', space=vmem, size = 0x800, scoped, tag = 'input window, operand 13, single buffered']
    #allocation30 [shape = 's32[1]{0}', space=sflag, size = 0x4, scoped, tag = 'scoped memory for tpu_custom_call.1']
    #allocation31 [shape = 'u8[8192]{0}', space=vmem, size = 0x2000, scoped, tag = 'input window, operand 14, single buffered']
    #allocation32 [shape = 'u8[1024]{0}', space=vmem, size = 0x400, scoped, tag = 'input window, operand 15, single buffered']
    #allocation33 [shape = 's32[1]{0}', space=sflag, size = 0x4, scoped, tag = 'scoped memory for tpu_custom_call.1']
    #allocation34 [shape = 'u8[8192]{0}', space=vmem, size = 0x2000, scoped, tag = 'input window, operand 16, single buffered']
    #allocation35 [shape = 'u8[12288]{0}', space=vmem, size = 0x3000, scoped, tag = 'input window, operand 17, single buffered']
    #allocation36 [shape = 's32[1]{0}', space=sflag, size = 0x4, scoped, tag = 'scoped memory for tpu_custom_call.1']
    #allocation37 [shape = 'u8[2048]{0}', space=vmem, size = 0x800, scoped, tag = 'input window, operand 18, single buffered']
    #allocation38 [shape = 'u8[8192]{0}', space=vmem, size = 0x2000, scoped, tag = 'input window, operand 19, single buffered']
    #allocation39 [shape = 's32[1]{0}', space=sflag, size = 0x4, scoped, tag = 'scoped memory for tpu_custom_call.1']
    #allocation40 [shape = 'u8[1024]{0}', space=vmem, size = 0x400, scoped, tag = 'input window, operand 20, single buffered']
    #allocation41 [shape = 'u8[8192]{0}', space=vmem, size = 0x2000, scoped, tag = 'input window, operand 21, single buffered']
    #allocation42 [shape = 's32[1]{0}', space=sflag, size = 0x4, scoped, tag = 'scoped memory for tpu_custom_call.1']
    #allocation43 [shape = 'u8[8192]{0}', space=vmem, size = 0x2000, scoped, tag = 'input window, operand 22, single buffered']
    #allocation44 [shape = 'u8[8192]{0}', space=vmem, size = 0x2000, scoped, tag = 'input window, operand 23, single buffered']
    #allocation45 [shape = 's32[1]{0}', space=sflag, size = 0x4, scoped, tag = 'scoped memory for tpu_custom_call.1']
    #allocation46 [shape = 'u8[4096]{0}', space=vmem, size = 0x1000, scoped, tag = 'output window, operand 0, single buffered']
    #allocation47 [shape = 'u8[4096]{0}', space=vmem, size = 0x1000, scoped, tag = 'output window, operand 1, single buffered']
    #allocation48 [shape = 's32[1]{0}', space=sflag, size = 0x4, scoped, tag = 'scoped memory for tpu_custom_call.1']
    #allocation49 [shape = 'u8[4096]{0}', space=vmem, size = 0x1000, scoped, tag = 'output window, operand 2, single buffered']
    #allocation50 [shape = 'u8[4096]{0}', space=vmem, size = 0x1000, scoped, tag = 'output window, operand 3, single buffered']
    #allocation51 [shape = 's32[1]{0}', space=sflag, size = 0x4, scoped, tag = 'scoped memory for tpu_custom_call.1']
    #allocation52 [shape = 'u8[4096]{0}', space=vmem, size = 0x1000, scoped, tag = 'output window, operand 4, single buffered']
    %34 = vsyncpa [#allocation9], 0
    %35 = vsyncpa [#allocation12], 0
    %36 = vsyncpa [#allocation15], 0
    %37 = vsyncpa [#allocation18], 0
    %38 = vsyncpa [#allocation21], 0
    %39 = vsyncpa [#allocation24], 0
    %40 = vsyncpa [#allocation27], 0
    %41 = vsyncpa [#allocation30], 0
    %42 = vsyncpa [#allocation33], 0
    %43 = vsyncpa [#allocation36], 0
    %44 = vsyncpa [#allocation39], 0
    %45 = vsyncpa [#allocation42], 0
    %46 = vsyncpa [#allocation45], 0
    %47 = vsyncpa [#allocation10], 0
    %48 = vsyncpa [#allocation48], 0
    %49 = vsyncpa [#allocation51], 0
    // Predicated region
    $region2: #{tpu_custom_call.1} parent=1 // pred_check
      _
    $region3: #{tpu_custom_call.1} parent=1 // pred_check_branch
      %51 = sbr.rel (0) target = $region5
    $region4: #{tpu_custom_call.1} parent=1 // pred_region
      %s53 = ssub.s32 64, 64
      %54 = vsyncadd [#allocation9], %s53
      %s56 = sshll.u32 [#allocation8], 4
      %s57 = int_to_ptr.vmem [resolvable:$true] %s56
      %59 = dma.hbm_to_vmem [thread:$0]  %s0, 64, %s57, [#allocation9]
    $region5: #{tpu_custom_call.1} parent=1 // pred_fallthru
      _
    // Predicated region
    $region6: #{tpu_custom_call.1} parent=1 // pred_check
      _
    $region7: #{tpu_custom_call.1} parent=1 // pred_check_branch
      %61 = sbr.rel (0) target = $region9
    $region8: #{tpu_custom_call.1} parent=1 // pred_region
      %s63 = ssub.s32 64, 64
      %64 = vsyncadd [#allocation12], %s63
      %s66 = sshll.u32 [#allocation11], 4
      %s67 = int_to_ptr.vmem [resolvable:$true] %s66
      %69 = dma.hbm_to_vmem [thread:$0]  %s1, 64, %s67, [#allocation12]
    $region9: #{tpu_custom_call.1} parent=1 // pred_fallthru
      _
    // Predicated region
    $region10: #{tpu_custom_call.1} parent=1 // pred_check
      _
    $region11: #{tpu_custom_call.1} parent=1 // pred_check_branch
      %71 = sbr.rel (0) target = $region13
    $region12: #{tpu_custom_call.1} parent=1 // pred_region
      %s73 = ssub.s32 512, 512
      %74 = vsyncadd [#allocation12], %s73
      %s75 = sshll.u32 [#allocation13], 4
      %s76 = int_to_ptr.vmem [resolvable:$true] %s75
      %81 = dma.hbm_to_vmem [thread:$0]  %s2, 512, %s76, [#allocation12], 64, 64, 4
    $region13: #{tpu_custom_call.1} parent=1 // pred_fallthru
      _
    // Predicated region
    $region14: #{tpu_custom_call.1} parent=1 // pred_check
      _
    $region15: #{tpu_custom_call.1} parent=1 // pred_check_branch
      %83 = sbr.rel (0) target = $region17
    $region16: #{tpu_custom_call.1} parent=1 // pred_region
      %s85 = ssub.s32 64, 64
      %86 = vsyncadd [#allocation15], %s85
      %s88 = sshll.u32 [#allocation14], 4
      %s89 = int_to_ptr.vmem [resolvable:$true] %s88
      %91 = dma.hbm_to_vmem [thread:$0]  %s3, 64, %s89, [#allocation15]
    $region17: #{tpu_custom_call.1} parent=1 // pred_fallthru
      _
    // Predicated region
    $region18: #{tpu_custom_call.1} parent=1 // pred_check
      _
    $region19: #{tpu_custom_call.1} parent=1 // pred_check_branch
      %93 = sbr.rel (0) target = $region21
    $region20: #{tpu_custom_call.1} parent=1 // pred_region
      %s95 = ssub.s32 256, 256
      %96 = vsyncadd [#allocation15], %s95
      %s97 = sshll.u32 [#allocation16], 4
      %s98 = int_to_ptr.vmem [resolvable:$true] %s97
      %103 = dma.hbm_to_vmem [thread:$0]  %s4, 256, %s98, [#allocation15], 64, 64, 4
    $region21: #{tpu_custom_call.1} parent=1 // pred_fallthru
      _
    // Predicated region
    $region22: #{tpu_custom_call.1} parent=1 // pred_check
      _
    $region23: #{tpu_custom_call.1} parent=1 // pred_check_branch
      %105 = sbr.rel (0) target = $region25
    $region24: #{tpu_custom_call.1} parent=1 // pred_region
      %s107 = ssub.s32 32, 32
      %108 = vsyncadd [#allocation18], %s107
      %s110 = sshll.u32 [#allocation17], 4
      %s111 = int_to_ptr.vmem [resolvable:$true] %s110
      %113 = dma.hbm_to_vmem [thread:$0]  %s5, 32, %s111, [#allocation18]
    $region25: #{tpu_custom_call.1} parent=1 // pred_fallthru
      _
    // Predicated region
    $region26: #{tpu_custom_call.1} parent=1 // pred_check
      _
    $region27: #{tpu_custom_call.1} parent=1 // pred_check_branch
      %115 = sbr.rel (0) target = $region29
    $region28: #{tpu_custom_call.1} parent=1 // pred_region
      %s117 = ssub.s32 256, 256
      %118 = vsyncadd [#allocation18], %s117
      %s119 = sshll.u32 [#allocation19], 4
      %s120 = int_to_ptr.vmem [resolvable:$true] %s119
      %125 = dma.hbm_to_vmem [thread:$0]  %s6, 256, %s120, [#allocation18], 64, 64, 4
    $region29: #{tpu_custom_call.1} parent=1 // pred_fallthru
      _
    // Predicated region
    $region30: #{tpu_custom_call.1} parent=1 // pred_check
      _
    $region31: #{tpu_custom_call.1} parent=1 // pred_check_branch
      %127 = sbr.rel (0) target = $region33
    $region32: #{tpu_custom_call.1} parent=1 // pred_region
      %s129 = ssub.s32 384, 384
      %130 = vsyncadd [#allocation21], %s129
      %s131 = sshll.u32 [#allocation20], 4
      %s132 = int_to_ptr.vmem [resolvable:$true] %s131
      %137 = dma.hbm_to_vmem [thread:$0]  %s7, 384, %s132, [#allocation21], 64, 64, 4
    $region33: #{tpu_custom_call.1} parent=1 // pred_fallthru
      _
    // Predicated region
    $region34: #{tpu_custom_call.1} parent=1 // pred_check
      _
    $region35: #{tpu_custom_call.1} parent=1 // pred_check_branch
      %139 = sbr.rel (0) target = $region37
    $region36: #{tpu_custom_call.1} parent=1 // pred_region
      %s141 = ssub.s32 64, 64
      %142 = vsyncadd [#allocation21], %s141
      %s144 = sshll.u32 [#allocation22], 4
      %s145 = int_to_ptr.vmem [resolvable:$true] %s144
      %147 = dma.hbm_to_vmem [thread:$0]  %s8, 64, %s145, [#allocation21]
    $region37: #{tpu_custom_call.1} parent=1 // pred_fallthru
      _
    // Predicated region
    $region38: #{tpu_custom_call.1} parent=1 // pred_check
      _
    $region39: #{tpu_custom_call.1} parent=1 // pred_check_branch
      %149 = sbr.rel (0) target = $region41
    $region40: #{tpu_custom_call.1} parent=1 // pred_region
      %s151 = ssub.s32 256, 256
      %152 = vsyncadd [#allocation24], %s151
      %s153 = sshll.u32 [#allocation23], 4
      %s154 = int_to_ptr.vmem [resolvable:$true] %s153
      %159 = dma.hbm_to_vmem [thread:$0]  %s9, 256, %s154, [#allocation24], 64, 64, 4
    $region41: #{tpu_custom_call.1} parent=1 // pred_fallthru
      _
    // Predicated region
    $region42: #{tpu_custom_call.1} parent=1 // pred_check
      _
    $region43: #{tpu_custom_call.1} parent=1 // pred_check_branch
      %161 = sbr.rel (0) target = $region45
    $region44: #{tpu_custom_call.1} parent=1 // pred_region
      %s163 = ssub.s32 32, 32
      %164 = vsyncadd [#allocation24], %s163
      %s166 = sshll.u32 [#allocation25], 4
      %s167 = int_to_ptr.vmem [resolvable:$true] %s166
      %169 = dma.hbm_to_vmem [thread:$0]  %s10, 32, %s167, [#allocation24]
    $region45: #{tpu_custom_call.1} parent=1 // pred_fallthru
      _
    // Predicated region
    $region46: #{tpu_custom_call.1} parent=1 // pred_check
      _
    $region47: #{tpu_custom_call.1} parent=1 // pred_check_branch
      %171 = sbr.rel (0) target = $region49
    $region48: #{tpu_custom_call.1} parent=1 // pred_region
      %s173 = ssub.s32 256, 256
      %174 = vsyncadd [#allocation27], %s173
      %s175 = sshll.u32 [#allocation26], 4
      %s176 = int_to_ptr.vmem [resolvable:$true] %s175
      %181 = dma.hbm_to_vmem [thread:$0]  %s11, 256, %s176, [#allocation27], 64, 64, 4
    $region49: #{tpu_custom_call.1} parent=1 // pred_fallthru
      _
    // Predicated region
    $region50: #{tpu_custom_call.1} parent=1 // pred_check
      _
    $region51: #{tpu_custom_call.1} parent=1 // pred_check_branch
      %183 = sbr.rel (0) target = $region53
    $region52: #{tpu_custom_call.1} parent=1 // pred_region
      %s185 = ssub.s32 512, 512
      %186 = vsyncadd [#allocation27], %s185
      %s187 = sshll.u32 [#allocation28], 4
      %s188 = int_to_ptr.vmem [resolvable:$true] %s187
      %193 = dma.hbm_to_vmem [thread:$0]  %s12, 512, %s188, [#allocation27], 64, 64, 4
    $region53: #{tpu_custom_call.1} parent=1 // pred_fallthru
      _
    // Predicated region
    $region54: #{tpu_custom_call.1} parent=1 // pred_check
      _
    $region55: #{tpu_custom_call.1} parent=1 // pred_check_branch
      %195 = sbr.rel (0) target = $region57
    $region56: #{tpu_custom_call.1} parent=1 // pred_region
      %s197 = ssub.s32 64, 64
      %198 = vsyncadd [#allocation30], %s197
      %s200 = sshll.u32 [#allocation29], 4
      %s201 = int_to_ptr.vmem [resolvable:$true] %s200
      %203 = dma.hbm_to_vmem [thread:$0]  %s13, 64, %s201, [#allocation30]
    $region57: #{tpu_custom_call.1} parent=1 // pred_fallthru
      _
    // Predicated region
    $region58: #{tpu_custom_call.1} parent=1 // pred_check
      _
    $region59: #{tpu_custom_call.1} parent=1 // pred_check_branch
      %205 = sbr.rel (0) target = $region61
    $region60: #{tpu_custom_call.1} parent=1 // pred_region
      %s207 = ssub.s32 256, 256
      %208 = vsyncadd [#allocation30], %s207
      %s209 = sshll.u32 [#allocation31], 4
      %s210 = int_to_ptr.vmem [resolvable:$true] %s209
      %215 = dma.hbm_to_vmem [thread:$0]  %s14, 256, %s210, [#allocation30], 64, 64, 4
    $region61: #{tpu_custom_call.1} parent=1 // pred_fallthru
      _
    // Predicated region
    $region62: #{tpu_custom_call.1} parent=1 // pred_check
      _
    $region63: #{tpu_custom_call.1} parent=1 // pred_check_branch
      %217 = sbr.rel (0) target = $region65
    $region64: #{tpu_custom_call.1} parent=1 // pred_region
      %s219 = ssub.s32 32, 32
      %220 = vsyncadd [#allocation33], %s219
      %s222 = sshll.u32 [#allocation32], 4
      %s223 = int_to_ptr.vmem [resolvable:$true] %s222
      %225 = dma.hbm_to_vmem [thread:$0]  %s15, 32, %s223, [#allocation33]
    $region65: #{tpu_custom_call.1} parent=1 // pred_fallthru
      _
    // Predicated region
    $region66: #{tpu_custom_call.1} parent=1 // pred_check
      _
    $region67: #{tpu_custom_call.1} parent=1 // pred_check_branch
      %227 = sbr.rel (0) target = $region69
    $region68: #{tpu_custom_call.1} parent=1 // pred_region
      %s229 = ssub.s32 256, 256
      %230 = vsyncadd [#allocation33], %s229
      %s231 = sshll.u32 [#allocation34], 4
      %s232 = int_to_ptr.vmem [resolvable:$true] %s231
      %237 = dma.hbm_to_vmem [thread:$0]  %s16, 256, %s232, [#allocation33], 64, 64, 4
    $region69: #{tpu_custom_call.1} parent=1 // pred_fallthru
      _
    // Predicated region
    $region70: #{tpu_custom_call.1} parent=1 // pred_check
      _
    $region71: #{tpu_custom_call.1} parent=1 // pred_check_branch
      %239 = sbr.rel (0) target = $region73
    $region72: #{tpu_custom_call.1} parent=1 // pred_region
      %s241 = ssub.s32 384, 384
      %242 = vsyncadd [#allocation36], %s241
      %s243 = sshll.u32 [#allocation35], 4
      %s244 = int_to_ptr.vmem [resolvable:$true] %s243
      %249 = dma.hbm_to_vmem [thread:$0]  %s17, 384, %s244, [#allocation36], 64, 64, 4
    $region73: #{tpu_custom_call.1} parent=1 // pred_fallthru
      _
    // Predicated region
    $region74: #{tpu_custom_call.1} parent=1 // pred_check
      _
    $region75: #{tpu_custom_call.1} parent=1 // pred_check_branch
      %251 = sbr.rel (0) target = $region77
    $region76: #{tpu_custom_call.1} parent=1 // pred_region
      %s253 = ssub.s32 64, 64
      %254 = vsyncadd [#allocation36], %s253
      %s256 = sshll.u32 [#allocation37], 4
      %s257 = int_to_ptr.vmem [resolvable:$true] %s256
      %259 = dma.hbm_to_vmem [thread:$0]  %s18, 64, %s257, [#allocation36]
    $region77: #{tpu_custom_call.1} parent=1 // pred_fallthru
      _
    // Predicated region
    $region78: #{tpu_custom_call.1} parent=1 // pred_check
      _
    $region79: #{tpu_custom_call.1} parent=1 // pred_check_branch
      %261 = sbr.rel (0) target = $region81
    $region80: #{tpu_custom_call.1} parent=1 // pred_region
      %s263 = ssub.s32 256, 256
      %264 = vsyncadd [#allocation39], %s263
      %s265 = sshll.u32 [#allocation38], 4
      %s266 = int_to_ptr.vmem [resolvable:$true] %s265
      %271 = dma.hbm_to_vmem [thread:$0]  %s19, 256, %s266, [#allocation39], 64, 64, 4
    $region81: #{tpu_custom_call.1} parent=1 // pred_fallthru
      _
    // Predicated region
    $region82: #{tpu_custom_call.1} parent=1 // pred_check
      _
    $region83: #{tpu_custom_call.1} parent=1 // pred_check_branch
      %273 = sbr.rel (0) target = $region85
    $region84: #{tpu_custom_call.1} parent=1 // pred_region
      %s275 = ssub.s32 32, 32
      %276 = vsyncadd [#allocation39], %s275
      %s278 = sshll.u32 [#allocation40], 4
      %s279 = int_to_ptr.vmem [resolvable:$true] %s278
      %281 = dma.hbm_to_vmem [thread:$0]  %s20, 32, %s279, [#allocation39]
    $region85: #{tpu_custom_call.1} parent=1 // pred_fallthru
      _
    // Predicated region
    $region86: #{tpu_custom_call.1} parent=1 // pred_check
      _
    $region87: #{tpu_custom_call.1} parent=1 // pred_check_branch
      %283 = sbr.rel (0) target = $region89
    $region88: #{tpu_custom_call.1} parent=1 // pred_region
      %s285 = ssub.s32 256, 256
      %286 = vsyncadd [#allocation42], %s285
      %s287 = sshll.u32 [#allocation41], 4
      %s288 = int_to_ptr.vmem [resolvable:$true] %s287
      %293 = dma.hbm_to_vmem [thread:$0]  %s21, 256, %s288, [#allocation42], 64, 64, 4
    $region89: #{tpu_custom_call.1} parent=1 // pred_fallthru
      _
    // Predicated region
    $region90: #{tpu_custom_call.1} parent=1 // pred_check
      _
    $region91: #{tpu_custom_call.1} parent=1 // pred_check_branch
      %295 = sbr.rel (0) target = $region93
    $region92: #{tpu_custom_call.1} parent=1 // pred_region
      %s297 = ssub.s32 256, 256
      %298 = vsyncadd [#allocation42], %s297
      %s299 = sshll.u32 [#allocation43], 4
      %s300 = int_to_ptr.vmem [resolvable:$true] %s299
      %305 = dma.hbm_to_vmem [thread:$0]  %s22, 256, %s300, [#allocation42], 64, 64, 4
    $region93: #{tpu_custom_call.1} parent=1 // pred_fallthru
      _
    // Predicated region
    $region94: #{tpu_custom_call.1} parent=1 // pred_check
      _
    $region95: #{tpu_custom_call.1} parent=1 // pred_check_branch
      %307 = sbr.rel (0) target = $region97
    $region96: #{tpu_custom_call.1} parent=1 // pred_region
      %s309 = ssub.s32 256, 256
      %310 = vsyncadd [#allocation45], %s309
      %s311 = sshll.u32 [#allocation44], 4
      %s312 = int_to_ptr.vmem [resolvable:$true] %s311
      %317 = dma.hbm_to_vmem [thread:$0]  %s23, 256, %s312, [#allocation45], 64, 64, 4
    $region97: #{tpu_custom_call.1} parent=1 // pred_fallthru
      _
    // Predicated region
    $region98: #{tpu_custom_call.1} parent=1 // pred_check
      _
    $region99: #{tpu_custom_call.1} parent=1 // pred_check_branch
      %319 = sbr.rel (0) target = $region101
    $region100: #{tpu_custom_call.1} parent=1 // pred_region
      %320 = dma.done [#allocation9], 64
    $region101: #{tpu_custom_call.1} parent=1 // pred_fallthru
      _
    // Predicated region
    $region102: #{tpu_custom_call.1} parent=1 // pred_check
      _
    $region103: #{tpu_custom_call.1} parent=1 // pred_check_branch
      %322 = sbr.rel (0) target = $region105
    $region104: #{tpu_custom_call.1} parent=1 // pred_region
      %323 = dma.done [#allocation12], 64
    $region105: #{tpu_custom_call.1} parent=1 // pred_fallthru
      _
    // Predicated region
    $region106: #{tpu_custom_call.1} parent=1 // pred_check
      _
    $region107: #{tpu_custom_call.1} parent=1 // pred_check_branch
      %325 = sbr.rel (0) target = $region109
    $region108: #{tpu_custom_call.1} parent=1 // pred_region
      %326 = dma.done [#allocation12], 512
    $region109: #{tpu_custom_call.1} parent=1 // pred_fallthru
      _
    // Predicated region
    $region110: #{tpu_custom_call.1} parent=1 // pred_check
      _
    $region111: #{tpu_custom_call.1} parent=1 // pred_check_branch
      %328 = sbr.rel (0) target = $region113
    $region112: #{tpu_custom_call.1} parent=1 // pred_region
      %329 = dma.done [#allocation15], 64
    $region113: #{tpu_custom_call.1} parent=1 // pred_fallthru
      _
    // Predicated region
    $region114: #{tpu_custom_call.1} parent=1 // pred_check
      _
    $region115: #{tpu_custom_call.1} parent=1 // pred_check_branch
      %331 = sbr.rel (0) target = $region117
    $region116: #{tpu_custom_call.1} parent=1 // pred_region
      %332 = dma.done [#allocation15], 256
    $region117: #{tpu_custom_call.1} parent=1 // pred_fallthru
      _
    // Predicated region
    $region118: #{tpu_custom_call.1} parent=1 // pred_check
      _
    $region119: #{tpu_custom_call.1} parent=1 // pred_check_branch
      %334 = sbr.rel (0) target = $region121
    $region120: #{tpu_custom_call.1} parent=1 // pred_region
      %335 = dma.done [#allocation18], 32
    $region121: #{tpu_custom_call.1} parent=1 // pred_fallthru
      _
    // Predicated region
    $region122: #{tpu_custom_call.1} parent=1 // pred_check
      _
    $region123: #{tpu_custom_call.1} parent=1 // pred_check_branch
      %337 = sbr.rel (0) target = $region125
    $region124: #{tpu_custom_call.1} parent=1 // pred_region
      %338 = dma.done [#allocation18], 256
    $region125: #{tpu_custom_call.1} parent=1 // pred_fallthru
      _
    // Predicated region
    $region126: #{tpu_custom_call.1} parent=1 // pred_check
      _
    $region127: #{tpu_custom_call.1} parent=1 // pred_check_branch
      %340 = sbr.rel (0) target = $region129
    $region128: #{tpu_custom_call.1} parent=1 // pred_region
      %341 = dma.done [#allocation21], 384
    $region129: #{tpu_custom_call.1} parent=1 // pred_fallthru
      _
    // Predicated region
    $region130: #{tpu_custom_call.1} parent=1 // pred_check
      _
    $region131: #{tpu_custom_call.1} parent=1 // pred_check_branch
      %343 = sbr.rel (0) target = $region133
    $region132: #{tpu_custom_call.1} parent=1 // pred_region
      %344 = dma.done [#allocation21], 64
    $region133: #{tpu_custom_call.1} parent=1 // pred_fallthru
      _
    // Predicated region
    $region134: #{tpu_custom_call.1} parent=1 // pred_check
      _
    $region135: #{tpu_custom_call.1} parent=1 // pred_check_branch
      %346 = sbr.rel (0) target = $region137
    $region136: #{tpu_custom_call.1} parent=1 // pred_region
      %347 = dma.done [#allocation24], 256
    $region137: #{tpu_custom_call.1} parent=1 // pred_fallthru
      _
    // Predicated region
    $region138: #{tpu_custom_call.1} parent=1 // pred_check
      _
    $region139: #{tpu_custom_call.1} parent=1 // pred_check_branch
      %349 = sbr.rel (0) target = $region141
    $region140: #{tpu_custom_call.1} parent=1 // pred_region
      %350 = dma.done [#allocation24], 32
    $region141: #{tpu_custom_call.1} parent=1 // pred_fallthru
      _
    // Predicated region
    $region142: #{tpu_custom_call.1} parent=1 // pred_check
      _
    $region143: #{tpu_custom_call.1} parent=1 // pred_check_branch
      %352 = sbr.rel (0) target = $region145
    $region144: #{tpu_custom_call.1} parent=1 // pred_region
      %353 = dma.done [#allocation27], 256
    $region145: #{tpu_custom_call.1} parent=1 // pred_fallthru
      _
    // Predicated region
    $region146: #{tpu_custom_call.1} parent=1 // pred_check
      _
    $region147: #{tpu_custom_call.1} parent=1 // pred_check_branch
      %355 = sbr.rel (0) target = $region149
    $region148: #{tpu_custom_call.1} parent=1 // pred_region
      %356 = dma.done [#allocation27], 512
    $region149: #{tpu_custom_call.1} parent=1 // pred_fallthru
      _
    // Predicated region
    $region150: #{tpu_custom_call.1} parent=1 // pred_check
      _
    $region151: #{tpu_custom_call.1} parent=1 // pred_check_branch
      %358 = sbr.rel (0) target = $region153
    $region152: #{tpu_custom_call.1} parent=1 // pred_region
      %359 = dma.done [#allocation30], 64
    $region153: #{tpu_custom_call.1} parent=1 // pred_fallthru
      _
    // Predicated region
    $region154: #{tpu_custom_call.1} parent=1 // pred_check
      _
    $region155: #{tpu_custom_call.1} parent=1 // pred_check_branch
      %361 = sbr.rel (0) target = $region157
    $region156: #{tpu_custom_call.1} parent=1 // pred_region
      %362 = dma.done [#allocation30], 256
    $region157: #{tpu_custom_call.1} parent=1 // pred_fallthru
      _
    // Predicated region
    $region158: #{tpu_custom_call.1} parent=1 // pred_check
      _
    $region159: #{tpu_custom_call.1} parent=1 // pred_check_branch
      %364 = sbr.rel (0) target = $region161
    $region160: #{tpu_custom_call.1} parent=1 // pred_region
      %365 = dma.done [#allocation33], 32
    $region161: #{tpu_custom_call.1} parent=1 // pred_fallthru
      _
    // Predicated region
    $region162: #{tpu_custom_call.1} parent=1 // pred_check
      _
    $region163: #{tpu_custom_call.1} parent=1 // pred_check_branch
      %367 = sbr.rel (0) target = $region165
    $region164: #{tpu_custom_call.1} parent=1 // pred_region
      %368 = dma.done [#allocation33], 256
    $region165: #{tpu_custom_call.1} parent=1 // pred_fallthru
      _
    // Predicated region
    $region166: #{tpu_custom_call.1} parent=1 // pred_check
      _
    $region167: #{tpu_custom_call.1} parent=1 // pred_check_branch
      %370 = sbr.rel (0) target = $region169
    $region168: #{tpu_custom_call.1} parent=1 // pred_region
      %371 = dma.done [#allocation36], 384
    $region169: #{tpu_custom_call.1} parent=1 // pred_fallthru
      _
    // Predicated region
    $region170: #{tpu_custom_call.1} parent=1 // pred_check
      _
    $region171: #{tpu_custom_call.1} parent=1 // pred_check_branch
      %373 = sbr.rel (0) target = $region173
    $region172: #{tpu_custom_call.1} parent=1 // pred_region
      %374 = dma.done [#allocation36], 64
    $region173: #{tpu_custom_call.1} parent=1 // pred_fallthru
      _
    // Predicated region
    $region174: #{tpu_custom_call.1} parent=1 // pred_check
      _
    $region175: #{tpu_custom_call.1} parent=1 // pred_check_branch
      %376 = sbr.rel (0) target = $region177
    $region176: #{tpu_custom_call.1} parent=1 // pred_region
      %377 = dma.done [#allocation39], 256
    $region177: #{tpu_custom_call.1} parent=1 // pred_fallthru
      _
    // Predicated region
    $region178: #{tpu_custom_call.1} parent=1 // pred_check
      _
    $region179: #{tpu_custom_call.1} parent=1 // pred_check_branch
      %379 = sbr.rel (0) target = $region181
    $region180: #{tpu_custom_call.1} parent=1 // pred_region
      %380 = dma.done [#allocation39], 32
    $region181: #{tpu_custom_call.1} parent=1 // pred_fallthru
      _
    // Predicated region
    $region182: #{tpu_custom_call.1} parent=1 // pred_check
      _
    $region183: #{tpu_custom_call.1} parent=1 // pred_check_branch
      %382 = sbr.rel (0) target = $region185
    $region184: #{tpu_custom_call.1} parent=1 // pred_region
      %383 = dma.done [#allocation42], 256
    $region185: #{tpu_custom_call.1} parent=1 // pred_fallthru
      _
    // Predicated region
    $region186: #{tpu_custom_call.1} parent=1 // pred_check
      _
    $region187: #{tpu_custom_call.1} parent=1 // pred_check_branch
      %385 = sbr.rel (0) target = $region189
    $region188: #{tpu_custom_call.1} parent=1 // pred_region
      %386 = dma.done [#allocation42], 256
    $region189: #{tpu_custom_call.1} parent=1 // pred_fallthru
      _
    // Predicated region
    $region190: #{tpu_custom_call.1} parent=1 // pred_check
      _
    $region191: #{tpu_custom_call.1} parent=1 // pred_check_branch
      %388 = sbr.rel (0) target = $region193
    $region192: #{tpu_custom_call.1} parent=1 // pred_region
      %389 = dma.done [#allocation45], 256
    $region193: #{tpu_custom_call.1} parent=1 // pred_fallthru
      _
    %p391 = scmp.eq.s32.totalorder 0, 0
    // Predicated region
    $region194: #{tpu_custom_call.1} parent=1 // pred_check
      %p392 = pneg %p391
    $region195: #{tpu_custom_call.1} parent=1 // pred_check_branch
      %394 = sbr.rel (%p392) target = $region197
    $region196: #{tpu_custom_call.1} parent=1 // pred_region
      %v395 = vld [vmem:[#allocation8] sm:$0xf]
      %v396 = vld [vmem:[#allocation11] sm:$0xf]
      %v397 = vld [vmem:[#allocation14] sm:$0x7]
      %v398 = vld [vmem:[#allocation17] sm:$0x3]
      %v399 = vld [vmem:[#allocation13] sm:$0xf]
      %v400 = vld [vmem:[#allocation13 + $0x4] sm:$0xf]
      %v401 = vld [vmem:[#allocation13 + $0x8] sm:$0xf]
      %v402 = vld [vmem:[#allocation13 + $0xc] sm:$0xf]
      %v403 = vld [vmem:[#allocation13 + $0x10] sm:$0xf]
      %v404 = vld [vmem:[#allocation13 + $0x14] sm:$0xf]
      %v405 = vld [vmem:[#allocation13 + $0x18] sm:$0xf]
      %v406 = vld [vmem:[#allocation13 + $0x1c] sm:$0xf]
      %v407 = vlaneseq
      %v408 = vshrl.u32 %v407, 7
      %v409 = vsub.s32 0, %v408
      %v410 = vrot.slane %v397, %v409
      %v419 = vunpack.c.l.b16 %v399
      %v420 = vunpack.c.l.b16 %v400
      %v421 = vunpack.c.l.b16 %v401
      %v422 = vunpack.c.l.b16 %v402
      %v423 = vunpack.c.l.b16 %v403
      %v424 = vunpack.c.l.b16 %v404
      %v425 = vunpack.c.l.b16 %v405
      %v426 = vunpack.c.l.b16 %v406
      %v427 = vpack.c.b16 %v420, %v419
      %v428 = vpack.c.b16 %v422, %v421
      %v429 = vpack.c.b16 %v424, %v423
      %v430 = vpack.c.b16 %v426, %v425
      %vm435 = vcmask 523264
      %v437 = vsel %vm435, %v395, 0
      %439 = vmatprep.subr.bf16.mxu0 0
      %440 = vmatpush1.bf16.msra.mxu0 %v427
      %441 = vmatprep.subr.bf16.mxu0 0
      %442 = vmatpush1.bf16.msra.mxu0 %v428
      %443 = vmatprep.subr.bf16.mxu0 0
      %444 = vmatpush1.bf16.msra.mxu0 %v429
      %445 = vmatprep.subr.bf16.mxu0 0
      %446 = vmatpush1.bf16.msra.mxu0 %v430
      %447 = vmatprep.subr.bf16.mxu0 0
      %448 = vmatpush1.bf16.msra.mxu0 0
      %449 = vmatprep.subr.bf16.mxu0 0
      %450 = vmatpush1.bf16.msra.mxu0 0
      %451 = vmatprep.subr.bf16.mxu0 0
      %452 = vmatpush1.bf16.msra.mxu0 0
      %453 = vmatprep.subr.bf16.mxu0 0
      %454 = vmatpush1.bf16.msra.mxu0 0
      %455 = vmatprep.subr.bf16.mxu0 0
      %456 = vmatpush1.bf16.msra.mxu0 0
      %457 = vmatprep.subr.bf16.mxu0 0
      %458 = vmatpush1.bf16.msra.mxu0 0
      %459 = vmatprep.subr.bf16.mxu0 0
      %460 = vmatpush1.bf16.msra.mxu0 0
      %461 = vmatprep.subr.bf16.mxu0 0
      %462 = vmatpush1.bf16.msra.mxu0 0
      %463 = vmatprep.subr.bf16.mxu0 0
      %464 = vmatpush1.bf16.msra.mxu0 0
      %465 = vmatprep.subr.bf16.mxu0 0
      %466 = vmatpush1.bf16.msra.mxu0 0
      %467 = vmatprep.subr.bf16.mxu0 0
      %468 = vmatpush1.bf16.msra.mxu0 0
      %469 = vmatprep.subr.bf16.mxu0 0
      %470 = vmatpush1.bf16.msra.mxu0 0
      %471 = vmatprep.mubr.bf16.mxu0 0
      %472 = vmatmul.mubr.bf16.gmra.mrb[0].mxu0 %v437
      %v473 = vpop.f32.mrb[0].mxu0
      %v474 = vadd.f32 %v410, %v473
      %v475 = vpop.f32.mrb[0].mxu0
      %v476 = vpop.f32.mrb[0].mxu0
      %v477 = vpop.f32.mrb[0].mxu0
      %478 = vdwg.mxu0
      %vm479 = vcmask 261120
      %v480 = vsel %vm479, %v474, 0.0
      %481 = vadd.xlane.f32.xlu0 %v480
      %v482 = vpop.xlane.xlu0 %481
      %v483 = vrcp.pop 32.0
      %v484 = vmul.f32 %v482, %v483
      %v485 = vsub.f32 %v474, %v484
      %v486 = vmul.f32 %v485, %v485
      %v487 = vsel %vm479, %v486, 0.0
      %488 = vadd.xlane.f32.xlu0 %v487
      %v489 = vpop.xlane.xlu0 %488
      %v490 = vmul.f32 %v489, %v483
      %v491 = vadd.f32 %v490, 1e-05
      %v492 = vrsqrt.pop %v491
      %v493 = vmul.f32 %v485, %v492
      %v494 = vlaneseq
      %v495 = vshrl.u32 %v494, 7
      %v496 = vsub.s32 1, %v495
      %v497 = vrot.slane %v397, %v496
      %v498 = vmul.f32 %v493, %v497
      %v499 = vlaneseq
      %v500 = vshrl.u32 %v499, 7
      %v501 = vsub.s32 2, %v500
      %v502 = vrot.slane %v397, %v501
      %v503 = vadd.f32 %v498, %v502
      %v504 = vxor.u32 %v503, 2147483648
      %v505 = vmul.f32 %v504, 1.442695
      %v506 = vpow.pop %v505
      %v507 = vadd.f32 %v506, 1.0
      %v508 = vrcp.pop %v507
      %v509 = vmul.f32 1.0, %v508
      %v510 = vmul.f32 %v503, %v509
      %v511 = vpack.c.bf16 %v510, %v510
      %v512 = vld [vmem:[#allocation16] sm:$0xf]
      %v513 = vld [vmem:[#allocation16 + $0x4] sm:$0xf]
      %v514 = vld [vmem:[#allocation16 + $0x8] sm:$0xf]
      %v515 = vld [vmem:[#allocation16 + $0xc] sm:$0xf]
      %v516 = vlaneseq
      %v517 = vshrl.u32 %v516, 7
      %v518 = vsub.s32 0, %v517
      %v519 = vrot.slane %v398, %v518
      %v524 = vunpack.c.l.b16 %v512
      %v525 = vunpack.c.l.b16 %v513
      %v526 = vunpack.c.l.b16 %v514
      %v527 = vunpack.c.l.b16 %v515
      %v528 = vpack.c.b16 %v525, %v524
      %v529 = vpack.c.b16 %v527, %v526
      %v533 = vsel %vm479, %v511, 0
      %535 = vmatprep.subr.bf16.mxu0 0
      %536 = vmatpush1.bf16.msra.mxu0 %v528
      %537 = vmatprep.subr.bf16.mxu0 0
      %538 = vmatpush1.bf16.msra.mxu0 %v529
      %539 = vmatprep.subr.bf16.mxu0 0
      %540 = vmatpush1.bf16.msra.mxu0 0
      %541 = vmatprep.subr.bf16.mxu0 0
      %542 = vmatpush1.bf16.msra.mxu0 0
      %543 = vmatprep.subr.bf16.mxu0 0
      %544 = vmatpush1.bf16.msra.mxu0 0
      %545 = vmatprep.subr.bf16.mxu0 0
      %546 = vmatpush1.bf16.msra.mxu0 0
      %547 = vmatprep.subr.bf16.mxu0 0
      %548 = vmatpush1.bf16.msra.mxu0 0
      %549 = vmatprep.subr.bf16.mxu0 0
      %550 = vmatpush1.bf16.msra.mxu0 0
      %551 = vmatprep.subr.bf16.mxu0 0
      %552 = vmatpush1.bf16.msra.mxu0 0
      %553 = vmatprep.subr.bf16.mxu0 0
      %554 = vmatpush1.bf16.msra.mxu0 0
      %555 = vmatprep.subr.bf16.mxu0 0
      %556 = vmatpush1.bf16.msra.mxu0 0
      %557 = vmatprep.subr.bf16.mxu0 0
      %558 = vmatpush1.bf16.msra.mxu0 0
      %559 = vmatprep.subr.bf16.mxu0 0
      %560 = vmatpush1.bf16.msra.mxu0 0
      %561 = vmatprep.subr.bf16.mxu0 0
      %562 = vmatpush1.bf16.msra.mxu0 0
      %563 = vmatprep.subr.bf16.mxu0 0
      %564 = vmatpush1.bf16.msra.mxu0 0
      %565 = vmatprep.subr.bf16.mxu0 0
      %566 = vmatpush1.bf16.msra.mxu0 0
      %567 = vmatprep.mubr.bf16.mxu0 0
      %568 = vmatmul.mubr.bf16.gmra.mrb[0].mxu0 %v533
      %v569 = vpop.f32.mrb[0].mxu0
      %v570 = vadd.f32 %v519, %v569
      %v571 = vpop.f32.mrb[0].mxu0
      %v572 = vpop.f32.mrb[0].mxu0
      %v573 = vpop.f32.mrb[0].mxu0
      %574 = vdwg.mxu0
      %v575 = vpack.c.bf16 %v570, %v570
      %v576 = vld [vmem:[#allocation19] sm:$0xf]
      %v577 = vld [vmem:[#allocation19 + $0x4] sm:$0xf]
      %v578 = vld [vmem:[#allocation19 + $0x8] sm:$0xf]
      %v579 = vld [vmem:[#allocation19 + $0xc] sm:$0xf]
      %v580 = vlaneseq
      %v581 = vshrl.u32 %v580, 7
      %v582 = vsub.s32 1, %v581
      %v583 = vrot.slane %v398, %v582
      %v588 = vunpack.c.l.b16 %v576
      %v589 = vunpack.c.l.b16 %v577
      %v590 = vunpack.c.l.b16 %v578
      %v591 = vunpack.c.l.b16 %v579
      %v592 = vpack.c.b16 %v589, %v588
      %v593 = vpack.c.b16 %v591, %v590
      %v597 = vsel %vm479, %v575, 0
      %599 = vmatprep.subr.bf16.mxu0 0
      %600 = vmatpush1.bf16.msra.mxu0 %v592
      %601 = vmatprep.subr.bf16.mxu0 0
      %602 = vmatpush1.bf16.msra.mxu0 %v593
      %603 = vmatprep.subr.bf16.mxu0 0
      %604 = vmatpush1.bf16.msra.mxu0 0
      %605 = vmatprep.subr.bf16.mxu0 0
      %606 = vmatpush1.bf16.msra.mxu0 0
      %607 = vmatprep.subr.bf16.mxu0 0
      %608 = vmatpush1.bf16.msra.mxu0 0
      %609 = vmatprep.subr.bf16.mxu0 0
      %610 = vmatpush1.bf16.msra.mxu0 0
      %611 = vmatprep.subr.bf16.mxu0 0
      %612 = vmatpush1.bf16.msra.mxu0 0
      %613 = vmatprep.subr.bf16.mxu0 0
      %614 = vmatpush1.bf16.msra.mxu0 0
      %615 = vmatprep.subr.bf16.mxu0 0
      %616 = vmatpush1.bf16.msra.mxu0 0
      %617 = vmatprep.subr.bf16.mxu0 0
      %618 = vmatpush1.bf16.msra.mxu0 0
      %619 = vmatprep.subr.bf16.mxu0 0
      %620 = vmatpush1.bf16.msra.mxu0 0
      %621 = vmatprep.subr.bf16.mxu0 0
      %622 = vmatpush1.bf16.msra.mxu0 0
      %623 = vmatprep.subr.bf16.mxu0 0
      %624 = vmatpush1.bf16.msra.mxu0 0
      %625 = vmatprep.subr.bf16.mxu0 0
      %626 = vmatpush1.bf16.msra.mxu0 0
      %627 = vmatprep.subr.bf16.mxu0 0
      %628 = vmatpush1.bf16.msra.mxu0 0
      %629 = vmatprep.subr.bf16.mxu0 0
      %630 = vmatpush1.bf16.msra.mxu0 0
      %631 = vmatprep.mubr.bf16.mxu0 0
      %632 = vmatmul.mubr.bf16.gmra.mrb[0].mxu0 %v597
      %v633 = vpop.f32.mrb[0].mxu0
      %v634 = vadd.f32 %v583, %v633
      %v635 = vpop.f32.mrb[0].mxu0
      %v636 = vpop.f32.mrb[0].mxu0
      %v637 = vpop.f32.mrb[0].mxu0
      %638 = vdwg.mxu0
      %v639 = vmul.f32 %v634, %v634
      %v640 = vsel %vm479, %v639, 0.0
      %641 = vadd.xlane.f32.xlu0 %v640
      %v642 = vpop.xlane.xlu0 %641
      %v643 = vmax.f32 %v642, 1e-24
      %v644 = vrsqrt.pop %v643
      %v645 = vmul.f32 %v634, %v644
      %v646 = vld [vmem:[#allocation22] sm:$0x7]
      %v647 = vld [vmem:[#allocation25] sm:$0x3]
      %v648 = vld [vmem:[#allocation20] sm:$0xf]
      %v649 = vld [vmem:[#allocation20 + $0x4] sm:$0xf]
      %v650 = vld [vmem:[#allocation20 + $0x8] sm:$0xf]
      %v651 = vld [vmem:[#allocation20 + $0xc] sm:$0xf]
      %v652 = vld [vmem:[#allocation20 + $0x10] sm:$0xf]
      %v653 = vld [vmem:[#allocation20 + $0x14] sm:$0xf]
      %v654 = vlaneseq
      %v655 = vshrl.u32 %v654, 7
      %v656 = vsub.s32 0, %v655
      %v657 = vrot.slane %v646, %v656
      %v664 = vunpack.c.l.b16 %v648
      %v665 = vunpack.c.l.b16 %v649
      %v666 = vunpack.c.l.b16 %v650
      %v667 = vunpack.c.l.b16 %v651
      %v668 = vunpack.c.l.b16 %v652
      %v669 = vunpack.c.l.b16 %v653
      %v670 = vpack.c.b16 %v665, %v664
      %v671 = vpack.c.b16 %v667, %v666
      %v672 = vpack.c.b16 %v669, %v668
      %vm676 = vcmask 392192
      %v678 = vsel %vm676, %v396, 0
      %680 = vmatprep.subr.bf16.mxu0 0
      %681 = vmatpush1.bf16.msra.mxu0 %v670
      %682 = vmatprep.subr.bf16.mxu0 0
      %683 = vmatpush1.bf16.msra.mxu0 %v671
      %684 = vmatprep.subr.bf16.mxu0 0
      %685 = vmatpush1.bf16.msra.mxu0 %v672
      %686 = vmatprep.subr.bf16.mxu0 0
      %687 = vmatpush1.bf16.msra.mxu0 0
      %688 = vmatprep.subr.bf16.mxu0 0
      %689 = vmatpush1.bf16.msra.mxu0 0
      %690 = vmatprep.subr.bf16.mxu0 0
      %691 = vmatpush1.bf16.msra.mxu0 0
      %692 = vmatprep.subr.bf16.mxu0 0
      %693 = vmatpush1.bf16.msra.mxu0 0
      %694 = vmatprep.subr.bf16.mxu0 0
      %695 = vmatpush1.bf16.msra.mxu0 0
      %696 = vmatprep.subr.bf16.mxu0 0
      %697 = vmatpush1.bf16.msra.mxu0 0
      %698 = vmatprep.subr.bf16.mxu0 0
      %699 = vmatpush1.bf16.msra.mxu0 0
      %700 = vmatprep.subr.bf16.mxu0 0
      %701 = vmatpush1.bf16.msra.mxu0 0
      %702 = vmatprep.subr.bf16.mxu0 0
      %703 = vmatpush1.bf16.msra.mxu0 0
      %704 = vmatprep.subr.bf16.mxu0 0
      %705 = vmatpush1.bf16.msra.mxu0 0
      %706 = vmatprep.subr.bf16.mxu0 0
      %707 = vmatpush1.bf16.msra.mxu0 0
      %708 = vmatprep.subr.bf16.mxu0 0
      %709 = vmatpush1.bf16.msra.mxu0 0
      %710 = vmatprep.subr.bf16.mxu0 0
      %711 = vmatpush1.bf16.msra.mxu0 0
      %712 = vmatprep.mubr.bf16.mxu0 0
      %713 = vmatmul.mubr.bf16.gmra.mrb[0].mxu0 %v678
      %v714 = vpop.f32.mrb[0].mxu0
      %v715 = vadd.f32 %v657, %v714
      %v716 = vpop.f32.mrb[0].mxu0
      %v717 = vpop.f32.mrb[0].mxu0
      %v718 = vpop.f32.mrb[0].mxu0
      %719 = vdwg.mxu0
      %v720 = vsel %vm479, %v715, 0.0
      %721 = vadd.xlane.f32.xlu0 %v720
      %v722 = vpop.xlane.xlu0 %721
      %v723 = vmul.f32 %v722, %v483
      %v724 = vsub.f32 %v715, %v723
      %v725 = vmul.f32 %v724, %v724
      %v726 = vsel %vm479, %v725, 0.0
      %727 = vadd.xlane.f32.xlu0 %v726
      %v728 = vpop.xlane.xlu0 %727
      %v729 = vmul.f32 %v728, %v483
      %v730 = vadd.f32 %v729, 1e-05
      %v731 = vrsqrt.pop %v730
      %v732 = vmul.f32 %v724, %v731
      %v733 = vlaneseq
      %v734 = vshrl.u32 %v733, 7
      %v735 = vsub.s32 1, %v734
      %v736 = vrot.slane %v646, %v735
      %v737 = vmul.f32 %v732, %v736
      %v738 = vlaneseq
      %v739 = vshrl.u32 %v738, 7
      %v740 = vsub.s32 2, %v739
      %v741 = vrot.slane %v646, %v740
      %v742 = vadd.f32 %v737, %v741
      %v743 = vxor.u32 %v742, 2147483648
      %v744 = vmul.f32 %v743, 1.442695
      %v745 = vpow.pop %v744
      %v746 = vadd.f32 %v745, 1.0
      %v747 = vrcp.pop %v746
      %v748 = vmul.f32 1.0, %v747
      %v749 = vmul.f32 %v742, %v748
      %v750 = vpack.c.bf16 %v749, %v749
      %v751 = vld [vmem:[#allocation23] sm:$0xf]
      %v752 = vld [vmem:[#allocation23 + $0x4] sm:$0xf]
      %v753 = vld [vmem:[#allocation23 + $0x8] sm:$0xf]
      %v754 = vld [vmem:[#allocation23 + $0xc] sm:$0xf]
      %v755 = vlaneseq
      %v756 = vshrl.u32 %v755, 7
      %v757 = vsub.s32 0, %v756
      %v758 = vrot.slane %v647, %v757
      %v763 = vunpack.c.l.b16 %v751
      %v764 = vunpack.c.l.b16 %v752
      %v765 = vunpack.c.l.b16 %v753
      %v766 = vunpack.c.l.b16 %v754
      %v767 = vpack.c.b16 %v764, %v763
      %v768 = vpack.c.b16 %v766, %v765
      %v772 = vsel %vm479, %v750, 0
      %774 = vmatprep.subr.bf16.mxu0 0
      %775 = vmatpush1.bf16.msra.mxu0 %v767
      %776 = vmatprep.subr.bf16.mxu0 0
      %777 = vmatpush1.bf16.msra.mxu0 %v768
      %778 = vmatprep.subr.bf16.mxu0 0
      %779 = vmatpush1.bf16.msra.mxu0 0
      %780 = vmatprep.subr.bf16.mxu0 0
      %781 = vmatpush1.bf16.msra.mxu0 0
      %782 = vmatprep.subr.bf16.mxu0 0
      %783 = vmatpush1.bf16.msra.mxu0 0
      %784 = vmatprep.subr.bf16.mxu0 0
      %785 = vmatpush1.bf16.msra.mxu0 0
      %786 = vmatprep.subr.bf16.mxu0 0
      %787 = vmatpush1.bf16.msra.mxu0 0
      %788 = vmatprep.subr.bf16.mxu0 0
      %789 = vmatpush1.bf16.msra.mxu0 0
      %790 = vmatprep.subr.bf16.mxu0 0
      %791 = vmatpush1.bf16.msra.mxu0 0
      %792 = vmatprep.subr.bf16.mxu0 0
      %793 = vmatpush1.bf16.msra.mxu0 0
      %794 = vmatprep.subr.bf16.mxu0 0
      %795 = vmatpush1.bf16.msra.mxu0 0
      %796 = vmatprep.subr.bf16.mxu0 0
      %797 = vmatpush1.bf16.msra.mxu0 0
      %798 = vmatprep.subr.bf16.mxu0 0
      %799 = vmatpush1.bf16.msra.mxu0 0
      %800 = vmatprep.subr.bf16.mxu0 0
      %801 = vmatpush1.bf16.msra.mxu0 0
      %802 = vmatprep.subr.bf16.mxu0 0
      %803 = vmatpush1.bf16.msra.mxu0 0
      %804 = vmatprep.subr.bf16.mxu0 0
      %805 = vmatpush1.bf16.msra.mxu0 0
      %806 = vmatprep.mubr.bf16.mxu0 0
      %807 = vmatmul.mubr.bf16.gmra.mrb[0].mxu0 %v772
      %v808 = vpop.f32.mrb[0].mxu0
      %v809 = vadd.f32 %v758, %v808
      %v810 = vpop.f32.mrb[0].mxu0
      %v811 = vpop.f32.mrb[0].mxu0
      %v812 = vpop.f32.mrb[0].mxu0
      %813 = vdwg.mxu0
      %v814 = vpack.c.bf16 %v809, %v809
      %v815 = vld [vmem:[#allocation26] sm:$0xf]
      %v816 = vld [vmem:[#allocation26 + $0x4] sm:$0xf]
      %v817 = vld [vmem:[#allocation26 + $0x8] sm:$0xf]
      %v818 = vld [vmem:[#allocation26 + $0xc] sm:$0xf]
      %v819 = vlaneseq
      %v820 = vshrl.u32 %v819, 7
      %v821 = vsub.s32 1, %v820
      %v822 = vrot.slane %v647, %v821
      %v827 = vunpack.c.l.b16 %v815
      %v828 = vunpack.c.l.b16 %v816
      %v829 = vunpack.c.l.b16 %v817
      %v830 = vunpack.c.l.b16 %v818
      %v831 = vpack.c.b16 %v828, %v827
      %v832 = vpack.c.b16 %v830, %v829
      %v836 = vsel %vm479, %v814, 0
      %838 = vmatprep.subr.bf16.mxu0 0
      %839 = vmatpush1.bf16.msra.mxu0 %v831
      %840 = vmatprep.subr.bf16.mxu0 0
      %841 = vmatpush1.bf16.msra.mxu0 %v832
      %842 = vmatprep.subr.bf16.mxu0 0
      %843 = vmatpush1.bf16.msra.mxu0 0
      %844 = vmatprep.subr.bf16.mxu0 0
      %845 = vmatpush1.bf16.msra.mxu0 0
      %846 = vmatprep.subr.bf16.mxu0 0
      %847 = vmatpush1.bf16.msra.mxu0 0
      %848 = vmatprep.subr.bf16.mxu0 0
      %849 = vmatpush1.bf16.msra.mxu0 0
      %850 = vmatprep.subr.bf16.mxu0 0
      %851 = vmatpush1.bf16.msra.mxu0 0
      %852 = vmatprep.subr.bf16.mxu0 0
      %853 = vmatpush1.bf16.msra.mxu0 0
      %854 = vmatprep.subr.bf16.mxu0 0
      %855 = vmatpush1.bf16.msra.mxu0 0
      %856 = vmatprep.subr.bf16.mxu0 0
      %857 = vmatpush1.bf16.msra.mxu0 0
      %858 = vmatprep.subr.bf16.mxu0 0
      %859 = vmatpush1.bf16.msra.mxu0 0
      %860 = vmatprep.subr.bf16.mxu0 0
      %861 = vmatpush1.bf16.msra.mxu0 0
      %862 = vmatprep.subr.bf16.mxu0 0
      %863 = vmatpush1.bf16.msra.mxu0 0
      %864 = vmatprep.subr.bf16.mxu0 0
      %865 = vmatpush1.bf16.msra.mxu0 0
      %866 = vmatprep.subr.bf16.mxu0 0
      %867 = vmatpush1.bf16.msra.mxu0 0
      %868 = vmatprep.subr.bf16.mxu0 0
      %869 = vmatpush1.bf16.msra.mxu0 0
      %870 = vmatprep.mubr.bf16.mxu0 0
      %871 = vmatmul.mubr.bf16.gmra.mrb[0].mxu0 %v836
      %v872 = vpop.f32.mrb[0].mxu0
      %v873 = vadd.f32 %v822, %v872
      %v874 = vpop.f32.mrb[0].mxu0
      %v875 = vpop.f32.mrb[0].mxu0
      %v876 = vpop.f32.mrb[0].mxu0
      %877 = vdwg.mxu0
      %v878 = vmul.f32 %v873, %v873
      %v879 = vsel %vm479, %v878, 0.0
      %880 = vadd.xlane.f32.xlu0 %v879
      %v881 = vpop.xlane.xlu0 %880
      %v882 = vmax.f32 %v881, 1e-24
      %v883 = vrsqrt.pop %v882
      %v884 = vmul.f32 %v873, %v883
      %v885 = vld [vmem:[#allocation29] sm:$0x7]
      %v886 = vld [vmem:[#allocation32] sm:$0x3]
      %v887 = vld [vmem:[#allocation28] sm:$0xf]
      %v888 = vld [vmem:[#allocation28 + $0x4] sm:$0xf]
      %v889 = vld [vmem:[#allocation28 + $0x8] sm:$0xf]
      %v890 = vld [vmem:[#allocation28 + $0xc] sm:$0xf]
      %v891 = vld [vmem:[#allocation28 + $0x10] sm:$0xf]
      %v892 = vld [vmem:[#allocation28 + $0x14] sm:$0xf]
      %v893 = vld [vmem:[#allocation28 + $0x18] sm:$0xf]
      %v894 = vld [vmem:[#allocation28 + $0x1c] sm:$0xf]
      %v895 = vlaneseq
      %v896 = vshrl.u32 %v895, 7
      %v897 = vsub.s32 0, %v896
      %v898 = vrot.slane %v885, %v897
      %v907 = vunpack.c.l.b16 %v887
      %v908 = vunpack.c.l.b16 %v888
      %v909 = vunpack.c.l.b16 %v889
      %v910 = vunpack.c.l.b16 %v890
      %v911 = vunpack.c.l.b16 %v891
      %v912 = vunpack.c.l.b16 %v892
      %v913 = vunpack.c.l.b16 %v893
      %v914 = vunpack.c.l.b16 %v894
      %v915 = vpack.c.b16 %v908, %v907
      %v916 = vpack.c.b16 %v910, %v909
      %v917 = vpack.c.b16 %v912, %v911
      %v918 = vpack.c.b16 %v914, %v913
      %923 = vmatprep.subr.bf16.mxu0 0
      %924 = vmatpush1.bf16.msra.mxu0 %v915
      %925 = vmatprep.subr.bf16.mxu0 0
      %926 = vmatpush1.bf16.msra.mxu0 %v916
      %927 = vmatprep.subr.bf16.mxu0 0
      %928 = vmatpush1.bf16.msra.mxu0 %v917
      %929 = vmatprep.subr.bf16.mxu0 0
      %930 = vmatpush1.bf16.msra.mxu0 %v918
      %931 = vmatprep.subr.bf16.mxu0 0
      %932 = vmatpush1.bf16.msra.mxu0 0
      %933 = vmatprep.subr.bf16.mxu0 0
      %934 = vmatpush1.bf16.msra.mxu0 0
      %935 = vmatprep.subr.bf16.mxu0 0
      %936 = vmatpush1.bf16.msra.mxu0 0
      %937 = vmatprep.subr.bf16.mxu0 0
      %938 = vmatpush1.bf16.msra.mxu0 0
      %939 = vmatprep.subr.bf16.mxu0 0
      %940 = vmatpush1.bf16.msra.mxu0 0
      %941 = vmatprep.subr.bf16.mxu0 0
      %942 = vmatpush1.bf16.msra.mxu0 0
      %943 = vmatprep.subr.bf16.mxu0 0
      %944 = vmatpush1.bf16.msra.mxu0 0
      %945 = vmatprep.subr.bf16.mxu0 0
      %946 = vmatpush1.bf16.msra.mxu0 0
      %947 = vmatprep.subr.bf16.mxu0 0
      %948 = vmatpush1.bf16.msra.mxu0 0
      %949 = vmatprep.subr.bf16.mxu0 0
      %950 = vmatpush1.bf16.msra.mxu0 0
      %951 = vmatprep.subr.bf16.mxu0 0
      %952 = vmatpush1.bf16.msra.mxu0 0
      %953 = vmatprep.subr.bf16.mxu0 0
      %954 = vmatpush1.bf16.msra.mxu0 0
      %955 = vmatprep.mubr.bf16.mxu0 0
      %956 = vmatmul.mubr.bf16.gmra.mrb[0].mxu0 %v437
      %v957 = vpop.f32.mrb[0].mxu0
      %v958 = vadd.f32 %v898, %v957
      %v959 = vpop.f32.mrb[0].mxu0
      %v960 = vpop.f32.mrb[0].mxu0
      %v961 = vpop.f32.mrb[0].mxu0
      %962 = vdwg.mxu0
      %v963 = vsel %vm479, %v958, 0.0
      %964 = vadd.xlane.f32.xlu0 %v963
      %v965 = vpop.xlane.xlu0 %964
      %v966 = vmul.f32 %v965, %v483
      %v967 = vsub.f32 %v958, %v966
      %v968 = vmul.f32 %v967, %v967
      %v969 = vsel %vm479, %v968, 0.0
      %970 = vadd.xlane.f32.xlu0 %v969
      %v971 = vpop.xlane.xlu0 %970
      %v972 = vmul.f32 %v971, %v483
      %v973 = vadd.f32 %v972, 1e-05
      %v974 = vrsqrt.pop %v973
      %v975 = vmul.f32 %v967, %v974
      %v976 = vlaneseq
      %v977 = vshrl.u32 %v976, 7
      %v978 = vsub.s32 1, %v977
      %v979 = vrot.slane %v885, %v978
      %v980 = vmul.f32 %v975, %v979
      %v981 = vlaneseq
      %v982 = vshrl.u32 %v981, 7
      %v983 = vsub.s32 2, %v982
      %v984 = vrot.slane %v885, %v983
      %v985 = vadd.f32 %v980, %v984
      %v986 = vxor.u32 %v985, 2147483648
      %v987 = vmul.f32 %v986, 1.442695
      %v988 = vpow.pop %v987
      %v989 = vadd.f32 %v988, 1.0
      %v990 = vrcp.pop %v989
      %v991 = vmul.f32 1.0, %v990
      %v992 = vmul.f32 %v985, %v991
      %v993 = vpack.c.bf16 %v992, %v992
      %v994 = vld [vmem:[#allocation31] sm:$0xf]
      %v995 = vld [vmem:[#allocation31 + $0x4] sm:$0xf]
      %v996 = vld [vmem:[#allocation31 + $0x8] sm:$0xf]
      %v997 = vld [vmem:[#allocation31 + $0xc] sm:$0xf]
      %v998 = vlaneseq
      %v999 = vshrl.u32 %v998, 7
      %v1000 = vsub.s32 0, %v999
      %v1001 = vrot.slane %v886, %v1000
      %v1006 = vunpack.c.l.b16 %v994
      %v1007 = vunpack.c.l.b16 %v995
      %v1008 = vunpack.c.l.b16 %v996
      %v1009 = vunpack.c.l.b16 %v997
      %v1010 = vpack.c.b16 %v1007, %v1006
      %v1011 = vpack.c.b16 %v1009, %v1008
      %v1015 = vsel %vm479, %v993, 0
      %1017 = vmatprep.subr.bf16.mxu0 0
      %1018 = vmatpush1.bf16.msra.mxu0 %v1010
      %1019 = vmatprep.subr.bf16.mxu0 0
      %1020 = vmatpush1.bf16.msra.mxu0 %v1011
      %1021 = vmatprep.subr.bf16.mxu0 0
      %1022 = vmatpush1.bf16.msra.mxu0 0
      %1023 = vmatprep.subr.bf16.mxu0 0
      %1024 = vmatpush1.bf16.msra.mxu0 0
      %1025 = vmatprep.subr.bf16.mxu0 0
      %1026 = vmatpush1.bf16.msra.mxu0 0
      %1027 = vmatprep.subr.bf16.mxu0 0
      %1028 = vmatpush1.bf16.msra.mxu0 0
      %1029 = vmatprep.subr.bf16.mxu0 0
      %1030 = vmatpush1.bf16.msra.mxu0 0
      %1031 = vmatprep.subr.bf16.mxu0 0
      %1032 = vmatpush1.bf16.msra.mxu0 0
      %1033 = vmatprep.subr.bf16.mxu0 0
      %1034 = vmatpush1.bf16.msra.mxu0 0
      %1035 = vmatprep.subr.bf16.mxu0 0
      %1036 = vmatpush1.bf16.msra.mxu0 0
      %1037 = vmatprep.subr.bf16.mxu0 0
      %1038 = vmatpush1.bf16.msra.mxu0 0
      %1039 = vmatprep.subr.bf16.mxu0 0
      %1040 = vmatpush1.bf16.msra.mxu0 0
      %1041 = vmatprep.subr.bf16.mxu0 0
      %1042 = vmatpush1.bf16.msra.mxu0 0
      %1043 = vmatprep.subr.bf16.mxu0 0
      %1044 = vmatpush1.bf16.msra.mxu0 0
      %1045 = vmatprep.subr.bf16.mxu0 0
      %1046 = vmatpush1.bf16.msra.mxu0 0
      %1047 = vmatprep.subr.bf16.mxu0 0
      %1048 = vmatpush1.bf16.msra.mxu0 0
      %1049 = vmatprep.mubr.bf16.mxu0 0
      %1050 = vmatmul.mubr.bf16.gmra.mrb[0].mxu0 %v1015
      %v1051 = vpop.f32.mrb[0].mxu0
      %v1052 = vadd.f32 %v1001, %v1051
      %v1053 = vpop.f32.mrb[0].mxu0
      %v1054 = vpop.f32.mrb[0].mxu0
      %v1055 = vpop.f32.mrb[0].mxu0
      %1056 = vdwg.mxu0
      %v1057 = vpack.c.bf16 %v1052, %v1052
      %v1058 = vld [vmem:[#allocation34] sm:$0xf]
      %v1059 = vld [vmem:[#allocation34 + $0x4] sm:$0xf]
      %v1060 = vld [vmem:[#allocation34 + $0x8] sm:$0xf]
      %v1061 = vld [vmem:[#allocation34 + $0xc] sm:$0xf]
      %v1062 = vlaneseq
      %v1063 = vshrl.u32 %v1062, 7
      %v1064 = vsub.s32 1, %v1063
      %v1065 = vrot.slane %v886, %v1064
      %v1070 = vunpack.c.l.b16 %v1058
      %v1071 = vunpack.c.l.b16 %v1059
      %v1072 = vunpack.c.l.b16 %v1060
      %v1073 = vunpack.c.l.b16 %v1061
      %v1074 = vpack.c.b16 %v1071, %v1070
      %v1075 = vpack.c.b16 %v1073, %v1072
      %v1079 = vsel %vm479, %v1057, 0
      %1081 = vmatprep.subr.bf16.mxu0 0
      %1082 = vmatpush1.bf16.msra.mxu0 %v1074
      %1083 = vmatprep.subr.bf16.mxu0 0
      %1084 = vmatpush1.bf16.msra.mxu0 %v1075
      %1085 = vmatprep.subr.bf16.mxu0 0
      %1086 = vmatpush1.bf16.msra.mxu0 0
      %1087 = vmatprep.subr.bf16.mxu0 0
      %1088 = vmatpush1.bf16.msra.mxu0 0
      %1089 = vmatprep.subr.bf16.mxu0 0
      %1090 = vmatpush1.bf16.msra.mxu0 0
      %1091 = vmatprep.subr.bf16.mxu0 0
      %1092 = vmatpush1.bf16.msra.mxu0 0
      %1093 = vmatprep.subr.bf16.mxu0 0
      %1094 = vmatpush1.bf16.msra.mxu0 0
      %1095 = vmatprep.subr.bf16.mxu0 0
      %1096 = vmatpush1.bf16.msra.mxu0 0
      %1097 = vmatprep.subr.bf16.mxu0 0
      %1098 = vmatpush1.bf16.msra.mxu0 0
      %1099 = vmatprep.subr.bf16.mxu0 0
      %1100 = vmatpush1.bf16.msra.mxu0 0
      %1101 = vmatprep.subr.bf16.mxu0 0
      %1102 = vmatpush1.bf16.msra.mxu0 0
      %1103 = vmatprep.subr.bf16.mxu0 0
      %1104 = vmatpush1.bf16.msra.mxu0 0
      %1105 = vmatprep.subr.bf16.mxu0 0
      %1106 = vmatpush1.bf16.msra.mxu0 0
      %1107 = vmatprep.subr.bf16.mxu0 0
      %1108 = vmatpush1.bf16.msra.mxu0 0
      %1109 = vmatprep.subr.bf16.mxu0 0
      %1110 = vmatpush1.bf16.msra.mxu0 0
      %1111 = vmatprep.subr.bf16.mxu0 0
      %1112 = vmatpush1.bf16.msra.mxu0 0
      %1113 = vmatprep.mubr.bf16.mxu0 0
      %1114 = vmatmul.mubr.bf16.gmra.mrb[0].mxu0 %v1079
      %v1115 = vpop.f32.mrb[0].mxu0
      %v1116 = vadd.f32 %v1065, %v1115
      %v1117 = vpop.f32.mrb[0].mxu0
      %v1118 = vpop.f32.mrb[0].mxu0
      %v1119 = vpop.f32.mrb[0].mxu0
      %1120 = vdwg.mxu0
      %v1121 = vmul.f32 %v1116, %v1116
      %v1122 = vsel %vm479, %v1121, 0.0
      %1123 = vadd.xlane.f32.xlu0 %v1122
      %v1124 = vpop.xlane.xlu0 %1123
      %v1125 = vmax.f32 %v1124, 1e-24
      %v1126 = vrsqrt.pop %v1125
      %v1127 = vmul.f32 %v1116, %v1126
      %v1128 = vld [vmem:[#allocation37] sm:$0x7]
      %v1129 = vld [vmem:[#allocation40] sm:$0x3]
      %v1130 = vld [vmem:[#allocation35] sm:$0xf]
      %v1131 = vld [vmem:[#allocation35 + $0x4] sm:$0xf]
      %v1132 = vld [vmem:[#allocation35 + $0x8] sm:$0xf]
      %v1133 = vld [vmem:[#allocation35 + $0xc] sm:$0xf]
      %v1134 = vld [vmem:[#allocation35 + $0x10] sm:$0xf]
      %v1135 = vld [vmem:[#allocation35 + $0x14] sm:$0xf]
      %v1136 = vlaneseq
      %v1137 = vshrl.u32 %v1136, 7
      %v1138 = vsub.s32 0, %v1137
      %v1139 = vrot.slane %v1128, %v1138
      %v1146 = vunpack.c.l.b16 %v1130
      %v1147 = vunpack.c.l.b16 %v1131
      %v1148 = vunpack.c.l.b16 %v1132
      %v1149 = vunpack.c.l.b16 %v1133
      %v1150 = vunpack.c.l.b16 %v1134
      %v1151 = vunpack.c.l.b16 %v1135
      %v1152 = vpack.c.b16 %v1147, %v1146
      %v1153 = vpack.c.b16 %v1149, %v1148
      %v1154 = vpack.c.b16 %v1151, %v1150
      %1158 = vmatprep.subr.bf16.mxu0 0
      %1159 = vmatpush1.bf16.msra.mxu0 %v1152
      %1160 = vmatprep.subr.bf16.mxu0 0
      %1161 = vmatpush1.bf16.msra.mxu0 %v1153
      %1162 = vmatprep.subr.bf16.mxu0 0
      %1163 = vmatpush1.bf16.msra.mxu0 %v1154
      %1164 = vmatprep.subr.bf16.mxu0 0
      %1165 = vmatpush1.bf16.msra.mxu0 0
      %1166 = vmatprep.subr.bf16.mxu0 0
      %1167 = vmatpush1.bf16.msra.mxu0 0
      %1168 = vmatprep.subr.bf16.mxu0 0
      %1169 = vmatpush1.bf16.msra.mxu0 0
      %1170 = vmatprep.subr.bf16.mxu0 0
      %1171 = vmatpush1.bf16.msra.mxu0 0
      %1172 = vmatprep.subr.bf16.mxu0 0
      %1173 = vmatpush1.bf16.msra.mxu0 0
      %1174 = vmatprep.subr.bf16.mxu0 0
      %1175 = vmatpush1.bf16.msra.mxu0 0
      %1176 = vmatprep.subr.bf16.mxu0 0
      %1177 = vmatpush1.bf16.msra.mxu0 0
      %1178 = vmatprep.subr.bf16.mxu0 0
      %1179 = vmatpush1.bf16.msra.mxu0 0
      %1180 = vmatprep.subr.bf16.mxu0 0
      %1181 = vmatpush1.bf16.msra.mxu0 0
      %1182 = vmatprep.subr.bf16.mxu0 0
      %1183 = vmatpush1.bf16.msra.mxu0 0
      %1184 = vmatprep.subr.bf16.mxu0 0
      %1185 = vmatpush1.bf16.msra.mxu0 0
      %1186 = vmatprep.subr.bf16.mxu0 0
      %1187 = vmatpush1.bf16.msra.mxu0 0
      %1188 = vmatprep.subr.bf16.mxu0 0
      %1189 = vmatpush1.bf16.msra.mxu0 0
      %1190 = vmatprep.mubr.bf16.mxu0 0
      %1191 = vmatmul.mubr.bf16.gmra.mrb[0].mxu0 %v678
      %v1192 = vpop.f32.mrb[0].mxu0
      %v1193 = vadd.f32 %v1139, %v1192
      %v1194 = vpop.f32.mrb[0].mxu0
      %v1195 = vpop.f32.mrb[0].mxu0
      %v1196 = vpop.f32.mrb[0].mxu0
      %1197 = vdwg.mxu0
      %v1198 = vsel %vm479, %v1193, 0.0
      %1199 = vadd.xlane.f32.xlu0 %v1198
      %v1200 = vpop.xlane.xlu0 %1199
      %v1201 = vmul.f32 %v1200, %v483
      %v1202 = vsub.f32 %v1193, %v1201
      %v1203 = vmul.f32 %v1202, %v1202
      %v1204 = vsel %vm479, %v1203, 0.0
      %1205 = vadd.xlane.f32.xlu0 %v1204
      %v1206 = vpop.xlane.xlu0 %1205
      %v1207 = vmul.f32 %v1206, %v483
      %v1208 = vadd.f32 %v1207, 1e-05
      %v1209 = vrsqrt.pop %v1208
      %v1210 = vmul.f32 %v1202, %v1209
      %v1211 = vlaneseq
      %v1212 = vshrl.u32 %v1211, 7
      %v1213 = vsub.s32 1, %v1212
      %v1214 = vrot.slane %v1128, %v1213
      %v1215 = vmul.f32 %v1210, %v1214
      %v1216 = vlaneseq
      %v1217 = vshrl.u32 %v1216, 7
      %v1218 = vsub.s32 2, %v1217
      %v1219 = vrot.slane %v1128, %v1218
      %v1220 = vadd.f32 %v1215, %v1219
      %v1221 = vxor.u32 %v1220, 2147483648
      %v1222 = vmul.f32 %v1221, 1.442695
      %v1223 = vpow.pop %v1222
      %v1224 = vadd.f32 %v1223, 1.0
      %v1225 = vrcp.pop %v1224
      %v1226 = vmul.f32 1.0, %v1225
      %v1227 = vmul.f32 %v1220, %v1226
      %v1228 = vpack.c.bf16 %v1227, %v1227
      %v1229 = vld [vmem:[#allocation38] sm:$0xf]
      %v1230 = vld [vmem:[#allocation38 + $0x4] sm:$0xf]
      %v1231 = vld [vmem:[#allocation38 + $0x8] sm:$0xf]
      %v1232 = vld [vmem:[#allocation38 + $0xc] sm:$0xf]
      %v1233 = vlaneseq
      %v1234 = vshrl.u32 %v1233, 7
      %v1235 = vsub.s32 0, %v1234
      %v1236 = vrot.slane %v1129, %v1235
      %v1241 = vunpack.c.l.b16 %v1229
      %v1242 = vunpack.c.l.b16 %v1230
      %v1243 = vunpack.c.l.b16 %v1231
      %v1244 = vunpack.c.l.b16 %v1232
      %v1245 = vpack.c.b16 %v1242, %v1241
      %v1246 = vpack.c.b16 %v1244, %v1243
      %v1250 = vsel %vm479, %v1228, 0
      %1252 = vmatprep.subr.bf16.mxu0 0
      %1253 = vmatpush1.bf16.msra.mxu0 %v1245
      %1254 = vmatprep.subr.bf16.mxu0 0
      %1255 = vmatpush1.bf16.msra.mxu0 %v1246
      %1256 = vmatprep.subr.bf16.mxu0 0
      %1257 = vmatpush1.bf16.msra.mxu0 0
      %1258 = vmatprep.subr.bf16.mxu0 0
      %1259 = vmatpush1.bf16.msra.mxu0 0
      %1260 = vmatprep.subr.bf16.mxu0 0
      %1261 = vmatpush1.bf16.msra.mxu0 0
      %1262 = vmatprep.subr.bf16.mxu0 0
      %1263 = vmatpush1.bf16.msra.mxu0 0
      %1264 = vmatprep.subr.bf16.mxu0 0
      %1265 = vmatpush1.bf16.msra.mxu0 0
      %1266 = vmatprep.subr.bf16.mxu0 0
      %1267 = vmatpush1.bf16.msra.mxu0 0
      %1268 = vmatprep.subr.bf16.mxu0 0
      %1269 = vmatpush1.bf16.msra.mxu0 0
      %1270 = vmatprep.subr.bf16.mxu0 0
      %1271 = vmatpush1.bf16.msra.mxu0 0
      %1272 = vmatprep.subr.bf16.mxu0 0
      %1273 = vmatpush1.bf16.msra.mxu0 0
      %1274 = vmatprep.subr.bf16.mxu0 0
      %1275 = vmatpush1.bf16.msra.mxu0 0
      %1276 = vmatprep.subr.bf16.mxu0 0
      %1277 = vmatpush1.bf16.msra.mxu0 0
      %1278 = vmatprep.subr.bf16.mxu0 0
      %1279 = vmatpush1.bf16.msra.mxu0 0
      %1280 = vmatprep.subr.bf16.mxu0 0
      %1281 = vmatpush1.bf16.msra.mxu0 0
      %1282 = vmatprep.subr.bf16.mxu0 0
      %1283 = vmatpush1.bf16.msra.mxu0 0
      %1284 = vmatprep.mubr.bf16.mxu0 0
      %1285 = vmatmul.mubr.bf16.gmra.mrb[0].mxu0 %v1250
      %v1286 = vpop.f32.mrb[0].mxu0
      %v1287 = vadd.f32 %v1236, %v1286
      %v1288 = vpop.f32.mrb[0].mxu0
      %v1289 = vpop.f32.mrb[0].mxu0
      %v1290 = vpop.f32.mrb[0].mxu0
      %1291 = vdwg.mxu0
      %v1292 = vpack.c.bf16 %v1287, %v1287
      %v1293 = vld [vmem:[#allocation41] sm:$0xf]
      %v1294 = vld [vmem:[#allocation41 + $0x4] sm:$0xf]
      %v1295 = vld [vmem:[#allocation41 + $0x8] sm:$0xf]
      %v1296 = vld [vmem:[#allocation41 + $0xc] sm:$0xf]
      %v1297 = vlaneseq
      %v1298 = vshrl.u32 %v1297, 7
      %v1299 = vsub.s32 1, %v1298
      %v1300 = vrot.slane %v1129, %v1299
      %v1305 = vunpack.c.l.b16 %v1293
      %v1306 = vunpack.c.l.b16 %v1294
      %v1307 = vunpack.c.l.b16 %v1295
      %v1308 = vunpack.c.l.b16 %v1296
      %v1309 = vpack.c.b16 %v1306, %v1305
      %v1310 = vpack.c.b16 %v1308, %v1307
      %v1314 = vsel %vm479, %v1292, 0
      %1316 = vmatprep.subr.bf16.mxu0 0
      %1317 = vmatpush1.bf16.msra.mxu0 %v1309
      %1318 = vmatprep.subr.bf16.mxu0 0
      %1319 = vmatpush1.bf16.msra.mxu0 %v1310
      %1320 = vmatprep.subr.bf16.mxu0 0
      %1321 = vmatpush1.bf16.msra.mxu0 0
      %1322 = vmatprep.subr.bf16.mxu0 0
      %1323 = vmatpush1.bf16.msra.mxu0 0
      %1324 = vmatprep.subr.bf16.mxu0 0
      %1325 = vmatpush1.bf16.msra.mxu0 0
      %1326 = vmatprep.subr.bf16.mxu0 0
      %1327 = vmatpush1.bf16.msra.mxu0 0
      %1328 = vmatprep.subr.bf16.mxu0 0
      %1329 = vmatpush1.bf16.msra.mxu0 0
      %1330 = vmatprep.subr.bf16.mxu0 0
      %1331 = vmatpush1.bf16.msra.mxu0 0
      %1332 = vmatprep.subr.bf16.mxu0 0
      %1333 = vmatpush1.bf16.msra.mxu0 0
      %1334 = vmatprep.subr.bf16.mxu0 0
      %1335 = vmatpush1.bf16.msra.mxu0 0
      %1336 = vmatprep.subr.bf16.mxu0 0
      %1337 = vmatpush1.bf16.msra.mxu0 0
      %1338 = vmatprep.subr.bf16.mxu0 0
      %1339 = vmatpush1.bf16.msra.mxu0 0
      %1340 = vmatprep.subr.bf16.mxu0 0
      %1341 = vmatpush1.bf16.msra.mxu0 0
      %1342 = vmatprep.subr.bf16.mxu0 0
      %1343 = vmatpush1.bf16.msra.mxu0 0
      %1344 = vmatprep.subr.bf16.mxu0 0
      %1345 = vmatpush1.bf16.msra.mxu0 0
      %1346 = vmatprep.subr.bf16.mxu0 0
      %1347 = vmatpush1.bf16.msra.mxu0 0
      %1348 = vmatprep.mubr.bf16.mxu0 0
      %1349 = vmatmul.mubr.bf16.gmra.mrb[0].mxu0 %v1314
      %v1350 = vpop.f32.mrb[0].mxu0
      %v1351 = vadd.f32 %v1300, %v1350
      %v1352 = vpop.f32.mrb[0].mxu0
      %v1353 = vpop.f32.mrb[0].mxu0
      %v1354 = vpop.f32.mrb[0].mxu0
      %1355 = vdwg.mxu0
      %v1356 = vmul.f32 %v1351, %v1351
      %v1357 = vsel %vm479, %v1356, 0.0
      %1358 = vadd.xlane.f32.xlu0 %v1357
      %v1359 = vpop.xlane.xlu0 %1358
      %v1360 = vmax.f32 %v1359, 1e-24
      %v1361 = vrsqrt.pop %v1360
      %v1362 = vmul.f32 %v1351, %v1361
      %1363 = vst.msk [vmem:[#allocation46] sm:$0xff] %vm479, %v645
      %1364 = vst.msk [vmem:[#allocation47] sm:$0xff] %vm479, %v884
      %1365 = vst.msk [vmem:[#allocation49] sm:$0xff] %vm479, %v1127
      %1366 = vst.msk [vmem:[#allocation50] sm:$0xff] %vm479, %v1362
      %v1367 = vmul.f32 %v645, 14.285714
      %v1368 = vpack.c.bf16 %v1367, %v1367
      %vm1369 = vcmask 257024
      %1370 = vst.msk [vmem:[#allocation2] sm:$0xf] %vm1369, %v1368
      %v1371 = vmul.f32 %v884, 14.285714
      %v1372 = vpack.c.bf16 %v1371, %v1371
      %1373 = vst.msk [vmem:[#allocation3] sm:$0xf] %vm1369, %v1372
      %v1374 = vmul.f32 %v645, %v1362
      %v1375 = vsel %vm479, %v1374, 0.0
      %1376 = vadd.xlane.f32.xlu0 %v1375
      %v1377 = vpop.xlane.xlu0 %1376
      %v1378 = vmul.f32 %v1377, 14.285714
      %v1379 = vmul.f32 %v884, %v1127
      %v1380 = vsel %vm479, %v1379, 0.0
      %1381 = vadd.xlane.f32.xlu0 %v1380
      %v1382 = vpop.xlane.xlu0 %1381
      %v1383 = vmul.f32 %v1382, 14.285714
      %vm1384 = vcmask 7168
      %1385 = vst.msk [vmem:[#allocation4] sm:$0xff] %vm1384, %v1378
      %1386 = vst.msk [vmem:[#allocation6] sm:$0xff] %vm1384, %v1383
      %v1387 = vsub.f32 %v1378, 14.285714
      %v1388 = vmul.f32 %v1387, 1.442695
      %v1389 = vpow.pop %v1388
      %1390 = vst.msk [vmem:[#allocation5] sm:$0xff] %vm1384, %v1389
      %v1391 = vsub.f32 %v1383, 14.285714
      %v1392 = vmul.f32 %v1391, 1.442695
      %v1393 = vpow.pop %v1392
      %1394 = vst.msk [vmem:[#allocation7] sm:$0xff] %vm1384, %v1393
    $region197: #{tpu_custom_call.1} parent=1 // pred_fallthru
      _
    %v1395 = vld [vmem:[#allocation2] sm:$0xf]
    %v1396 = vld [vmem:[#allocation43] sm:$0xf]
    %v1397 = vld [vmem:[#allocation43 + $0x4] sm:$0xf]
    %v1398 = vld [vmem:[#allocation43 + $0x8] sm:$0xf]
    %v1399 = vld [vmem:[#allocation43 + $0xc] sm:$0xf]
    %v1404 = vunpack.c.l.b16 %v1396
    %v1405 = vunpack.c.l.b16 %v1397
    %v1406 = vunpack.c.l.b16 %v1398
    %v1407 = vunpack.c.l.b16 %v1399
    %v1408 = vpack.c.b16 %v1405, %v1404
    %v1409 = vpack.c.b16 %v1407, %v1406
    %vm1412 = vcmask 261120
    %v1414 = vsel %vm1412, %v1395, 0
    %1416 = vmatprep.subr.bf16.mxu0 0
    %1417 = vmatpush1.bf16.msra.mxu0 %v1408
    %1418 = vmatprep.subr.bf16.mxu0 0
    %1419 = vmatpush1.bf16.msra.mxu0 %v1409
    %1420 = vmatprep.subr.bf16.mxu0 0
    %1421 = vmatpush1.bf16.msra.mxu0 0
    %1422 = vmatprep.subr.bf16.mxu0 0
    %1423 = vmatpush1.bf16.msra.mxu0 0
    %1424 = vmatprep.subr.bf16.mxu0 0
    %1425 = vmatpush1.bf16.msra.mxu0 0
    %1426 = vmatprep.subr.bf16.mxu0 0
    %1427 = vmatpush1.bf16.msra.mxu0 0
    %1428 = vmatprep.subr.bf16.mxu0 0
    %1429 = vmatpush1.bf16.msra.mxu0 0
    %1430 = vmatprep.subr.bf16.mxu0 0
    %1431 = vmatpush1.bf16.msra.mxu0 0
    %1432 = vmatprep.subr.bf16.mxu0 0
    %1433 = vmatpush1.bf16.msra.mxu0 0
    %1434 = vmatprep.subr.bf16.mxu0 0
    %1435 = vmatpush1.bf16.msra.mxu0 0
    %1436 = vmatprep.subr.bf16.mxu0 0
    %1437 = vmatpush1.bf16.msra.mxu0 0
    %1438 = vmatprep.subr.bf16.mxu0 0
    %1439 = vmatpush1.bf16.msra.mxu0 0
    %1440 = vmatprep.subr.bf16.mxu0 0
    %1441 = vmatpush1.bf16.msra.mxu0 0
    %1442 = vmatprep.subr.bf16.mxu0 0
    %1443 = vmatpush1.bf16.msra.mxu0 0
    %1444 = vmatprep.subr.bf16.mxu0 0
    %1445 = vmatpush1.bf16.msra.mxu0 0
    %1446 = vmatprep.subr.bf16.mxu0 0
    %1447 = vmatpush1.bf16.msra.mxu0 0
    %1448 = vmatprep.mubr.bf16.mxu0 0
    %1449 = vmatmul.mubr.bf16.gmra.mrb[0].mxu0 %v1414
    %v1450 = vpop.f32.mrb[0].mxu0
    %v1451 = vadd.f32 0.0, %v1450
    %v1452 = vpop.f32.mrb[0].mxu0
    %v1453 = vpop.f32.mrb[0].mxu0
    %v1454 = vpop.f32.mrb[0].mxu0
    %1455 = vdwg.mxu0
    %v1456 = vsub.f32 %v1451, 14.285714
    %v1457 = vpack.c.bf16 %v1456, %v1456
    %v1459 = vmul.bf16 %v1457, 1069105081
    %v1460 = vpow.bf16.pop %v1459
    %v1461 = vld [vmem:[#allocation5] sm:$0xff]
    %v1462 = vunpack.c.l.bf16 %v1460
    %1463 = vadd.xlane.f32.xlu0 %v1462
    %v1464 = vpop.xlane.xlu0 %1463
    %v1465 = vadd.f32 %v1461, %v1464
    %vm1466 = vcmask 7168
    %1467 = vst.msk [vmem:[#allocation5] sm:$0xff] %vm1466, %v1465
    %v1468 = vld [vmem:[#allocation3] sm:$0xf]
    %v1469 = vld [vmem:[#allocation44] sm:$0xf]
    %v1470 = vld [vmem:[#allocation44 + $0x4] sm:$0xf]
    %v1471 = vld [vmem:[#allocation44 + $0x8] sm:$0xf]
    %v1472 = vld [vmem:[#allocation44 + $0xc] sm:$0xf]
    %v1477 = vunpack.c.l.b16 %v1469
    %v1478 = vunpack.c.l.b16 %v1470
    %v1479 = vunpack.c.l.b16 %v1471
    %v1480 = vunpack.c.l.b16 %v1472
    %v1481 = vpack.c.b16 %v1478, %v1477
    %v1482 = vpack.c.b16 %v1480, %v1479
    %v1486 = vsel %vm1412, %v1468, 0
    %1488 = vmatprep.subr.bf16.mxu0 0
    %1489 = vmatpush1.bf16.msra.mxu0 %v1481
    %1490 = vmatprep.subr.bf16.mxu0 0
    %1491 = vmatpush1.bf16.msra.mxu0 %v1482
    %1492 = vmatprep.subr.bf16.mxu0 0
    %1493 = vmatpush1.bf16.msra.mxu0 0
    %1494 = vmatprep.subr.bf16.mxu0 0
    %1495 = vmatpush1.bf16.msra.mxu0 0
    %1496 = vmatprep.subr.bf16.mxu0 0
    %1497 = vmatpush1.bf16.msra.mxu0 0
    %1498 = vmatprep.subr.bf16.mxu0 0
    %1499 = vmatpush1.bf16.msra.mxu0 0
    %1500 = vmatprep.subr.bf16.mxu0 0
    %1501 = vmatpush1.bf16.msra.mxu0 0
    %1502 = vmatprep.subr.bf16.mxu0 0
    %1503 = vmatpush1.bf16.msra.mxu0 0
    %1504 = vmatprep.subr.bf16.mxu0 0
    %1505 = vmatpush1.bf16.msra.mxu0 0
    %1506 = vmatprep.subr.bf16.mxu0 0
    %1507 = vmatpush1.bf16.msra.mxu0 0
    %1508 = vmatprep.subr.bf16.mxu0 0
    %1509 = vmatpush1.bf16.msra.mxu0 0
    %1510 = vmatprep.subr.bf16.mxu0 0
    %1511 = vmatpush1.bf16.msra.mxu0 0
    %1512 = vmatprep.subr.bf16.mxu0 0
    %1513 = vmatpush1.bf16.msra.mxu0 0
    %1514 = vmatprep.subr.bf16.mxu0 0
    %1515 = vmatpush1.bf16.msra.mxu0 0
    %1516 = vmatprep.subr.bf16.mxu0 0
    %1517 = vmatpush1.bf16.msra.mxu0 0
    %1518 = vmatprep.subr.bf16.mxu0 0
    %1519 = vmatpush1.bf16.msra.mxu0 0
    %1520 = vmatprep.mubr.bf16.mxu0 0
    %1521 = vmatmul.mubr.bf16.gmra.mrb[0].mxu0 %v1486
    %v1522 = vpop.f32.mrb[0].mxu0
    %v1523 = vadd.f32 0.0, %v1522
    %v1524 = vpop.f32.mrb[0].mxu0
    %v1525 = vpop.f32.mrb[0].mxu0
    %v1526 = vpop.f32.mrb[0].mxu0
    %1527 = vdwg.mxu0
    %v1528 = vsub.f32 %v1523, 14.285714
    %v1529 = vpack.c.bf16 %v1528, %v1528
    %v1531 = vmul.bf16 %v1529, 1069105081
    %v1532 = vpow.bf16.pop %v1531
    %v1533 = vld [vmem:[#allocation7] sm:$0xff]
    %v1534 = vunpack.c.l.bf16 %v1532
    %1535 = vadd.xlane.f32.xlu0 %v1534
    %v1536 = vpop.xlane.xlu0 %1535
    %v1537 = vadd.f32 %v1533, %v1536
    %1538 = vst.msk [vmem:[#allocation7] sm:$0xff] %vm1466, %v1537
    // Predicated region
    $region198: #{tpu_custom_call.1} parent=1 // pred_check
      %p1539 = pneg %p391
    $region199: #{tpu_custom_call.1} parent=1 // pred_check_branch
      %1541 = sbr.rel (%p1539) target = $region201
    $region200: #{tpu_custom_call.1} parent=1 // pred_region
      %v1542 = vld [vmem:[#allocation5] sm:$0xff]
      %v1543 = vlog2.pop %v1542
      %v1544 = vmul.f32 %v1543, 0.6931472
      %v1545 = vadd.f32 %v1544, 14.285714
      %v1546 = vld [vmem:[#allocation4] sm:$0xff]
      %v1547 = vsub.f32 %v1545, %v1546
      %1548 = vst.msk [vmem:[#allocation52] sm:$0xff] %vm1466, %v1547
      %v1549 = vld [vmem:[#allocation7] sm:$0xff]
      %v1550 = vlog2.pop %v1549
      %v1551 = vmul.f32 %v1550, 0.6931472
      %v1552 = vadd.f32 %v1551, 14.285714
      %v1553 = vld [vmem:[#allocation6] sm:$0xff]
      %v1554 = vsub.f32 %v1552, %v1553
      %1556 = vrot.lane.b32.xlu0 %v1554, 1
      %v1557 = vpop.permute.xlu0 %1556
      %vm1559 = vcmask 15368
      %1560 = vst.msk [vmem:[#allocation52] sm:$0xff] %vm1559, %v1557
    $region201: #{tpu_custom_call.1} parent=1 // pred_fallthru
      _
    // Predicated region
    $region202: #{tpu_custom_call.1} parent=1 // pred_check
      _
    $region203: #{tpu_custom_call.1} parent=1 // pred_check_branch
      %1562 = sbr.rel (0) target = $region205
    $region204: #{tpu_custom_call.1} parent=1 // pred_region
      %s1564 = ssub.s32 128, 128
      %1565 = vsyncadd [#allocation10], %s1564
      %s1567 = sshll.u32 [#allocation46], 4
      %s1568 = int_to_ptr.vmem [resolvable:$true] %s1567
      %1570 = dma.vmem_to_hbm [thread:$0]  %s1568, 128, %s24, [#allocation10]
    $region205: #{tpu_custom_call.1} parent=1 // pred_fallthru
      _
    // Predicated region
    $region206: #{tpu_custom_call.1} parent=1 // pred_check
      _
    $region207: #{tpu_custom_call.1} parent=1 // pred_check_branch
      %1572 = sbr.rel (0) target = $region209
    $region208: #{tpu_custom_call.1} parent=1 // pred_region
      %s1574 = ssub.s32 128, 128
      %1575 = vsyncadd [#allocation48], %s1574
      %s1577 = sshll.u32 [#allocation47], 4
      %s1578 = int_to_ptr.vmem [resolvable:$true] %s1577
      %1580 = dma.vmem_to_hbm [thread:$0]  %s1578, 128, %s25, [#allocation48]
    $region209: #{tpu_custom_call.1} parent=1 // pred_fallthru
      _
    // Predicated region
    $region210: #{tpu_custom_call.1} parent=1 // pred_check
      _
    $region211: #{tpu_custom_call.1} parent=1 // pred_check_branch
      %1582 = sbr.rel (0) target = $region213
    $region212: #{tpu_custom_call.1} parent=1 // pred_region
      %s1584 = ssub.s32 128, 128
      %1585 = vsyncadd [#allocation48], %s1584
      %s1587 = sshll.u32 [#allocation49], 4
      %s1588 = int_to_ptr.vmem [resolvable:$true] %s1587
      %1590 = dma.vmem_to_hbm [thread:$0]  %s1588, 128, %s26, [#allocation48]
    $region213: #{tpu_custom_call.1} parent=1 // pred_fallthru
      _
    // Predicated region
    $region214: #{tpu_custom_call.1} parent=1 // pred_check
      _
    $region215: #{tpu_custom_call.1} parent=1 // pred_check_branch
      %1592 = sbr.rel (0) target = $region217
    $region216: #{tpu_custom_call.1} parent=1 // pred_region
      %s1594 = ssub.s32 128, 128
      %1595 = vsyncadd [#allocation51], %s1594
      %s1597 = sshll.u32 [#allocation50], 4
      %s1598 = int_to_ptr.vmem [resolvable:$true] %s1597
      %1600 = dma.vmem_to_hbm [thread:$0]  %s1598, 128, %s27, [#allocation51]
    $region217: #{tpu_custom_call.1} parent=1 // pred_fallthru
      _
    // Predicated region
    $region218: #{tpu_custom_call.1} parent=1 // pred_check
      _
    $region219: #{tpu_custom_call.1} parent=1 // pred_check_branch
      %1602 = sbr.rel (0) target = $region221
    $region220: #{tpu_custom_call.1} parent=1 // pred_region
      %s1604 = ssub.s32 128, 128
      %1605 = vsyncadd [#allocation51], %s1604
      %s1607 = sshll.u32 [#allocation52], 4
      %s1608 = int_to_ptr.vmem [resolvable:$true] %s1607
      %1610 = dma.vmem_to_hbm [thread:$0]  %s1608, 128, %s28, [#allocation51]
    $region221: #{tpu_custom_call.1} parent=1 // pred_fallthru
      _
    // Predicated region
    $region222: #{tpu_custom_call.1} parent=1 // pred_check
      _
    $region223: #{tpu_custom_call.1} parent=1 // pred_check_branch
      %1612 = sbr.rel (0) target = $region225
    $region224: #{tpu_custom_call.1} parent=1 // pred_region
      %1613 = dma.done [#allocation10], 128
    $region225: #{tpu_custom_call.1} parent=1 // pred_fallthru
      _
    // Predicated region
    $region226: #{tpu_custom_call.1} parent=1 // pred_check
      _
    $region227: #{tpu_custom_call.1} parent=1 // pred_check_branch
      %1615 = sbr.rel (0) target = $region229
    $region228: #{tpu_custom_call.1} parent=1 // pred_region
      %1616 = dma.done [#allocation48], 128
    $region229: #{tpu_custom_call.1} parent=1 // pred_fallthru
      _
    // Predicated region
    $region230: #{tpu_custom_call.1} parent=1 // pred_check
      _
    $region231: #{tpu_custom_call.1} parent=1 // pred_check_branch
      %1618 = sbr.rel (0) target = $region233
    $region232: #{tpu_custom_call.1} parent=1 // pred_region
      %1619 = dma.done [#allocation48], 128
    $region233: #{tpu_custom_call.1} parent=1 // pred_fallthru
      _
    // Predicated region
    $region234: #{tpu_custom_call.1} parent=1 // pred_check
      _
    $region235: #{tpu_custom_call.1} parent=1 // pred_check_branch
      %1621 = sbr.rel (0) target = $region237
    $region236: #{tpu_custom_call.1} parent=1 // pred_region
      %1622 = dma.done [#allocation51], 128
    $region237: #{tpu_custom_call.1} parent=1 // pred_fallthru
      _
    // Predicated region
    $region238: #{tpu_custom_call.1} parent=1 // pred_check
      _
    $region239: #{tpu_custom_call.1} parent=1 // pred_check_branch
      %1624 = sbr.rel (0) target = $region241
    $region240: #{tpu_custom_call.1} parent=1 // pred_region
      %1625 = dma.done [#allocation51], 128
    $region241: #{tpu_custom_call.1} parent=1 // pred_fallthru
      _
    %1626 = vsyncpa [#allocation9], 1
    %1627 = vsyncpa [#allocation12], 1
    %1628 = vsyncpa [#allocation15], 1
    %1629 = vsyncpa [#allocation18], 1
    %1630 = vsyncpa [#allocation21], 1
    %1631 = vsyncpa [#allocation24], 1
    %1632 = vsyncpa [#allocation27], 1
    %1633 = vsyncpa [#allocation30], 1
    %1634 = vsyncpa [#allocation33], 1
    %1635 = vsyncpa [#allocation36], 1
    %1636 = vsyncpa [#allocation39], 1
    %1637 = vsyncpa [#allocation42], 1
    %1638 = vsyncpa [#allocation45], 1
    %1639 = vsyncpa [#allocation10], 1
    %1640 = vsyncpa [#allocation48], 1
    %1641 = vsyncpa [#allocation51], 1

</llo_original>
